<compile_context>
chip_gen: v5e
topology: v5e:2x2
jax: 0.10.0
libtpu: 0.0.40
codegen_flags: <defaults>
</compile_context>

<pallas_src>
import functools

import jax
import jax.numpy as jnp
from jax import lax
from jax.experimental import pallas as pl
from jax.experimental.pallas import tpu as pltpu


# ---------------------------------------------------------------------------
# In-kernel helpers
# ---------------------------------------------------------------------------
def _gelu_tanh(x):
    # TODO(synk): PyTorch nn.GELU default is exact erf; tanh approximation is
    # used here for guaranteed TPU (EUP) lowering.
    c = jnp.float32(0.7978845608028654)  # sqrt(2/pi)
    return 0.5 * x * (1.0 + jnp.tanh(c * (x + 0.044715 * x * x * x)))


def _layer_norm(x, gamma, beta, eps=1e-5):
    mu = jnp.mean(x, axis=-1, keepdims=True)
    var = jnp.mean((x - mu) ** 2, axis=-1, keepdims=True)
    return (x - mu) * jax.lax.rsqrt(var + eps) * gamma + beta


def _bf16(x):
    return x.astype(jnp.bfloat16)


# ---------------------------------------------------------------------------
# Per-(bag, layer) kernel.  Grid = (B, L); bag is parallel, layer is arbitrary.
# The hidden state h is resident in h_ref (output block with constant index
# across the layer axis).
# ---------------------------------------------------------------------------
def transmil_layer_kernel(
        # bag-indexed inputs -------------------------------------------------
        feat_ref,                        # (1, N, F)   bf16
        coord_ref,                       # (1, N, 2)   f32
        # constant embedding weights ------------------------------------------
        w_proj_ref, w_pos_ref, b_in_ref,           # (F,D) bf16, (2,D) f32, (1,D) f32
        # per-layer weights (block index = layer id) --------------------------
        ln1g_ref, ln1b_ref,                        # (1, 1, D) f32
        wq_ref, bq_ref, wk_ref, bk_ref, wv_ref, bv_ref,   # (1,D,D) bf16 / (1,1,D) f32
        wo_ref, bo_ref,                            # (1, D, D) bf16, (1, 1, D) f32
        ln2g_ref, ln2b_ref,                        # (1, 1, D) f32
        w1_ref, b1_ref, w2_ref, b2_ref,            # (1,D,dff) bf16,(1,1,dff),(1,dff,D) bf16,(1,1,D)
        # constant head weights ------------------------------------------------
        va_ref, ba_ref, wa_t_ref,                  # (D, Da), (1, Da), (1, Da) f32
        wi_t_ref, bi_ref,                          # (2, D), (2, 1) f32
        wr1_ref, br1_ref, wr2_ref, br2_ref,        # (D, D2), (1, D2), (D2, 1), (1, 1) f32
        # outputs -------------------------------------------------------------
        h_ref,                           # (1, N, D)       f32   (resident hidden state)
        amap_ref,                        # (1, 1, H, N, N) bf16  (this layer's maps)
        small_ref,                       # (1, 4, N)       f32   (attnw / inst / pred)
        *, num_heads):
    l = pl.program_id(1)
    num_layers = pl.num_programs(1)

    # ---- embedding (feature proj + positional embedding), first step only --
    @pl.when(l == 0)
    def _embed():
        h0 = (jnp.dot(feat_ref[0], w_proj_ref[...],
                      preferred_element_type=jnp.float32)
              + jnp.dot(coord_ref[0], w_pos_ref[...],
                        preferred_element_type=jnp.float32)
              + b_in_ref[...])
        h_ref[0] = h0

    h = h_ref[0]                                   # (N, D) f32, resident in VMEM
    n_tok, d_model = h.shape
    dh = d_model // num_heads
    scale = dh ** -0.5

    # ---- pre-LN multi-head self-attention (head-batched, no transposes) ----
    xnb = _bf16(_layer_norm(h, ln1g_ref[0], ln1b_ref[0]))
    q = jnp.dot(xnb, wq_ref[0], preferred_element_type=jnp.float32) + bq_ref[0]
    k = jnp.dot(xnb, wk_ref[0], preferred_element_type=jnp.float32) + bk_ref[0]
    v = jnp.dot(xnb, wv_ref[0], preferred_element_type=jnp.float32) + bv_ref[0]

    def split_heads(t):                            # (N, D) f32 -> (H, N, dh) bf16
        return jnp.stack(
            [t[:, hd * dh:(hd + 1) * dh] for hd in range(num_heads)],
            axis=0).astype(jnp.bfloat16)

    q3 = split_heads(q)
    k3 = split_heads(k)
    v3 = split_heads(v)

    # scores: contract dh directly (no .T), batched over heads  -> (H, N, N)
    s = jnp.einsum('hnd,hmd->hnm', q3, k3,
                   preferred_element_type=jnp.float32) * scale
    s = s - jnp.max(s, axis=-1, keepdims=True)
    e = jnp.exp(s)
    # single bf16 p used both for the amap write and the p@v matmul
    p = (e * pl.reciprocal(jnp.sum(e, axis=-1, keepdims=True),
                           approx=True)).astype(jnp.bfloat16)
    amap_ref[0, 0] = p                                           # bf16 write

    ctx3 = jnp.einsum('hnm,hmd->hnd', p, v3,
                      preferred_element_type=jnp.float32)        # (H, N, dh) f32
    # merge heads back to (N, D) and keep the single D-wide output projection
    # (dh < 128 -> per-head K=dh projections would underutilize the MXU).
    ctx = _bf16(jnp.concatenate(
        [ctx3[hd] for hd in range(num_heads)], axis=-1))         # (N, D) bf16
    h = h + (jnp.dot(ctx, wo_ref[0], preferred_element_type=jnp.float32)
             + bo_ref[0])

    # ---- pre-LN feed-forward ------------------------------------------------
    x2b = _bf16(_layer_norm(h, ln2g_ref[0], ln2b_ref[0]))
    f = jnp.dot(x2b, w1_ref[0], preferred_element_type=jnp.float32) + b1_ref[0]
    f = _gelu_tanh(f)
    f = jnp.dot(_bf16(f), w2_ref[0], preferred_element_type=jnp.float32) + b2_ref[0]
    h = h + f
    h_ref[0] = h

    # ---- pooling / instance classifier / bag regressor on the last layer ----
    @pl.when(l == num_layers - 1)
    def _epilogue():
        # gated attention pooling (exact reciprocal; tiny)
        a = jnp.tanh(jnp.dot(h, va_ref[...], preferred_element_type=jnp.float32)
                     + ba_ref[...])                              # (N, Da)
        sp = lax.dot_general(wa_t_ref[...], a, (((1,), (1,)), ((), ())),
                             preferred_element_type=jnp.float32)  # (1, N)
        sp = sp - jnp.max(sp, axis=-1, keepdims=True)
        ep = jnp.exp(sp)
        w_row = ep / jnp.sum(ep, axis=-1, keepdims=True)          # (1, N) exact
        bag = jnp.dot(w_row, h, preferred_element_type=jnp.float32)   # (1, D)

        # instance classifier, lane-dense (2, N)
        inst = (lax.dot_general(wi_t_ref[...], h, (((1,), (1,)), ((), ())),
                                preferred_element_type=jnp.float32)
                + bi_ref[...])                                    # (2, N)

        # bag regressor: Linear -> GELU -> Linear -> clamp to score_range (0,3)
        m = _gelu_tanh(jnp.dot(bag, wr1_ref[...],
                               preferred_element_type=jnp.float32) + br1_ref[...])
        y = (jnp.dot(m, wr2_ref[...], preferred_element_type=jnp.float32)
             + br2_ref[...])
        y = jnp.clip(y, 0.0, 3.0)                                 # (1, 1)

        small_ref[0, 0:1, :] = w_row                              # attention weights
        small_ref[0, 1:3, :] = inst                               # instance logits
        small_ref[0, 3:4, :] = jnp.broadcast_to(y, (1, n_tok))    # bag prediction


# ---------------------------------------------------------------------------
# Wrapper
# ---------------------------------------------------------------------------
def _bag_map(ndim):
    return lambda b, l: (b,) + (0,) * (ndim - 1)


def _const_map(ndim):
    return lambda b, l: (0,) * ndim


def _layer_map(ndim):
    return lambda b, l: (l,) + (0,) * (ndim - 1)


def _vmem_limit_bytes():
    mib = 1024 * 1024
    try:
        phys = int(pltpu.get_tpu_info().vmem_capacity_bytes)
    except Exception:
        phys = 64 * mib                           # conservative fallback
    # ~104 MiB on 128-MiB parts (v5e/v6e), 48 MiB on v7x's 64 MiB.
    return 48 * mib if phys <= 64 * mib else 104 * mib


def transmil_forward(params, features, coordinates, *, num_heads):
    B, N, F = features.shape
    D = params["w_proj"].shape[1]
    L = len(params["layers"])
    H = num_heads
    Da = params["v_attn"].shape[1]

    # bf16 features halve the dominant input DMA; coords stay f32 (tiny).
    feats_bf16 = features.astype(jnp.bfloat16)
    b_in = params["b_proj"] + params["b_pos"]     # biases fold exactly

    def stack(name, dtype=None):
        arr = jnp.stack([lyr[name] for lyr in params["layers"]], axis=0)
        return arr.astype(dtype) if dtype is not None else arr

    bag_args = (feats_bf16, coordinates)
    const_args = (params["w_proj"].astype(jnp.bfloat16),    # (F, D)
                  params["w_pos"],                           # (2, D)
                  b_in)                                      # (1, D)
    layer_args = (
        stack("ln1_g"), stack("ln1_b"),
        stack("wq", jnp.bfloat16), stack("bq"),
        stack("wk", jnp.bfloat16), stack("bk"),
        stack("wv", jnp.bfloat16), stack("bv"),
        stack("wo", jnp.bfloat16), stack("bo"),
        stack("ln2_g"), stack("ln2_b"),
        stack("w1", jnp.bfloat16), stack("b1"),
        stack("w2", jnp.bfloat16), stack("b2"),
    )
    head_args = (
        params["v_attn"], params["b_attn"],
        params["w_attn"].reshape(1, Da),          # (1, Da)  rhs-transposed form
        params["w_inst"].T,                       # (2, D)
        params["b_inst"].reshape(2, 1),           # (2, 1)
        params["w_reg1"], params["b_reg1"],
        params["w_reg2"], params["b_reg2"],
    )
    args = bag_args + const_args + layer_args + head_args

    out_shape = (
        jax.ShapeDtypeStruct((B, N, D), jnp.float32),        # patch features
        jax.ShapeDtypeStruct((B, L, H, N, N), jnp.bfloat16),  # attention maps
        jax.ShapeDtypeStruct((B, 4, N), jnp.float32),         # attnw/inst/pred
    )

    def _call(single_buffer_consts):
        def const_spec(arr):
            kw = {}
            if single_buffer_consts:
                # constant block index across the whole grid -> no need for
                # the default double buffer.
                kw["pipeline_mode"] = pl.Buffered(1)
            return pl.BlockSpec(arr.shape, _const_map(arr.ndim), **kw)

        def layer_spec(arr):
            return pl.BlockSpec((1,) + arr.shape[1:], _layer_map(arr.ndim))

        in_specs = (
            [pl.BlockSpec((1, N, F), _bag_map(3)),
             pl.BlockSpec((1, N, 2), _bag_map(3))]
            + [const_spec(a) for a in const_args]
            + [layer_spec(a) for a in layer_args]
            + [const_spec(a) for a in head_args])
        out_specs = (
            pl.BlockSpec((1, N, D), lambda b, l: (b, 0, 0)),
            pl.BlockSpec((1, 1, H, N, N), lambda b, l: (b, l, 0, 0, 0)),
            pl.BlockSpec((1, 4, N), lambda b, l: (b, 0, 0)),
        )
        return pl.pallas_call(
            functools.partial(transmil_layer_kernel, num_heads=H),
            grid=(B, L),
            in_specs=in_specs,
            out_specs=out_specs,
            out_shape=out_shape,
            compiler_params=pltpu.CompilerParams(
                dimension_semantics=("parallel", "arbitrary"),
                vmem_limit_bytes=_vmem_limit_bytes()))

    try:
        h_out, amap, small = _call(True)(*args)
        jax.block_until_ready((h_out, amap, small))
    except Exception:
        # pipeline_mode / Buffered(1) unsupported on this JAX version:
        # fall back to default (double-buffered) weight specs.
        h_out, amap, small = _call(False)(*args)

    return {
        "predictions": small[:, 3, 0],                        # (B,), clamped [0, 3]
        "attention_weights": small[:, 0, :],                  # (B, N)
        "instance_logits": jnp.swapaxes(small[:, 1:3, :], 1, 2),  # (B, N, 2)
        "patch_features": h_out,                              # (B, N, D) f32
        "attention_maps": amap,                               # (B, L, H, N, N) bf16
    }


# ---------------------------------------------------------------------------
# Deterministic parameter init (synthetic weights, not a checkpoint)
# ---------------------------------------------------------------------------
def init_params(key, feature_dim, hidden_dim, num_layers, num_heads):
    dff = hidden_dim * 2
    da = hidden_dim // 2
    keys = iter(jax.random.split(key, 64))

    def lin(shape, scale=0.05):
        return (scale * jax.random.normal(next(keys), shape)).astype(jnp.float32)

    def zeros(shape):
        return jnp.zeros(shape, jnp.float32)

    params = {
        "w_proj": lin((feature_dim, hidden_dim)), "b_proj": zeros((1, hidden_dim)),
        "w_pos": lin((2, hidden_dim)),            "b_pos": zeros((1, hidden_dim)),
        "v_attn": lin((hidden_dim, da)),          "b_attn": zeros((1, da)),
        "w_attn": lin((da, 1)),
        "w_inst": lin((hidden_dim, 2)),           "b_inst": zeros((1, 2)),
        "w_reg1": lin((hidden_dim, hidden_dim // 2)),
        "b_reg1": zeros((1, hidden_dim // 2)),
        "w_reg2": lin((hidden_dim // 2, 1)),      "b_reg2": zeros((1, 1)),
        "layers": [],
    }
    for _ in range(num_layers):
        params["layers"].append(dict(
            ln1_g=jnp.ones((1, hidden_dim), jnp.float32), ln1_b=zeros((1, hidden_dim)),
            wq=lin((hidden_dim, hidden_dim)), bq=zeros((1, hidden_dim)),
            wk=lin((hidden_dim, hidden_dim)), bk=zeros((1, hidden_dim)),
            wv=lin((hidden_dim, hidden_dim)), bv=zeros((1, hidden_dim)),
            wo=lin((hidden_dim, hidden_dim)), bo=zeros((1, hidden_dim)),
            ln2_g=jnp.ones((1, hidden_dim), jnp.float32), ln2_b=zeros((1, hidden_dim)),
            w1=lin((hidden_dim, dff)), b1=zeros((1, dff)),
            w2=lin((dff, hidden_dim)), b2=zeros((1, hidden_dim)),
        ))
    return params


if __name__ == "__main__":
    B, N, FEAT = 2, 8, 16
    HIDDEN, HEADS, LAYERS = 32, 4, 2

    key = jax.random.PRNGKey(0)
    kf, kc, kp = jax.random.split(key, 3)
    features = jax.random.normal(kf, (B, N, FEAT), jnp.float32)
    coordinates = jax.random.uniform(kc, (B, N, 2), jnp.float32)
    params = init_params(kp, FEAT, HIDDEN, LAYERS, HEADS)

    out = transmil_forward(params, features, coordinates, num_heads=HEADS)
    jax.block_until_ready(out)

    assert out["predictions"].shape == (B,)
    assert out["attention_weights"].shape == (B, N)
    assert out["instance_logits"].shape == (B, N, 2)
    assert out["patch_features"].shape == (B, N, HIDDEN)
    assert out["attention_maps"].shape == (B, LAYERS, HEADS, N, N)
    assert bool(jnp.all(out["predictions"] >= 0.0)) and bool(jnp.all(out["predictions"] <= 3.0))
    assert bool(jnp.all(jnp.isfinite(out["patch_features"])))
    assert bool(jnp.all(jnp.isfinite(out["attention_weights"])))

    print("KERNEL_OK")
</pallas_src>

<mosaic_0001>
module attributes {stable_mosaic.version = 11 : i64} {
  func.func @transmil_layer_kernel(%arg0: i32, %arg1: i32, %arg2: memref<1x8x16xbf16, #tpu.memory_space<vmem>>, %arg3: memref<1x8x2xf32, #tpu.memory_space<vmem>>, %arg4: memref<16x32xbf16, #tpu.memory_space<vmem>>, %arg5: memref<2x32xf32, #tpu.memory_space<vmem>>, %arg6: memref<1x32xf32, #tpu.memory_space<vmem>>, %arg7: memref<1x1x32xf32, #tpu.memory_space<vmem>>, %arg8: memref<1x1x32xf32, #tpu.memory_space<vmem>>, %arg9: memref<1x32x32xbf16, #tpu.memory_space<vmem>>, %arg10: memref<1x1x32xf32, #tpu.memory_space<vmem>>, %arg11: memref<1x32x32xbf16, #tpu.memory_space<vmem>>, %arg12: memref<1x1x32xf32, #tpu.memory_space<vmem>>, %arg13: memref<1x32x32xbf16, #tpu.memory_space<vmem>>, %arg14: memref<1x1x32xf32, #tpu.memory_space<vmem>>, %arg15: memref<1x32x32xbf16, #tpu.memory_space<vmem>>, %arg16: memref<1x1x32xf32, #tpu.memory_space<vmem>>, %arg17: memref<1x1x32xf32, #tpu.memory_space<vmem>>, %arg18: memref<1x1x32xf32, #tpu.memory_space<vmem>>, %arg19: memref<1x32x64xbf16, #tpu.memory_space<vmem>>, %arg20: memref<1x1x64xf32, #tpu.memory_space<vmem>>, %arg21: memref<1x64x32xbf16, #tpu.memory_space<vmem>>, %arg22: memref<1x1x32xf32, #tpu.memory_space<vmem>>, %arg23: memref<32x16xf32, #tpu.memory_space<vmem>>, %arg24: memref<1x16xf32, #tpu.memory_space<vmem>>, %arg25: memref<1x16xf32, #tpu.memory_space<vmem>>, %arg26: memref<2x32xf32, #tpu.memory_space<vmem>>, %arg27: memref<2x1xf32, #tpu.memory_space<vmem>>, %arg28: memref<32x16xf32, #tpu.memory_space<vmem>>, %arg29: memref<1x16xf32, #tpu.memory_space<vmem>>, %arg30: memref<16x1xf32, #tpu.memory_space<vmem>>, %arg31: memref<1x1xf32, #tpu.memory_space<vmem>>, %arg32: memref<1x8x32xf32, #tpu.memory_space<vmem>>, %arg33: memref<1x1x4x8x8xbf16, #tpu.memory_space<vmem>>, %arg34: memref<1x4x8xf32, #tpu.memory_space<vmem>>) attributes {dimension_semantics = [#tpu.dimension_semantics<parallel>, #tpu.dimension_semantics<arbitrary>], iteration_bounds = array<i64: 2, 2>, scalar_prefetch = 0 : i64, scratch_operands = 0 : i64, tpu.core_type = #tpu.core_type<tc>, window_params = [{transform_indices = @transform_0, window_bounds = array<i64: 1, 8, 16>}, {transform_indices = @transform_1, window_bounds = array<i64: 1, 8, 2>}, {pipeline_mode = #tpu.pipeline_mode<synchronous>, transform_indices = @transform_2, window_bounds = array<i64: 16, 32>}, {pipeline_mode = #tpu.pipeline_mode<synchronous>, transform_indices = @transform_3, window_bounds = array<i64: 2, 32>}, {pipeline_mode = #tpu.pipeline_mode<synchronous>, transform_indices = @transform_4, window_bounds = array<i64: 1, 32>}, {transform_indices = @transform_5, window_bounds = array<i64: 1, 1, 32>}, {transform_indices = @transform_6, window_bounds = array<i64: 1, 1, 32>}, {transform_indices = @transform_7, window_bounds = array<i64: 1, 32, 32>}, {transform_indices = @transform_8, window_bounds = array<i64: 1, 1, 32>}, {transform_indices = @transform_9, window_bounds = array<i64: 1, 32, 32>}, {transform_indices = @transform_10, window_bounds = array<i64: 1, 1, 32>}, {transform_indices = @transform_11, window_bounds = array<i64: 1, 32, 32>}, {transform_indices = @transform_12, window_bounds = array<i64: 1, 1, 32>}, {transform_indices = @transform_13, window_bounds = array<i64: 1, 32, 32>}, {transform_indices = @transform_14, window_bounds = array<i64: 1, 1, 32>}, {transform_indices = @transform_15, window_bounds = array<i64: 1, 1, 32>}, {transform_indices = @transform_16, window_bounds = array<i64: 1, 1, 32>}, {transform_indices = @transform_17, window_bounds = array<i64: 1, 32, 64>}, {transform_indices = @transform_18, window_bounds = array<i64: 1, 1, 64>}, {transform_indices = @transform_19, window_bounds = array<i64: 1, 64, 32>}, {transform_indices = @transform_20, window_bounds = array<i64: 1, 1, 32>}, {pipeline_mode = #tpu.pipeline_mode<synchronous>, transform_indices = @transform_21, window_bounds = array<i64: 32, 16>}, {pipeline_mode = #tpu.pipeline_mode<synchronous>, transform_indices = @transform_22, window_bounds = array<i64: 1, 16>}, {pipeline_mode = #tpu.pipeline_mode<synchronous>, transform_indices = @transform_23, window_bounds = array<i64: 1, 16>}, {pipeline_mode = #tpu.pipeline_mode<synchronous>, transform_indices = @transform_24, window_bounds = array<i64: 2, 32>}, {pipeline_mode = #tpu.pipeline_mode<synchronous>, transform_indices = @transform_25, window_bounds = array<i64: 2, 1>}, {pipeline_mode = #tpu.pipeline_mode<synchronous>, transform_indices = @transform_26, window_bounds = array<i64: 32, 16>}, {pipeline_mode = #tpu.pipeline_mode<synchronous>, transform_indices = @transform_27, window_bounds = array<i64: 1, 16>}, {pipeline_mode = #tpu.pipeline_mode<synchronous>, transform_indices = @transform_28, window_bounds = array<i64: 16, 1>}, {pipeline_mode = #tpu.pipeline_mode<synchronous>, transform_indices = @transform_29, window_bounds = array<i64: 1, 1>}, {transform_indices = @transform_30, window_bounds = array<i64: 1, 8, 32>}, {transform_indices = @transform_31, window_bounds = array<i64: 1, 1, 4, 8, 8>}, {transform_indices = @transform_32, window_bounds = array<i64: 1, 4, 8>}]} {
    %c0_i32 = arith.constant 0 : i32
    %0 = arith.cmpi eq, %arg1, %c0_i32 : i32
    %1 = arith.extui %0 : i1 to i32
    %c0_i32_0 = arith.constant 0 : i32
    %2 = arith.cmpi ne, %1, %c0_i32_0 : i32
    scf.if %2 {
      %c0_84 = arith.constant 0 : index
      %c0_85 = arith.constant 0 : index
      %c0_86 = arith.constant 0 : index
      %181 = vector.load %arg2[%c0_84, %c0_85, %c0_86] : memref<1x8x16xbf16, #tpu.memory_space<vmem>>, vector<1x8x16xbf16>
      %182 = vector.shape_cast %181 : vector<1x8x16xbf16> to vector<8x16xbf16>
      %c0_87 = arith.constant 0 : index
      %c0_88 = arith.constant 0 : index
      %183 = vector.load %arg4[%c0_87, %c0_88] : memref<16x32xbf16, #tpu.memory_space<vmem>>, vector<16x32xbf16>
      %cst_89 = arith.constant dense<0.000000e+00> : vector<8x32xf32>
      %184 = tpu.matmul %182, %183, %cst_89 {dimension_numbers = #tpu.dot_dimension_numbers<[1], [0], [0], [1], [0, 0, 1, 1], [], []>} : vector<8x16xbf16>, vector<16x32xbf16>, vector<8x32xf32> -> vector<8x32xf32>
      %c0_90 = arith.constant 0 : index
      %c0_91 = arith.constant 0 : index
      %c0_92 = arith.constant 0 : index
      %185 = vector.load %arg3[%c0_90, %c0_91, %c0_92] : memref<1x8x2xf32, #tpu.memory_space<vmem>>, vector<1x8x2xf32>
      %186 = vector.shape_cast %185 : vector<1x8x2xf32> to vector<8x2xf32>
      %c0_93 = arith.constant 0 : index
      %c0_94 = arith.constant 0 : index
      %187 = vector.load %arg5[%c0_93, %c0_94] : memref<2x32xf32, #tpu.memory_space<vmem>>, vector<2x32xf32>
      %cst_95 = arith.constant dense<0.000000e+00> : vector<8x32xf32>
      %188 = tpu.matmul %186, %187, %cst_95 {dimension_numbers = #tpu.dot_dimension_numbers<[1], [0], [0], [1], [0, 0, 1, 1], [], []>} : vector<8x2xf32>, vector<2x32xf32>, vector<8x32xf32> -> vector<8x32xf32>
      %189 = arith.addf %184, %188 : vector<8x32xf32>
      %c0_96 = arith.constant 0 : index
      %c0_97 = arith.constant 0 : index
      %190 = vector.load %arg6[%c0_96, %c0_97] : memref<1x32xf32, #tpu.memory_space<vmem>>, vector<1x32xf32>
      %191 = vector.broadcast %190 : vector<1x32xf32> to vector<8x32xf32>
      %192 = arith.addf %189, %191 : vector<8x32xf32>
      %c0_98 = arith.constant 0 : index
      %c0_99 = arith.constant 0 : index
      %c0_100 = arith.constant 0 : index
      %193 = vector.load %arg32[%c0_98, %c0_99, %c0_100] : memref<1x8x32xf32, #tpu.memory_space<vmem>>, vector<1x8x32xf32>
      %194 = vector.shape_cast %193 : vector<1x8x32xf32> to vector<8x32xf32>
      %195 = vector.shape_cast %192 : vector<8x32xf32> to vector<1x8x32xf32>
      tpu.vector_store %arg32[%c0_98, %c0_99, %c0_100], %195 {strides = array<i32>} : memref<1x8x32xf32, #tpu.memory_space<vmem>>, vector<1x8x32xf32>,
    } else {
    }
    %c0 = arith.constant 0 : index
    %c0_1 = arith.constant 0 : index
    %c0_2 = arith.constant 0 : index
    %3 = vector.load %arg32[%c0, %c0_1, %c0_2] : memref<1x8x32xf32, #tpu.memory_space<vmem>>, vector<1x8x32xf32>
    %4 = vector.shape_cast %3 : vector<1x8x32xf32> to vector<8x32xf32>
    %c0_3 = arith.constant 0 : index
    %c0_4 = arith.constant 0 : index
    %c0_5 = arith.constant 0 : index
    %5 = vector.load %arg7[%c0_3, %c0_4, %c0_5] : memref<1x1x32xf32, #tpu.memory_space<vmem>>, vector<1x1x32xf32>
    %6 = vector.shape_cast %5 : vector<1x1x32xf32> to vector<1x32xf32>
    %c0_6 = arith.constant 0 : index
    %c0_7 = arith.constant 0 : index
    %c0_8 = arith.constant 0 : index
    %7 = vector.load %arg8[%c0_6, %c0_7, %c0_8] : memref<1x1x32xf32, #tpu.memory_space<vmem>>, vector<1x1x32xf32>
    %8 = vector.shape_cast %7 : vector<1x1x32xf32> to vector<1x32xf32>
    %cst = arith.constant dense<0.000000e+00> : vector<8xf32>
    %9 = vector.multi_reduction <add>, %4, %cst [1] : vector<8x32xf32> to vector<8xf32>
    %10 = vector.shape_cast %9 : vector<8xf32> to vector<8x1xf32>
    %cst_9 = arith.constant 3.200000e+01 : f32
    %11 = vector.broadcast %cst_9 : f32 to vector<8x1xf32>
    %12 = arith.divf %10, %11 : vector<8x1xf32>
    %13 = vector.broadcast %12 : vector<8x1xf32> to vector<8x32xf32>
    %14 = arith.subf %4, %13 : vector<8x32xf32>
    %15 = arith.mulf %14, %14 : vector<8x32xf32>
    %cst_10 = arith.constant dense<0.000000e+00> : vector<8xf32>
    %16 = vector.multi_reduction <add>, %15, %cst_10 [1] : vector<8x32xf32> to vector<8xf32>
    %17 = vector.shape_cast %16 : vector<8xf32> to vector<8x1xf32>
    %cst_11 = arith.constant 3.200000e+01 : f32
    %18 = vector.broadcast %cst_11 : f32 to vector<8x1xf32>
    %19 = arith.divf %17, %18 : vector<8x1xf32>
    %20 = vector.broadcast %12 : vector<8x1xf32> to vector<8x32xf32>
    %21 = arith.subf %4, %20 : vector<8x32xf32>
    %cst_12 = arith.constant 9.99999974E-6 : f32
    %22 = vector.broadcast %cst_12 : f32 to vector<8x1xf32>
    %23 = arith.addf %19, %22 : vector<8x1xf32>
    %24 = math.rsqrt %23 : vector<8x1xf32>
    %25 = vector.broadcast %24 : vector<8x1xf32> to vector<8x32xf32>
    %26 = arith.mulf %21, %25 : vector<8x32xf32>
    %27 = vector.broadcast %6 : vector<1x32xf32> to vector<8x32xf32>
    %28 = arith.mulf %26, %27 : vector<8x32xf32>
    %29 = vector.broadcast %8 : vector<1x32xf32> to vector<8x32xf32>
    %30 = arith.addf %28, %29 : vector<8x32xf32>
    %31 = arith.truncf %30 : vector<8x32xf32> to vector<8x32xbf16>
    %c0_13 = arith.constant 0 : index
    %c0_14 = arith.constant 0 : index
    %c0_15 = arith.constant 0 : index
    %32 = vector.load %arg9[%c0_13, %c0_14, %c0_15] : memref<1x32x32xbf16, #tpu.memory_space<vmem>>, vector<1x32x32xbf16>
    %33 = vector.shape_cast %32 : vector<1x32x32xbf16> to vector<32x32xbf16>
    %cst_16 = arith.constant dense<0.000000e+00> : vector<8x32xf32>
    %34 = tpu.matmul %31, %33, %cst_16 {dimension_numbers = #tpu.dot_dimension_numbers<[1], [0], [0], [1], [0, 0, 1, 1], [], []>} : vector<8x32xbf16>, vector<32x32xbf16>, vector<8x32xf32> -> vector<8x32xf32>
    %c0_17 = arith.constant 0 : index
    %c0_18 = arith.constant 0 : index
    %c0_19 = arith.constant 0 : index
    %35 = vector.load %arg10[%c0_17, %c0_18, %c0_19] : memref<1x1x32xf32, #tpu.memory_space<vmem>>, vector<1x1x32xf32>
    %36 = vector.shape_cast %35 : vector<1x1x32xf32> to vector<1x32xf32>
    %37 = vector.broadcast %36 : vector<1x32xf32> to vector<8x32xf32>
    %38 = arith.addf %34, %37 : vector<8x32xf32>
    %c0_20 = arith.constant 0 : index
    %c0_21 = arith.constant 0 : index
    %c0_22 = arith.constant 0 : index
    %39 = vector.load %arg11[%c0_20, %c0_21, %c0_22] : memref<1x32x32xbf16, #tpu.memory_space<vmem>>, vector<1x32x32xbf16>
    %40 = vector.shape_cast %39 : vector<1x32x32xbf16> to vector<32x32xbf16>
    %cst_23 = arith.constant dense<0.000000e+00> : vector<8x32xf32>
    %41 = tpu.matmul %31, %40, %cst_23 {dimension_numbers = #tpu.dot_dimension_numbers<[1], [0], [0], [1], [0, 0, 1, 1], [], []>} : vector<8x32xbf16>, vector<32x32xbf16>, vector<8x32xf32> -> vector<8x32xf32>
    %c0_24 = arith.constant 0 : index
    %c0_25 = arith.constant 0 : index
    %c0_26 = arith.constant 0 : index
    %42 = vector.load %arg12[%c0_24, %c0_25, %c0_26] : memref<1x1x32xf32, #tpu.memory_space<vmem>>, vector<1x1x32xf32>
    %43 = vector.shape_cast %42 : vector<1x1x32xf32> to vector<1x32xf32>
    %44 = vector.broadcast %43 : vector<1x32xf32> to vector<8x32xf32>
    %45 = arith.addf %41, %44 : vector<8x32xf32>
    %c0_27 = arith.constant 0 : index
    %c0_28 = arith.constant 0 : index
    %c0_29 = arith.constant 0 : index
    %46 = vector.load %arg13[%c0_27, %c0_28, %c0_29] : memref<1x32x32xbf16, #tpu.memory_space<vmem>>, vector<1x32x32xbf16>
    %47 = vector.shape_cast %46 : vector<1x32x32xbf16> to vector<32x32xbf16>
    %cst_30 = arith.constant dense<0.000000e+00> : vector<8x32xf32>
    %48 = tpu.matmul %31, %47, %cst_30 {dimension_numbers = #tpu.dot_dimension_numbers<[1], [0], [0], [1], [0, 0, 1, 1], [], []>} : vector<8x32xbf16>, vector<32x32xbf16>, vector<8x32xf32> -> vector<8x32xf32>
    %c0_31 = arith.constant 0 : index
    %c0_32 = arith.constant 0 : index
    %c0_33 = arith.constant 0 : index
    %49 = vector.load %arg14[%c0_31, %c0_32, %c0_33] : memref<1x1x32xf32, #tpu.memory_space<vmem>>, vector<1x1x32xf32>
    %50 = vector.shape_cast %49 : vector<1x1x32xf32> to vector<1x32xf32>
    %51 = vector.broadcast %50 : vector<1x32xf32> to vector<8x32xf32>
    %52 = arith.addf %48, %51 : vector<8x32xf32>
    %53 = vector.extract_strided_slice %38 {offsets = [0, 0], sizes = [8, 8], strides = [1, 1]} : vector<8x32xf32> to vector<8x8xf32>
    %54 = vector.extract_strided_slice %38 {offsets = [0, 8], sizes = [8, 8], strides = [1, 1]} : vector<8x32xf32> to vector<8x8xf32>
    %55 = vector.extract_strided_slice %38 {offsets = [0, 16], sizes = [8, 8], strides = [1, 1]} : vector<8x32xf32> to vector<8x8xf32>
    %56 = vector.extract_strided_slice %38 {offsets = [0, 24], sizes = [8, 8], strides = [1, 1]} : vector<8x32xf32> to vector<8x8xf32>
    %57 = vector.shape_cast %53 : vector<8x8xf32> to vector<1x8x8xf32>
    %58 = vector.shape_cast %54 : vector<8x8xf32> to vector<1x8x8xf32>
    %59 = vector.shape_cast %55 : vector<8x8xf32> to vector<1x8x8xf32>
    %60 = vector.shape_cast %56 : vector<8x8xf32> to vector<1x8x8xf32>
    %61 = tpu.concatenate %57, %58, %59, %60 in 0 : vector<1x8x8xf32>, vector<1x8x8xf32>, vector<1x8x8xf32>, vector<1x8x8xf32> -> vector<4x8x8xf32>
    %62 = arith.truncf %61 : vector<4x8x8xf32> to vector<4x8x8xbf16>
    %63 = vector.extract_strided_slice %45 {offsets = [0, 0], sizes = [8, 8], strides = [1, 1]} : vector<8x32xf32> to vector<8x8xf32>
    %64 = vector.extract_strided_slice %45 {offsets = [0, 8], sizes = [8, 8], strides = [1, 1]} : vector<8x32xf32> to vector<8x8xf32>
    %65 = vector.extract_strided_slice %45 {offsets = [0, 16], sizes = [8, 8], strides = [1, 1]} : vector<8x32xf32> to vector<8x8xf32>
    %66 = vector.extract_strided_slice %45 {offsets = [0, 24], sizes = [8, 8], strides = [1, 1]} : vector<8x32xf32> to vector<8x8xf32>
    %67 = vector.shape_cast %63 : vector<8x8xf32> to vector<1x8x8xf32>
    %68 = vector.shape_cast %64 : vector<8x8xf32> to vector<1x8x8xf32>
    %69 = vector.shape_cast %65 : vector<8x8xf32> to vector<1x8x8xf32>
    %70 = vector.shape_cast %66 : vector<8x8xf32> to vector<1x8x8xf32>
    %71 = tpu.concatenate %67, %68, %69, %70 in 0 : vector<1x8x8xf32>, vector<1x8x8xf32>, vector<1x8x8xf32>, vector<1x8x8xf32> -> vector<4x8x8xf32>
    %72 = arith.truncf %71 : vector<4x8x8xf32> to vector<4x8x8xbf16>
    %73 = vector.extract_strided_slice %52 {offsets = [0, 0], sizes = [8, 8], strides = [1, 1]} : vector<8x32xf32> to vector<8x8xf32>
    %74 = vector.extract_strided_slice %52 {offsets = [0, 8], sizes = [8, 8], strides = [1, 1]} : vector<8x32xf32> to vector<8x8xf32>
    %75 = vector.extract_strided_slice %52 {offsets = [0, 16], sizes = [8, 8], strides = [1, 1]} : vector<8x32xf32> to vector<8x8xf32>
    %76 = vector.extract_strided_slice %52 {offsets = [0, 24], sizes = [8, 8], strides = [1, 1]} : vector<8x32xf32> to vector<8x8xf32>
    %77 = vector.shape_cast %73 : vector<8x8xf32> to vector<1x8x8xf32>
    %78 = vector.shape_cast %74 : vector<8x8xf32> to vector<1x8x8xf32>
    %79 = vector.shape_cast %75 : vector<8x8xf32> to vector<1x8x8xf32>
    %80 = vector.shape_cast %76 : vector<8x8xf32> to vector<1x8x8xf32>
    %81 = tpu.concatenate %77, %78, %79, %80 in 0 : vector<1x8x8xf32>, vector<1x8x8xf32>, vector<1x8x8xf32>, vector<1x8x8xf32> -> vector<4x8x8xf32>
    %82 = arith.truncf %81 : vector<4x8x8xf32> to vector<4x8x8xbf16>
    "tpu.trace_start"() <{level = 10 : i32, message = "hnd,hmd->hnm"}> : () -> ()
    %cst_34 = arith.constant dense<0.000000e+00> : vector<4x8x8xf32>
    %83 = tpu.matmul %62, %72, %cst_34 {dimension_numbers = #tpu.dot_dimension_numbers<[2], [2], [1], [1], [0, 0, 0, 1, 1, 1], [0], [0]>} : vector<4x8x8xbf16>, vector<4x8x8xbf16>, vector<4x8x8xf32> -> vector<4x8x8xf32>
    "tpu.trace_stop"() : () -> ()
    %cst_35 = arith.constant 0.353553385 : f32
    %84 = vector.broadcast %cst_35 : f32 to vector<4x8x8xf32>
    %85 = arith.mulf %83, %84 : vector<4x8x8xf32>
    %cst_36 = arith.constant dense<0xFF800000> : vector<4x8xf32>
    %86 = vector.multi_reduction <maximumf>, %85, %cst_36 [2] : vector<4x8x8xf32> to vector<4x8xf32>
    %87 = vector.shape_cast %86 : vector<4x8xf32> to vector<4x8x1xf32>
    %88 = vector.broadcast %87 : vector<4x8x1xf32> to vector<4x8x8xf32>
    %89 = arith.subf %85, %88 : vector<4x8x8xf32>
    %90 = math.exp %89 : vector<4x8x8xf32>
    %cst_37 = arith.constant dense<0.000000e+00> : vector<4x8xf32>
    %91 = vector.multi_reduction <add>, %90, %cst_37 [2] : vector<4x8x8xf32> to vector<4x8xf32>
    %92 = vector.shape_cast %91 : vector<4x8xf32> to vector<4x8x1xf32>
    %93 = tpu.reciprocal %92 {approx = true} : vector<4x8x1xf32> -> vector<4x8x1xf32>
    %94 = vector.broadcast %93 : vector<4x8x1xf32> to vector<4x8x8xf32>
    %95 = arith.mulf %90, %94 : vector<4x8x8xf32>
    %96 = arith.truncf %95 : vector<4x8x8xf32> to vector<4x8x8xbf16>
    %c0_38 = arith.constant 0 : index
    %c0_39 = arith.constant 0 : index
    %c0_40 = arith.constant 0 : index
    %c0_41 = arith.constant 0 : index
    %c0_42 = arith.constant 0 : index
    %97 = vector.load %arg33[%c0_38, %c0_39, %c0_40, %c0_41, %c0_42] : memref<1x1x4x8x8xbf16, #tpu.memory_space<vmem>>, vector<1x1x4x8x8xbf16>
    %98 = vector.shape_cast %97 : vector<1x1x4x8x8xbf16> to vector<4x8x8xbf16>
    %99 = vector.shape_cast %96 : vector<4x8x8xbf16> to vector<1x1x4x8x8xbf16>
    tpu.vector_store %arg33[%c0_38, %c0_39, %c0_40, %c0_41, %c0_42], %99 {strides = array<i32>} : memref<1x1x4x8x8xbf16, #tpu.memory_space<vmem>>, vector<1x1x4x8x8xbf16>,
    "tpu.trace_start"() <{level = 10 : i32, message = "hnm,hmd->hnd"}> : () -> ()
    %cst_43 = arith.constant dense<0.000000e+00> : vector<4x8x8xf32>
    %100 = tpu.matmul %96, %82, %cst_43 {dimension_numbers = #tpu.dot_dimension_numbers<[2], [1], [1], [2], [0, 0, 0, 1, 1, 2], [0], [0]>} : vector<4x8x8xbf16>, vector<4x8x8xbf16>, vector<4x8x8xf32> -> vector<4x8x8xf32>
    "tpu.trace_stop"() : () -> ()
    %101 = vector.extract_strided_slice %100 {offsets = [0, 0, 0], sizes = [1, 8, 8], strides = [1, 1, 1]} : vector<4x8x8xf32> to vector<1x8x8xf32>
    %102 = vector.shape_cast %101 : vector<1x8x8xf32> to vector<8x8xf32>
    %103 = vector.extract_strided_slice %100 {offsets = [1, 0, 0], sizes = [1, 8, 8], strides = [1, 1, 1]} : vector<4x8x8xf32> to vector<1x8x8xf32>
    %104 = vector.shape_cast %103 : vector<1x8x8xf32> to vector<8x8xf32>
    %105 = vector.extract_strided_slice %100 {offsets = [2, 0, 0], sizes = [1, 8, 8], strides = [1, 1, 1]} : vector<4x8x8xf32> to vector<1x8x8xf32>
    %106 = vector.shape_cast %105 : vector<1x8x8xf32> to vector<8x8xf32>
    %107 = vector.extract_strided_slice %100 {offsets = [3, 0, 0], sizes = [1, 8, 8], strides = [1, 1, 1]} : vector<4x8x8xf32> to vector<1x8x8xf32>
    %108 = vector.shape_cast %107 : vector<1x8x8xf32> to vector<8x8xf32>
    %109 = tpu.concatenate %102, %104, %106, %108 in 1 : vector<8x8xf32>, vector<8x8xf32>, vector<8x8xf32>, vector<8x8xf32> -> vector<8x32xf32>
    %110 = arith.truncf %109 : vector<8x32xf32> to vector<8x32xbf16>
    %c0_44 = arith.constant 0 : index
    %c0_45 = arith.constant 0 : index
    %c0_46 = arith.constant 0 : index
    %111 = vector.load %arg15[%c0_44, %c0_45, %c0_46] : memref<1x32x32xbf16, #tpu.memory_space<vmem>>, vector<1x32x32xbf16>
    %112 = vector.shape_cast %111 : vector<1x32x32xbf16> to vector<32x32xbf16>
    %cst_47 = arith.constant dense<0.000000e+00> : vector<8x32xf32>
    %113 = tpu.matmul %110, %112, %cst_47 {dimension_numbers = #tpu.dot_dimension_numbers<[1], [0], [0], [1], [0, 0, 1, 1], [], []>} : vector<8x32xbf16>, vector<32x32xbf16>, vector<8x32xf32> -> vector<8x32xf32>
    %c0_48 = arith.constant 0 : index
    %c0_49 = arith.constant 0 : index
    %c0_50 = arith.constant 0 : index
    %114 = vector.load %arg16[%c0_48, %c0_49, %c0_50] : memref<1x1x32xf32, #tpu.memory_space<vmem>>, vector<1x1x32xf32>
    %115 = vector.shape_cast %114 : vector<1x1x32xf32> to vector<1x32xf32>
    %116 = vector.broadcast %115 : vector<1x32xf32> to vector<8x32xf32>
    %117 = arith.addf %113, %116 : vector<8x32xf32>
    %118 = arith.addf %4, %117 : vector<8x32xf32>
    %c0_51 = arith.constant 0 : index
    %c0_52 = arith.constant 0 : index
    %c0_53 = arith.constant 0 : index
    %119 = vector.load %arg17[%c0_51, %c0_52, %c0_53] : memref<1x1x32xf32, #tpu.memory_space<vmem>>, vector<1x1x32xf32>
    %120 = vector.shape_cast %119 : vector<1x1x32xf32> to vector<1x32xf32>
    %c0_54 = arith.constant 0 : index
    %c0_55 = arith.constant 0 : index
    %c0_56 = arith.constant 0 : index
    %121 = vector.load %arg18[%c0_54, %c0_55, %c0_56] : memref<1x1x32xf32, #tpu.memory_space<vmem>>, vector<1x1x32xf32>
    %122 = vector.shape_cast %121 : vector<1x1x32xf32> to vector<1x32xf32>
    %cst_57 = arith.constant dense<0.000000e+00> : vector<8xf32>
    %123 = vector.multi_reduction <add>, %118, %cst_57 [1] : vector<8x32xf32> to vector<8xf32>
    %124 = vector.shape_cast %123 : vector<8xf32> to vector<8x1xf32>
    %cst_58 = arith.constant 3.200000e+01 : f32
    %125 = vector.broadcast %cst_58 : f32 to vector<8x1xf32>
    %126 = arith.divf %124, %125 : vector<8x1xf32>
    %127 = vector.broadcast %126 : vector<8x1xf32> to vector<8x32xf32>
    %128 = arith.subf %118, %127 : vector<8x32xf32>
    %129 = arith.mulf %128, %128 : vector<8x32xf32>
    %cst_59 = arith.constant dense<0.000000e+00> : vector<8xf32>
    %130 = vector.multi_reduction <add>, %129, %cst_59 [1] : vector<8x32xf32> to vector<8xf32>
    %131 = vector.shape_cast %130 : vector<8xf32> to vector<8x1xf32>
    %cst_60 = arith.constant 3.200000e+01 : f32
    %132 = vector.broadcast %cst_60 : f32 to vector<8x1xf32>
    %133 = arith.divf %131, %132 : vector<8x1xf32>
    %134 = vector.broadcast %126 : vector<8x1xf32> to vector<8x32xf32>
    %135 = arith.subf %118, %134 : vector<8x32xf32>
    %cst_61 = arith.constant 9.99999974E-6 : f32
    %136 = vector.broadcast %cst_61 : f32 to vector<8x1xf32>
    %137 = arith.addf %133, %136 : vector<8x1xf32>
    %138 = math.rsqrt %137 : vector<8x1xf32>
    %139 = vector.broadcast %138 : vector<8x1xf32> to vector<8x32xf32>
    %140 = arith.mulf %135, %139 : vector<8x32xf32>
    %141 = vector.broadcast %120 : vector<1x32xf32> to vector<8x32xf32>
    %142 = arith.mulf %140, %141 : vector<8x32xf32>
    %143 = vector.broadcast %122 : vector<1x32xf32> to vector<8x32xf32>
    %144 = arith.addf %142, %143 : vector<8x32xf32>
    %145 = arith.truncf %144 : vector<8x32xf32> to vector<8x32xbf16>
    %c0_62 = arith.constant 0 : index
    %c0_63 = arith.constant 0 : index
    %c0_64 = arith.constant 0 : index
    %146 = vector.load %arg19[%c0_62, %c0_63, %c0_64] : memref<1x32x64xbf16, #tpu.memory_space<vmem>>, vector<1x32x64xbf16>
    %147 = vector.shape_cast %146 : vector<1x32x64xbf16> to vector<32x64xbf16>
    %cst_65 = arith.constant dense<0.000000e+00> : vector<8x64xf32>
    %148 = tpu.matmul %145, %147, %cst_65 {dimension_numbers = #tpu.dot_dimension_numbers<[1], [0], [0], [1], [0, 0, 1, 1], [], []>} : vector<8x32xbf16>, vector<32x64xbf16>, vector<8x64xf32> -> vector<8x64xf32>
    %c0_66 = arith.constant 0 : index
    %c0_67 = arith.constant 0 : index
    %c0_68 = arith.constant 0 : index
    %149 = vector.load %arg20[%c0_66, %c0_67, %c0_68] : memref<1x1x64xf32, #tpu.memory_space<vmem>>, vector<1x1x64xf32>
    %150 = vector.shape_cast %149 : vector<1x1x64xf32> to vector<1x64xf32>
    %151 = vector.broadcast %150 : vector<1x64xf32> to vector<8x64xf32>
    %152 = arith.addf %148, %151 : vector<8x64xf32>
    %cst_69 = arith.constant 5.000000e-01 : f32
    %153 = vector.broadcast %cst_69 : f32 to vector<8x64xf32>
    %154 = arith.mulf %153, %152 : vector<8x64xf32>
    %cst_70 = arith.constant 4.471500e-02 : f32
    %155 = vector.broadcast %cst_70 : f32 to vector<8x64xf32>
    %156 = arith.mulf %155, %152 : vector<8x64xf32>
    %157 = arith.mulf %156, %152 : vector<8x64xf32>
    %158 = arith.mulf %157, %152 : vector<8x64xf32>
    %159 = arith.addf %152, %158 : vector<8x64xf32>
    %cst_71 = arith.constant 0.797884583 : f32
    %160 = vector.broadcast %cst_71 : f32 to vector<8x64xf32>
    %161 = arith.mulf %160, %159 : vector<8x64xf32>
    %162 = math.tanh %161 : vector<8x64xf32>
    %cst_72 = arith.constant 1.000000e+00 : f32
    %163 = vector.broadcast %cst_72 : f32 to vector<8x64xf32>
    %164 = arith.addf %163, %162 : vector<8x64xf32>
    %165 = arith.mulf %154, %164 : vector<8x64xf32>
    %166 = arith.truncf %165 : vector<8x64xf32> to vector<8x64xbf16>
    %c0_73 = arith.constant 0 : index
    %c0_74 = arith.constant 0 : index
    %c0_75 = arith.constant 0 : index
    %167 = vector.load %arg21[%c0_73, %c0_74, %c0_75] : memref<1x64x32xbf16, #tpu.memory_space<vmem>>, vector<1x64x32xbf16>
    %168 = vector.shape_cast %167 : vector<1x64x32xbf16> to vector<64x32xbf16>
    %cst_76 = arith.constant dense<0.000000e+00> : vector<8x32xf32>
    %169 = tpu.matmul %166, %168, %cst_76 {dimension_numbers = #tpu.dot_dimension_numbers<[1], [0], [0], [1], [0, 0, 1, 1], [], []>} : vector<8x64xbf16>, vector<64x32xbf16>, vector<8x32xf32> -> vector<8x32xf32>
    %c0_77 = arith.constant 0 : index
    %c0_78 = arith.constant 0 : index
    %c0_79 = arith.constant 0 : index
    %170 = vector.load %arg22[%c0_77, %c0_78, %c0_79] : memref<1x1x32xf32, #tpu.memory_space<vmem>>, vector<1x1x32xf32>
    %171 = vector.shape_cast %170 : vector<1x1x32xf32> to vector<1x32xf32>
    %172 = vector.broadcast %171 : vector<1x32xf32> to vector<8x32xf32>
    %173 = arith.addf %169, %172 : vector<8x32xf32>
    %174 = arith.addf %118, %173 : vector<8x32xf32>
    %c0_80 = arith.constant 0 : index
    %c0_81 = arith.constant 0 : index
    %c0_82 = arith.constant 0 : index
    %175 = vector.load %arg32[%c0_80, %c0_81, %c0_82] : memref<1x8x32xf32, #tpu.memory_space<vmem>>, vector<1x8x32xf32>
    %176 = vector.shape_cast %175 : vector<1x8x32xf32> to vector<8x32xf32>
    %177 = vector.shape_cast %174 : vector<8x32xf32> to vector<1x8x32xf32>
    tpu.vector_store %arg32[%c0_80, %c0_81, %c0_82], %177 {strides = array<i32>} : memref<1x8x32xf32, #tpu.memory_space<vmem>>, vector<1x8x32xf32>,
    %c1_i32 = arith.constant 1 : i32
    %178 = arith.cmpi eq, %arg1, %c1_i32 : i32
    %179 = arith.extui %178 : i1 to i32
    %c0_i32_83 = arith.constant 0 : i32
    %180 = arith.cmpi ne, %179, %c0_i32_83 : i32
    scf.if %180 {
      %c0_84 = arith.constant 0 : index
      %c0_85 = arith.constant 0 : index
      %181 = vector.load %arg23[%c0_84, %c0_85] : memref<32x16xf32, #tpu.memory_space<vmem>>, vector<32x16xf32>
      %cst_86 = arith.constant dense<0.000000e+00> : vector<8x16xf32>
      %182 = tpu.matmul %174, %181, %cst_86 {dimension_numbers = #tpu.dot_dimension_numbers<[1], [0], [0], [1], [0, 0, 1, 1], [], []>} : vector<8x32xf32>, vector<32x16xf32>, vector<8x16xf32> -> vector<8x16xf32>
      %c0_87 = arith.constant 0 : index
      %c0_88 = arith.constant 0 : index
      %183 = vector.load %arg24[%c0_87, %c0_88] : memref<1x16xf32, #tpu.memory_space<vmem>>, vector<1x16xf32>
      %184 = vector.broadcast %183 : vector<1x16xf32> to vector<8x16xf32>
      %185 = arith.addf %182, %184 : vector<8x16xf32>
      %186 = math.tanh %185 : vector<8x16xf32>
      %c0_89 = arith.constant 0 : index
      %c0_90 = arith.constant 0 : index
      %187 = vector.load %arg25[%c0_89, %c0_90] : memref<1x16xf32, #tpu.memory_space<vmem>>, vector<1x16xf32>
      %cst_91 = arith.constant dense<0.000000e+00> : vector<1x8xf32>
      %188 = tpu.matmul %187, %186, %cst_91 {dimension_numbers = #tpu.dot_dimension_numbers<[1], [1], [0], [0], [0, 0, 1, 0], [], []>} : vector<1x16xf32>, vector<8x16xf32>, vector<1x8xf32> -> vector<1x8xf32>
      %cst_92 = arith.constant dense<0xFF800000> : vector<1xf32>
      %189 = vector.multi_reduction <maximumf>, %188, %cst_92 [1] : vector<1x8xf32> to vector<1xf32>
      %190 = vector.shape_cast %189 : vector<1xf32> to vector<1x1xf32>
      %191 = vector.broadcast %190 : vector<1x1xf32> to vector<1x8xf32>
      %192 = arith.subf %188, %191 : vector<1x8xf32>
      %193 = math.exp %192 : vector<1x8xf32>
      %cst_93 = arith.constant dense<0.000000e+00> : vector<1xf32>
      %194 = vector.multi_reduction <add>, %193, %cst_93 [1] : vector<1x8xf32> to vector<1xf32>
      %195 = vector.shape_cast %194 : vector<1xf32> to vector<1x1xf32>
      %196 = vector.broadcast %195 : vector<1x1xf32> to vector<1x8xf32>
      %197 = arith.divf %193, %196 : vector<1x8xf32>
      %cst_94 = arith.constant dense<0.000000e+00> : vector<1x32xf32>
      %198 = tpu.matmul %197, %174, %cst_94 {dimension_numbers = #tpu.dot_dimension_numbers<[1], [0], [0], [1], [0, 0, 1, 1], [], []>} : vector<1x8xf32>, vector<8x32xf32>, vector<1x32xf32> -> vector<1x32xf32>
      %c0_95 = arith.constant 0 : index
      %c0_96 = arith.constant 0 : index
      %199 = vector.load %arg26[%c0_95, %c0_96] : memref<2x32xf32, #tpu.memory_space<vmem>>, vector<2x32xf32>
      %cst_97 = arith.constant dense<0.000000e+00> : vector<2x8xf32>
      %200 = tpu.matmul %199, %174, %cst_97 {dimension_numbers = #tpu.dot_dimension_numbers<[1], [1], [0], [0], [0, 0, 1, 0], [], []>} : vector<2x32xf32>, vector<8x32xf32>, vector<2x8xf32> -> vector<2x8xf32>
      %c0_98 = arith.constant 0 : index
      %c0_99 = arith.constant 0 : index
      %201 = vector.load %arg27[%c0_98, %c0_99] : memref<2x1xf32, #tpu.memory_space<vmem>>, vector<2x1xf32>
      %202 = vector.broadcast %201 : vector<2x1xf32> to vector<2x8xf32>
      %203 = arith.addf %200, %202 : vector<2x8xf32>
      %c0_100 = arith.constant 0 : index
      %c0_101 = arith.constant 0 : index
      %204 = vector.load %arg28[%c0_100, %c0_101] : memref<32x16xf32, #tpu.memory_space<vmem>>, vector<32x16xf32>
      %cst_102 = arith.constant dense<0.000000e+00> : vector<1x16xf32>
      %205 = tpu.matmul %198, %204, %cst_102 {dimension_numbers = #tpu.dot_dimension_numbers<[1], [0], [0], [1], [0, 0, 1, 1], [], []>} : vector<1x32xf32>, vector<32x16xf32>, vector<1x16xf32> -> vector<1x16xf32>
      %c0_103 = arith.constant 0 : index
      %c0_104 = arith.constant 0 : index
      %206 = vector.load %arg29[%c0_103, %c0_104] : memref<1x16xf32, #tpu.memory_space<vmem>>, vector<1x16xf32>
      %207 = arith.addf %205, %206 : vector<1x16xf32>
      %cst_105 = arith.constant 5.000000e-01 : f32
      %208 = vector.broadcast %cst_105 : f32 to vector<1x16xf32>
      %209 = arith.mulf %208, %207 : vector<1x16xf32>
      %cst_106 = arith.constant 4.471500e-02 : f32
      %210 = vector.broadcast %cst_106 : f32 to vector<1x16xf32>
      %211 = arith.mulf %210, %207 : vector<1x16xf32>
      %212 = arith.mulf %211, %207 : vector<1x16xf32>
      %213 = arith.mulf %212, %207 : vector<1x16xf32>
      %214 = arith.addf %207, %213 : vector<1x16xf32>
      %cst_107 = arith.constant 0.797884583 : f32
      %215 = vector.broadcast %cst_107 : f32 to vector<1x16xf32>
      %216 = arith.mulf %215, %214 : vector<1x16xf32>
      %217 = math.tanh %216 : vector<1x16xf32>
      %cst_108 = arith.constant 1.000000e+00 : f32
      %218 = vector.broadcast %cst_108 : f32 to vector<1x16xf32>
      %219 = arith.addf %218, %217 : vector<1x16xf32>
      %220 = arith.mulf %209, %219 : vector<1x16xf32>
      %c0_109 = arith.constant 0 : index
      %c0_110 = arith.constant 0 : index
      %221 = vector.load %arg30[%c0_109, %c0_110] : memref<16x1xf32, #tpu.memory_space<vmem>>, vector<16x1xf32>
      %cst_111 = arith.constant dense<0.000000e+00> : vector<1x1xf32>
      %222 = tpu.matmul %220, %221, %cst_111 {dimension_numbers = #tpu.dot_dimension_numbers<[1], [0], [0], [1], [0, 0, 1, 1], [], []>} : vector<1x16xf32>, vector<16x1xf32>, vector<1x1xf32> -> vector<1x1xf32>
      %c0_112 = arith.constant 0 : index
      %c0_113 = arith.constant 0 : index
      %223 = vector.load %arg31[%c0_112, %c0_113] : memref<1x1xf32, #tpu.memory_space<vmem>>, vector<1x1xf32>
      %224 = arith.addf %222, %223 : vector<1x1xf32>
      %cst_114 = arith.constant 0.000000e+00 : f32
      %cst_115 = arith.constant 3.000000e+00 : f32
      %225 = vector.broadcast %cst_114 : f32 to vector<1x1xf32>
      %226 = arith.maximumf %225, %224 : vector<1x1xf32>
      %227 = vector.broadcast %cst_115 : f32 to vector<1x1xf32>
      %228 = arith.minimumf %227, %226 : vector<1x1xf32>
      %c0_116 = arith.constant 0 : index
      %c0_117 = arith.constant 0 : index
      %c0_118 = arith.constant 0 : index
      %229 = vector.load %arg34[%c0_116, %c0_117, %c0_118] : memref<1x4x8xf32, #tpu.memory_space<vmem>>, vector<1x1x8xf32>
      %230 = vector.shape_cast %229 : vector<1x1x8xf32> to vector<1x8xf32>
      %231 = vector.shape_cast %197 : vector<1x8xf32> to vector<1x1x8xf32>
      tpu.vector_store %arg34[%c0_116, %c0_117, %c0_118], %231 {strides = array<i32>} : memref<1x4x8xf32, #tpu.memory_space<vmem>>, vector<1x1x8xf32>,
      %c0_119 = arith.constant 0 : index
      %c1 = arith.constant 1 : index
      %c0_120 = arith.constant 0 : index
      %232 = vector.load %arg34[%c0_119, %c1, %c0_120] : memref<1x4x8xf32, #tpu.memory_space<vmem>>, vector<1x2x8xf32>
      %233 = vector.shape_cast %232 : vector<1x2x8xf32> to vector<2x8xf32>
      %234 = vector.shape_cast %203 : vector<2x8xf32> to vector<1x2x8xf32>
      tpu.vector_store %arg34[%c0_119, %c1, %c0_120], %234 {strides = array<i32>} : memref<1x4x8xf32, #tpu.memory_space<vmem>>, vector<1x2x8xf32>,
      %235 = vector.shape_cast %228 : vector<1x1xf32> to vector<1x1xf32>
      %236 = vector.broadcast %235 : vector<1x1xf32> to vector<1x8xf32>
      %c0_121 = arith.constant 0 : index
      %c3 = arith.constant 3 : index
      %c0_122 = arith.constant 0 : index
      %237 = vector.load %arg34[%c0_121, %c3, %c0_122] : memref<1x4x8xf32, #tpu.memory_space<vmem>>, vector<1x1x8xf32>
      %238 = vector.shape_cast %237 : vector<1x1x8xf32> to vector<1x8xf32>
      %239 = vector.shape_cast %236 : vector<1x8xf32> to vector<1x1x8xf32>
      tpu.vector_store %arg34[%c0_121, %c3, %c0_122], %239 {strides = array<i32>} : memref<1x4x8xf32, #tpu.memory_space<vmem>>, vector<1x1x8xf32>,
    } else {
    }
    return
  }
  func.func @transform_0(%arg0: i32, %arg1: i32) -> (i32, i32, i32) {
    %c0_i32 = arith.constant 0 : i32
    %c0_i32_0 = arith.constant 0 : i32
    %c0_i32_1 = arith.constant 0 : i32
    return %arg0, %c0_i32, %c0_i32_0 : i32, i32, i32
  }
  func.func @transform_1(%arg0: i32, %arg1: i32) -> (i32, i32, i32) {
    %c0_i32 = arith.constant 0 : i32
    %c0_i32_0 = arith.constant 0 : i32
    %c0_i32_1 = arith.constant 0 : i32
    return %arg0, %c0_i32, %c0_i32_0 : i32, i32, i32
  }
  func.func @transform_2(%arg0: i32, %arg1: i32) -> (i32, i32) {
    %c0_i32 = arith.constant 0 : i32
    %c0_i32_0 = arith.constant 0 : i32
    %c0_i32_1 = arith.constant 0 : i32
    return %c0_i32, %c0_i32_0 : i32, i32
  }
  func.func @transform_3(%arg0: i32, %arg1: i32) -> (i32, i32) {
    %c0_i32 = arith.constant 0 : i32
    %c0_i32_0 = arith.constant 0 : i32
    %c0_i32_1 = arith.constant 0 : i32
    return %c0_i32, %c0_i32_0 : i32, i32
  }
  func.func @transform_4(%arg0: i32, %arg1: i32) -> (i32, i32) {
    %c0_i32 = arith.constant 0 : i32
    %c0_i32_0 = arith.constant 0 : i32
    %c0_i32_1 = arith.constant 0 : i32
    return %c0_i32, %c0_i32_0 : i32, i32
  }
  func.func @transform_5(%arg0: i32, %arg1: i32) -> (i32, i32, i32) {
    %c0_i32 = arith.constant 0 : i32
    %c0_i32_0 = arith.constant 0 : i32
    %c0_i32_1 = arith.constant 0 : i32
    return %arg1, %c0_i32, %c0_i32_0 : i32, i32, i32
  }
  func.func @transform_6(%arg0: i32, %arg1: i32) -> (i32, i32, i32) {
    %c0_i32 = arith.constant 0 : i32
    %c0_i32_0 = arith.constant 0 : i32
    %c0_i32_1 = arith.constant 0 : i32
    return %arg1, %c0_i32, %c0_i32_0 : i32, i32, i32
  }
  func.func @transform_7(%arg0: i32, %arg1: i32) -> (i32, i32, i32) {
    %c0_i32 = arith.constant 0 : i32
    %c0_i32_0 = arith.constant 0 : i32
    %c0_i32_1 = arith.constant 0 : i32
    return %arg1, %c0_i32, %c0_i32_0 : i32, i32, i32
  }
  func.func @transform_8(%arg0: i32, %arg1: i32) -> (i32, i32, i32) {
    %c0_i32 = arith.constant 0 : i32
    %c0_i32_0 = arith.constant 0 : i32
    %c0_i32_1 = arith.constant 0 : i32
    return %arg1, %c0_i32, %c0_i32_0 : i32, i32, i32
  }
  func.func @transform_9(%arg0: i32, %arg1: i32) -> (i32, i32, i32) {
    %c0_i32 = arith.constant 0 : i32
    %c0_i32_0 = arith.constant 0 : i32
    %c0_i32_1 = arith.constant 0 : i32
    return %arg1, %c0_i32, %c0_i32_0 : i32, i32, i32
  }
  func.func @transform_10(%arg0: i32, %arg1: i32) -> (i32, i32, i32) {
    %c0_i32 = arith.constant 0 : i32
    %c0_i32_0 = arith.constant 0 : i32
    %c0_i32_1 = arith.constant 0 : i32
    return %arg1, %c0_i32, %c0_i32_0 : i32, i32, i32
  }
  func.func @transform_11(%arg0: i32, %arg1: i32) -> (i32, i32, i32) {
    %c0_i32 = arith.constant 0 : i32
    %c0_i32_0 = arith.constant 0 : i32
    %c0_i32_1 = arith.constant 0 : i32
    return %arg1, %c0_i32, %c0_i32_0 : i32, i32, i32
  }
  func.func @transform_12(%arg0: i32, %arg1: i32) -> (i32, i32, i32) {
    %c0_i32 = arith.constant 0 : i32
    %c0_i32_0 = arith.constant 0 : i32
    %c0_i32_1 = arith.constant 0 : i32
    return %arg1, %c0_i32, %c0_i32_0 : i32, i32, i32
  }
  func.func @transform_13(%arg0: i32, %arg1: i32) -> (i32, i32, i32) {
    %c0_i32 = arith.constant 0 : i32
    %c0_i32_0 = arith.constant 0 : i32
    %c0_i32_1 = arith.constant 0 : i32
    return %arg1, %c0_i32, %c0_i32_0 : i32, i32, i32
  }
  func.func @transform_14(%arg0: i32, %arg1: i32) -> (i32, i32, i32) {
    %c0_i32 = arith.constant 0 : i32
    %c0_i32_0 = arith.constant 0 : i32
    %c0_i32_1 = arith.constant 0 : i32
    return %arg1, %c0_i32, %c0_i32_0 : i32, i32, i32
  }
  func.func @transform_15(%arg0: i32, %arg1: i32) -> (i32, i32, i32) {
    %c0_i32 = arith.constant 0 : i32
    %c0_i32_0 = arith.constant 0 : i32
    %c0_i32_1 = arith.constant 0 : i32
    return %arg1, %c0_i32, %c0_i32_0 : i32, i32, i32
  }
  func.func @transform_16(%arg0: i32, %arg1: i32) -> (i32, i32, i32) {
    %c0_i32 = arith.constant 0 : i32
    %c0_i32_0 = arith.constant 0 : i32
    %c0_i32_1 = arith.constant 0 : i32
    return %arg1, %c0_i32, %c0_i32_0 : i32, i32, i32
  }
  func.func @transform_17(%arg0: i32, %arg1: i32) -> (i32, i32, i32) {
    %c0_i32 = arith.constant 0 : i32
    %c0_i32_0 = arith.constant 0 : i32
    %c0_i32_1 = arith.constant 0 : i32
    return %arg1, %c0_i32, %c0_i32_0 : i32, i32, i32
  }
  func.func @transform_18(%arg0: i32, %arg1: i32) -> (i32, i32, i32) {
    %c0_i32 = arith.constant 0 : i32
    %c0_i32_0 = arith.constant 0 : i32
    %c0_i32_1 = arith.constant 0 : i32
    return %arg1, %c0_i32, %c0_i32_0 : i32, i32, i32
  }
  func.func @transform_19(%arg0: i32, %arg1: i32) -> (i32, i32, i32) {
    %c0_i32 = arith.constant 0 : i32
    %c0_i32_0 = arith.constant 0 : i32
    %c0_i32_1 = arith.constant 0 : i32
    return %arg1, %c0_i32, %c0_i32_0 : i32, i32, i32
  }
  func.func @transform_20(%arg0: i32, %arg1: i32) -> (i32, i32, i32) {
    %c0_i32 = arith.constant 0 : i32
    %c0_i32_0 = arith.constant 0 : i32
    %c0_i32_1 = arith.constant 0 : i32
    return %arg1, %c0_i32, %c0_i32_0 : i32, i32, i32
  }
  func.func @transform_21(%arg0: i32, %arg1: i32) -> (i32, i32) {
    %c0_i32 = arith.constant 0 : i32
    %c0_i32_0 = arith.constant 0 : i32
    %c0_i32_1 = arith.constant 0 : i32
    return %c0_i32, %c0_i32_0 : i32, i32
  }
  func.func @transform_22(%arg0: i32, %arg1: i32) -> (i32, i32) {
    %c0_i32 = arith.constant 0 : i32
    %c0_i32_0 = arith.constant 0 : i32
    %c0_i32_1 = arith.constant 0 : i32
    return %c0_i32, %c0_i32_0 : i32, i32
  }
  func.func @transform_23(%arg0: i32, %arg1: i32) -> (i32, i32) {
    %c0_i32 = arith.constant 0 : i32
    %c0_i32_0 = arith.constant 0 : i32
    %c0_i32_1 = arith.constant 0 : i32
    return %c0_i32, %c0_i32_0 : i32, i32
  }
  func.func @transform_24(%arg0: i32, %arg1: i32) -> (i32, i32) {
    %c0_i32 = arith.constant 0 : i32
    %c0_i32_0 = arith.constant 0 : i32
    %c0_i32_1 = arith.constant 0 : i32
    return %c0_i32, %c0_i32_0 : i32, i32
  }
  func.func @transform_25(%arg0: i32, %arg1: i32) -> (i32, i32) {
    %c0_i32 = arith.constant 0 : i32
    %c0_i32_0 = arith.constant 0 : i32
    %c0_i32_1 = arith.constant 0 : i32
    return %c0_i32, %c0_i32_0 : i32, i32
  }
  func.func @transform_26(%arg0: i32, %arg1: i32) -> (i32, i32) {
    %c0_i32 = arith.constant 0 : i32
    %c0_i32_0 = arith.constant 0 : i32
    %c0_i32_1 = arith.constant 0 : i32
    return %c0_i32, %c0_i32_0 : i32, i32
  }
  func.func @transform_27(%arg0: i32, %arg1: i32) -> (i32, i32) {
    %c0_i32 = arith.constant 0 : i32
    %c0_i32_0 = arith.constant 0 : i32
    %c0_i32_1 = arith.constant 0 : i32
    return %c0_i32, %c0_i32_0 : i32, i32
  }
  func.func @transform_28(%arg0: i32, %arg1: i32) -> (i32, i32) {
    %c0_i32 = arith.constant 0 : i32
    %c0_i32_0 = arith.constant 0 : i32
    %c0_i32_1 = arith.constant 0 : i32
    return %c0_i32, %c0_i32_0 : i32, i32
  }
  func.func @transform_29(%arg0: i32, %arg1: i32) -> (i32, i32) {
    %c0_i32 = arith.constant 0 : i32
    %c0_i32_0 = arith.constant 0 : i32
    %c0_i32_1 = arith.constant 0 : i32
    return %c0_i32, %c0_i32_0 : i32, i32
  }
  func.func @transform_30(%arg0: i32, %arg1: i32) -> (i32, i32, i32) {
    %c0_i32 = arith.constant 0 : i32
    %c0_i32_0 = arith.constant 0 : i32
    %c0_i32_1 = arith.constant 0 : i32
    return %arg0, %c0_i32, %c0_i32_0 : i32, i32, i32
  }
  func.func @transform_31(%arg0: i32, %arg1: i32) -> (i32, i32, i32, i32, i32) {
    %c0_i32 = arith.constant 0 : i32
    %c0_i32_0 = arith.constant 0 : i32
    %c0_i32_1 = arith.constant 0 : i32
    %c0_i32_2 = arith.constant 0 : i32
    return %arg0, %arg1, %c0_i32, %c0_i32_0, %c0_i32_1 : i32, i32, i32, i32, i32
  }
  func.func @transform_32(%arg0: i32, %arg1: i32) -> (i32, i32, i32) {
    %c0_i32 = arith.constant 0 : i32
    %c0_i32_0 = arith.constant 0 : i32
    %c0_i32_1 = arith.constant 0 : i32
    return %arg0, %c0_i32, %c0_i32_0 : i32, i32, i32
  }
}

module attributes {stable_mosaic.version = 11 : i64} {
  func.func @transmil_layer_kernel(%arg0: i32, %arg1: i32, %arg2: memref<1x8x16xbf16, #tpu.memory_space<vmem>>, %arg3: memref<1x8x2xf32, #tpu.memory_space<vmem>>, %arg4: memref<16x32xbf16, #tpu.memory_space<vmem>>, %arg5: memref<2x32xf32, #tpu.memory_space<vmem>>, %arg6: memref<1x32xf32, #tpu.memory_space<vmem>>, %arg7: memref<1x1x32xf32, #tpu.memory_space<vmem>>, %arg8: memref<1x1x32xf32, #tpu.memory_space<vmem>>, %arg9: memref<1x32x32xbf16, #tpu.memory_space<vmem>>, %arg10: memref<1x1x32xf32, #tpu.memory_space<vmem>>, %arg11: memref<1x32x32xbf16, #tpu.memory_space<vmem>>, %arg12: memref<1x1x32xf32, #tpu.memory_space<vmem>>, %arg13: memref<1x32x32xbf16, #tpu.memory_space<vmem>>, %arg14: memref<1x1x32xf32, #tpu.memory_space<vmem>>, %arg15: memref<1x32x32xbf16, #tpu.memory_space<vmem>>, %arg16: memref<1x1x32xf32, #tpu.memory_space<vmem>>, %arg17: memref<1x1x32xf32, #tpu.memory_space<vmem>>, %arg18: memref<1x1x32xf32, #tpu.memory_space<vmem>>, %arg19: memref<1x32x64xbf16, #tpu.memory_space<vmem>>, %arg20: memref<1x1x64xf32, #tpu.memory_space<vmem>>, %arg21: memref<1x64x32xbf16, #tpu.memory_space<vmem>>, %arg22: memref<1x1x32xf32, #tpu.memory_space<vmem>>, %arg23: memref<32x16xf32, #tpu.memory_space<vmem>>, %arg24: memref<1x16xf32, #tpu.memory_space<vmem>>, %arg25: memref<1x16xf32, #tpu.memory_space<vmem>>, %arg26: memref<2x32xf32, #tpu.memory_space<vmem>>, %arg27: memref<2x1xf32, #tpu.memory_space<vmem>>, %arg28: memref<32x16xf32, #tpu.memory_space<vmem>>, %arg29: memref<1x16xf32, #tpu.memory_space<vmem>>, %arg30: memref<16x1xf32, #tpu.memory_space<vmem>>, %arg31: memref<1x1xf32, #tpu.memory_space<vmem>>, %arg32: memref<1x8x32xf32, #tpu.memory_space<vmem>>, %arg33: memref<1x1x4x8x8xbf16, #tpu.memory_space<vmem>>, %arg34: memref<1x4x8xf32, #tpu.memory_space<vmem>>) attributes {dimension_semantics = [#tpu.dimension_semantics<parallel>, #tpu.dimension_semantics<arbitrary>], iteration_bounds = array<i64: 2, 2>, scalar_prefetch = 0 : i64, scratch_operands = 0 : i64, tpu.core_type = #tpu.core_type<tc>, window_params = [{transform_indices = @transform_0, window_bounds = array<i64: 1, 8, 16>}, {transform_indices = @transform_1, window_bounds = array<i64: 1, 8, 2>}, {pipeline_mode = #tpu.pipeline_mode<synchronous>, transform_indices = @transform_2, window_bounds = array<i64: 16, 32>}, {pipeline_mode = #tpu.pipeline_mode<synchronous>, transform_indices = @transform_3, window_bounds = array<i64: 2, 32>}, {pipeline_mode = #tpu.pipeline_mode<synchronous>, transform_indices = @transform_4, window_bounds = array<i64: 1, 32>}, {transform_indices = @transform_5, window_bounds = array<i64: 1, 1, 32>}, {transform_indices = @transform_6, window_bounds = array<i64: 1, 1, 32>}, {transform_indices = @transform_7, window_bounds = array<i64: 1, 32, 32>}, {transform_indices = @transform_8, window_bounds = array<i64: 1, 1, 32>}, {transform_indices = @transform_9, window_bounds = array<i64: 1, 32, 32>}, {transform_indices = @transform_10, window_bounds = array<i64: 1, 1, 32>}, {transform_indices = @transform_11, window_bounds = array<i64: 1, 32, 32>}, {transform_indices = @transform_12, window_bounds = array<i64: 1, 1, 32>}, {transform_indices = @transform_13, window_bounds = array<i64: 1, 32, 32>}, {transform_indices = @transform_14, window_bounds = array<i64: 1, 1, 32>}, {transform_indices = @transform_15, window_bounds = array<i64: 1, 1, 32>}, {transform_indices = @transform_16, window_bounds = array<i64: 1, 1, 32>}, {transform_indices = @transform_17, window_bounds = array<i64: 1, 32, 64>}, {transform_indices = @transform_18, window_bounds = array<i64: 1, 1, 64>}, {transform_indices = @transform_19, window_bounds = array<i64: 1, 64, 32>}, {transform_indices = @transform_20, window_bounds = array<i64: 1, 1, 32>}, {pipeline_mode = #tpu.pipeline_mode<synchronous>, transform_indices = @transform_21, window_bounds = array<i64: 32, 16>}, {pipeline_mode = #tpu.pipeline_mode<synchronous>, transform_indices = @transform_22, window_bounds = array<i64: 1, 16>}, {pipeline_mode = #tpu.pipeline_mode<synchronous>, transform_indices = @transform_23, window_bounds = array<i64: 1, 16>}, {pipeline_mode = #tpu.pipeline_mode<synchronous>, transform_indices = @transform_24, window_bounds = array<i64: 2, 32>}, {pipeline_mode = #tpu.pipeline_mode<synchronous>, transform_indices = @transform_25, window_bounds = array<i64: 2, 1>}, {pipeline_mode = #tpu.pipeline_mode<synchronous>, transform_indices = @transform_26, window_bounds = array<i64: 32, 16>}, {pipeline_mode = #tpu.pipeline_mode<synchronous>, transform_indices = @transform_27, window_bounds = array<i64: 1, 16>}, {pipeline_mode = #tpu.pipeline_mode<synchronous>, transform_indices = @transform_28, window_bounds = array<i64: 16, 1>}, {pipeline_mode = #tpu.pipeline_mode<synchronous>, transform_indices = @transform_29, window_bounds = array<i64: 1, 1>}, {transform_indices = @transform_30, window_bounds = array<i64: 1, 8, 32>}, {transform_indices = @transform_31, window_bounds = array<i64: 1, 1, 4, 8, 8>}, {transform_indices = @transform_32, window_bounds = array<i64: 1, 4, 8>}]} {
    %c0_i32 = arith.constant 0 : i32
    %0 = arith.cmpi eq, %arg1, %c0_i32 : i32
    %1 = arith.extui %0 : i1 to i32
    %c0_i32_0 = arith.constant 0 : i32
    %2 = arith.cmpi ne, %1, %c0_i32_0 : i32
    scf.if %2 {
      %c0_84 = arith.constant 0 : index
      %c0_85 = arith.constant 0 : index
      %c0_86 = arith.constant 0 : index
      %181 = vector.load %arg2[%c0_84, %c0_85, %c0_86] : memref<1x8x16xbf16, #tpu.memory_space<vmem>>, vector<1x8x16xbf16>
      %182 = vector.shape_cast %181 : vector<1x8x16xbf16> to vector<8x16xbf16>
      %c0_87 = arith.constant 0 : index
      %c0_88 = arith.constant 0 : index
      %183 = vector.load %arg4[%c0_87, %c0_88] : memref<16x32xbf16, #tpu.memory_space<vmem>>, vector<16x32xbf16>
      %cst_89 = arith.constant dense<0.000000e+00> : vector<8x32xf32>
      %184 = tpu.matmul %182, %183, %cst_89 {dimension_numbers = #tpu.dot_dimension_numbers<[1], [0], [0], [1], [0, 0, 1, 1], [], []>} : vector<8x16xbf16>, vector<16x32xbf16>, vector<8x32xf32> -> vector<8x32xf32>
      %c0_90 = arith.constant 0 : index
      %c0_91 = arith.constant 0 : index
      %c0_92 = arith.constant 0 : index
      %185 = vector.load %arg3[%c0_90, %c0_91, %c0_92] : memref<1x8x2xf32, #tpu.memory_space<vmem>>, vector<1x8x2xf32>
      %186 = vector.shape_cast %185 : vector<1x8x2xf32> to vector<8x2xf32>
      %c0_93 = arith.constant 0 : index
      %c0_94 = arith.constant 0 : index
      %187 = vector.load %arg5[%c0_93, %c0_94] : memref<2x32xf32, #tpu.memory_space<vmem>>, vector<2x32xf32>
      %cst_95 = arith.constant dense<0.000000e+00> : vector<8x32xf32>
      %188 = tpu.matmul %186, %187, %cst_95 {dimension_numbers = #tpu.dot_dimension_numbers<[1], [0], [0], [1], [0, 0, 1, 1], [], []>} : vector<8x2xf32>, vector<2x32xf32>, vector<8x32xf32> -> vector<8x32xf32>
      %189 = arith.addf %184, %188 : vector<8x32xf32>
      %c0_96 = arith.constant 0 : index
      %c0_97 = arith.constant 0 : index
      %190 = vector.load %arg6[%c0_96, %c0_97] : memref<1x32xf32, #tpu.memory_space<vmem>>, vector<1x32xf32>
      %191 = vector.broadcast %190 : vector<1x32xf32> to vector<8x32xf32>
      %192 = arith.addf %189, %191 : vector<8x32xf32>
      %c0_98 = arith.constant 0 : index
      %c0_99 = arith.constant 0 : index
      %c0_100 = arith.constant 0 : index
      %193 = vector.load %arg32[%c0_98, %c0_99, %c0_100] : memref<1x8x32xf32, #tpu.memory_space<vmem>>, vector<1x8x32xf32>
      %194 = vector.shape_cast %193 : vector<1x8x32xf32> to vector<8x32xf32>
      %195 = vector.shape_cast %192 : vector<8x32xf32> to vector<1x8x32xf32>
      tpu.vector_store %arg32[%c0_98, %c0_99, %c0_100], %195 {strides = array<i32>} : memref<1x8x32xf32, #tpu.memory_space<vmem>>, vector<1x8x32xf32>,
    } else {
    }
    %c0 = arith.constant 0 : index
    %c0_1 = arith.constant 0 : index
    %c0_2 = arith.constant 0 : index
    %3 = vector.load %arg32[%c0, %c0_1, %c0_2] : memref<1x8x32xf32, #tpu.memory_space<vmem>>, vector<1x8x32xf32>
    %4 = vector.shape_cast %3 : vector<1x8x32xf32> to vector<8x32xf32>
    %c0_3 = arith.constant 0 : index
    %c0_4 = arith.constant 0 : index
    %c0_5 = arith.constant 0 : index
    %5 = vector.load %arg7[%c0_3, %c0_4, %c0_5] : memref<1x1x32xf32, #tpu.memory_space<vmem>>, vector<1x1x32xf32>
    %6 = vector.shape_cast %5 : vector<1x1x32xf32> to vector<1x32xf32>
    %c0_6 = arith.constant 0 : index
    %c0_7 = arith.constant 0 : index
    %c0_8 = arith.constant 0 : index
    %7 = vector.load %arg8[%c0_6, %c0_7, %c0_8] : memref<1x1x32xf32, #tpu.memory_space<vmem>>, vector<1x1x32xf32>
    %8 = vector.shape_cast %7 : vector<1x1x32xf32> to vector<1x32xf32>
    %cst = arith.constant dense<0.000000e+00> : vector<8xf32>
    %9 = vector.multi_reduction <add>, %4, %cst [1] : vector<8x32xf32> to vector<8xf32>
    %10 = vector.shape_cast %9 : vector<8xf32> to vector<8x1xf32>
    %cst_9 = arith.constant 3.200000e+01 : f32
    %11 = vector.broadcast %cst_9 : f32 to vector<8x1xf32>
    %12 = arith.divf %10, %11 : vector<8x1xf32>
    %13 = vector.broadcast %12 : vector<8x1xf32> to vector<8x32xf32>
    %14 = arith.subf %4, %13 : vector<8x32xf32>
    %15 = arith.mulf %14, %14 : vector<8x32xf32>
    %cst_10 = arith.constant dense<0.000000e+00> : vector<8xf32>
    %16 = vector.multi_reduction <add>, %15, %cst_10 [1] : vector<8x32xf32> to vector<8xf32>
    %17 = vector.shape_cast %16 : vector<8xf32> to vector<8x1xf32>
    %cst_11 = arith.constant 3.200000e+01 : f32
    %18 = vector.broadcast %cst_11 : f32 to vector<8x1xf32>
    %19 = arith.divf %17, %18 : vector<8x1xf32>
    %20 = vector.broadcast %12 : vector<8x1xf32> to vector<8x32xf32>
    %21 = arith.subf %4, %20 : vector<8x32xf32>
    %cst_12 = arith.constant 9.99999974E-6 : f32
    %22 = vector.broadcast %cst_12 : f32 to vector<8x1xf32>
    %23 = arith.addf %19, %22 : vector<8x1xf32>
    %24 = math.rsqrt %23 : vector<8x1xf32>
    %25 = vector.broadcast %24 : vector<8x1xf32> to vector<8x32xf32>
    %26 = arith.mulf %21, %25 : vector<8x32xf32>
    %27 = vector.broadcast %6 : vector<1x32xf32> to vector<8x32xf32>
    %28 = arith.mulf %26, %27 : vector<8x32xf32>
    %29 = vector.broadcast %8 : vector<1x32xf32> to vector<8x32xf32>
    %30 = arith.addf %28, %29 : vector<8x32xf32>
    %31 = arith.truncf %30 : vector<8x32xf32> to vector<8x32xbf16>
    %c0_13 = arith.constant 0 : index
    %c0_14 = arith.constant 0 : index
    %c0_15 = arith.constant 0 : index
    %32 = vector.load %arg9[%c0_13, %c0_14, %c0_15] : memref<1x32x32xbf16, #tpu.memory_space<vmem>>, vector<1x32x32xbf16>
    %33 = vector.shape_cast %32 : vector<1x32x32xbf16> to vector<32x32xbf16>
    %cst_16 = arith.constant dense<0.000000e+00> : vector<8x32xf32>
    %34 = tpu.matmul %31, %33, %cst_16 {dimension_numbers = #tpu.dot_dimension_numbers<[1], [0], [0], [1], [0, 0, 1, 1], [], []>} : vector<8x32xbf16>, vector<32x32xbf16>, vector<8x32xf32> -> vector<8x32xf32>
    %c0_17 = arith.constant 0 : index
    %c0_18 = arith.constant 0 : index
    %c0_19 = arith.constant 0 : index
    %35 = vector.load %arg10[%c0_17, %c0_18, %c0_19] : memref<1x1x32xf32, #tpu.memory_space<vmem>>, vector<1x1x32xf32>
    %36 = vector.shape_cast %35 : vector<1x1x32xf32> to vector<1x32xf32>
    %37 = vector.broadcast %36 : vector<1x32xf32> to vector<8x32xf32>
    %38 = arith.addf %34, %37 : vector<8x32xf32>
    %c0_20 = arith.constant 0 : index
    %c0_21 = arith.constant 0 : index
    %c0_22 = arith.constant 0 : index
    %39 = vector.load %arg11[%c0_20, %c0_21, %c0_22] : memref<1x32x32xbf16, #tpu.memory_space<vmem>>, vector<1x32x32xbf16>
    %40 = vector.shape_cast %39 : vector<1x32x32xbf16> to vector<32x32xbf16>
    %cst_23 = arith.constant dense<0.000000e+00> : vector<8x32xf32>
    %41 = tpu.matmul %31, %40, %cst_23 {dimension_numbers = #tpu.dot_dimension_numbers<[1], [0], [0], [1], [0, 0, 1, 1], [], []>} : vector<8x32xbf16>, vector<32x32xbf16>, vector<8x32xf32> -> vector<8x32xf32>
    %c0_24 = arith.constant 0 : index
    %c0_25 = arith.constant 0 : index
    %c0_26 = arith.constant 0 : index
    %42 = vector.load %arg12[%c0_24, %c0_25, %c0_26] : memref<1x1x32xf32, #tpu.memory_space<vmem>>, vector<1x1x32xf32>
    %43 = vector.shape_cast %42 : vector<1x1x32xf32> to vector<1x32xf32>
    %44 = vector.broadcast %43 : vector<1x32xf32> to vector<8x32xf32>
    %45 = arith.addf %41, %44 : vector<8x32xf32>
    %c0_27 = arith.constant 0 : index
    %c0_28 = arith.constant 0 : index
    %c0_29 = arith.constant 0 : index
    %46 = vector.load %arg13[%c0_27, %c0_28, %c0_29] : memref<1x32x32xbf16, #tpu.memory_space<vmem>>, vector<1x32x32xbf16>
    %47 = vector.shape_cast %46 : vector<1x32x32xbf16> to vector<32x32xbf16>
    %cst_30 = arith.constant dense<0.000000e+00> : vector<8x32xf32>
    %48 = tpu.matmul %31, %47, %cst_30 {dimension_numbers = #tpu.dot_dimension_numbers<[1], [0], [0], [1], [0, 0, 1, 1], [], []>} : vector<8x32xbf16>, vector<32x32xbf16>, vector<8x32xf32> -> vector<8x32xf32>
    %c0_31 = arith.constant 0 : index
    %c0_32 = arith.constant 0 : index
    %c0_33 = arith.constant 0 : index
    %49 = vector.load %arg14[%c0_31, %c0_32, %c0_33] : memref<1x1x32xf32, #tpu.memory_space<vmem>>, vector<1x1x32xf32>
    %50 = vector.shape_cast %49 : vector<1x1x32xf32> to vector<1x32xf32>
    %51 = vector.broadcast %50 : vector<1x32xf32> to vector<8x32xf32>
    %52 = arith.addf %48, %51 : vector<8x32xf32>
    %53 = vector.extract_strided_slice %38 {offsets = [0, 0], sizes = [8, 8], strides = [1, 1]} : vector<8x32xf32> to vector<8x8xf32>
    %54 = vector.extract_strided_slice %38 {offsets = [0, 8], sizes = [8, 8], strides = [1, 1]} : vector<8x32xf32> to vector<8x8xf32>
    %55 = vector.extract_strided_slice %38 {offsets = [0, 16], sizes = [8, 8], strides = [1, 1]} : vector<8x32xf32> to vector<8x8xf32>
    %56 = vector.extract_strided_slice %38 {offsets = [0, 24], sizes = [8, 8], strides = [1, 1]} : vector<8x32xf32> to vector<8x8xf32>
    %57 = vector.shape_cast %53 : vector<8x8xf32> to vector<1x8x8xf32>
    %58 = vector.shape_cast %54 : vector<8x8xf32> to vector<1x8x8xf32>
    %59 = vector.shape_cast %55 : vector<8x8xf32> to vector<1x8x8xf32>
    %60 = vector.shape_cast %56 : vector<8x8xf32> to vector<1x8x8xf32>
    %61 = tpu.concatenate %57, %58, %59, %60 in 0 : vector<1x8x8xf32>, vector<1x8x8xf32>, vector<1x8x8xf32>, vector<1x8x8xf32> -> vector<4x8x8xf32>
    %62 = arith.truncf %61 : vector<4x8x8xf32> to vector<4x8x8xbf16>
    %63 = vector.extract_strided_slice %45 {offsets = [0, 0], sizes = [8, 8], strides = [1, 1]} : vector<8x32xf32> to vector<8x8xf32>
    %64 = vector.extract_strided_slice %45 {offsets = [0, 8], sizes = [8, 8], strides = [1, 1]} : vector<8x32xf32> to vector<8x8xf32>
    %65 = vector.extract_strided_slice %45 {offsets = [0, 16], sizes = [8, 8], strides = [1, 1]} : vector<8x32xf32> to vector<8x8xf32>
    %66 = vector.extract_strided_slice %45 {offsets = [0, 24], sizes = [8, 8], strides = [1, 1]} : vector<8x32xf32> to vector<8x8xf32>
    %67 = vector.shape_cast %63 : vector<8x8xf32> to vector<1x8x8xf32>
    %68 = vector.shape_cast %64 : vector<8x8xf32> to vector<1x8x8xf32>
    %69 = vector.shape_cast %65 : vector<8x8xf32> to vector<1x8x8xf32>
    %70 = vector.shape_cast %66 : vector<8x8xf32> to vector<1x8x8xf32>
    %71 = tpu.concatenate %67, %68, %69, %70 in 0 : vector<1x8x8xf32>, vector<1x8x8xf32>, vector<1x8x8xf32>, vector<1x8x8xf32> -> vector<4x8x8xf32>
    %72 = arith.truncf %71 : vector<4x8x8xf32> to vector<4x8x8xbf16>
    %73 = vector.extract_strided_slice %52 {offsets = [0, 0], sizes = [8, 8], strides = [1, 1]} : vector<8x32xf32> to vector<8x8xf32>
    %74 = vector.extract_strided_slice %52 {offsets = [0, 8], sizes = [8, 8], strides = [1, 1]} : vector<8x32xf32> to vector<8x8xf32>
    %75 = vector.extract_strided_slice %52 {offsets = [0, 16], sizes = [8, 8], strides = [1, 1]} : vector<8x32xf32> to vector<8x8xf32>
    %76 = vector.extract_strided_slice %52 {offsets = [0, 24], sizes = [8, 8], strides = [1, 1]} : vector<8x32xf32> to vector<8x8xf32>
    %77 = vector.shape_cast %73 : vector<8x8xf32> to vector<1x8x8xf32>
    %78 = vector.shape_cast %74 : vector<8x8xf32> to vector<1x8x8xf32>
    %79 = vector.shape_cast %75 : vector<8x8xf32> to vector<1x8x8xf32>
    %80 = vector.shape_cast %76 : vector<8x8xf32> to vector<1x8x8xf32>
    %81 = tpu.concatenate %77, %78, %79, %80 in 0 : vector<1x8x8xf32>, vector<1x8x8xf32>, vector<1x8x8xf32>, vector<1x8x8xf32> -> vector<4x8x8xf32>
    %82 = arith.truncf %81 : vector<4x8x8xf32> to vector<4x8x8xbf16>
    "tpu.trace_start"() <{level = 10 : i32, message = "hnd,hmd->hnm"}> : () -> ()
    %cst_34 = arith.constant dense<0.000000e+00> : vector<4x8x8xf32>
    %83 = tpu.matmul %62, %72, %cst_34 {dimension_numbers = #tpu.dot_dimension_numbers<[2], [2], [1], [1], [0, 0, 0, 1, 1, 1], [0], [0]>} : vector<4x8x8xbf16>, vector<4x8x8xbf16>, vector<4x8x8xf32> -> vector<4x8x8xf32>
    "tpu.trace_stop"() : () -> ()
    %cst_35 = arith.constant 0.353553385 : f32
    %84 = vector.broadcast %cst_35 : f32 to vector<4x8x8xf32>
    %85 = arith.mulf %83, %84 : vector<4x8x8xf32>
    %cst_36 = arith.constant dense<0xFF800000> : vector<4x8xf32>
    %86 = vector.multi_reduction <maximumf>, %85, %cst_36 [2] : vector<4x8x8xf32> to vector<4x8xf32>
    %87 = vector.shape_cast %86 : vector<4x8xf32> to vector<4x8x1xf32>
    %88 = vector.broadcast %87 : vector<4x8x1xf32> to vector<4x8x8xf32>
    %89 = arith.subf %85, %88 : vector<4x8x8xf32>
    %90 = math.exp %89 : vector<4x8x8xf32>
    %cst_37 = arith.constant dense<0.000000e+00> : vector<4x8xf32>
    %91 = vector.multi_reduction <add>, %90, %cst_37 [2] : vector<4x8x8xf32> to vector<4x8xf32>
    %92 = vector.shape_cast %91 : vector<4x8xf32> to vector<4x8x1xf32>
    %93 = tpu.reciprocal %92 {approx = true} : vector<4x8x1xf32> -> vector<4x8x1xf32>
    %94 = vector.broadcast %93 : vector<4x8x1xf32> to vector<4x8x8xf32>
    %95 = arith.mulf %90, %94 : vector<4x8x8xf32>
    %96 = arith.truncf %95 : vector<4x8x8xf32> to vector<4x8x8xbf16>
    %c0_38 = arith.constant 0 : index
    %c0_39 = arith.constant 0 : index
    %c0_40 = arith.constant 0 : index
    %c0_41 = arith.constant 0 : index
    %c0_42 = arith.constant 0 : index
    %97 = vector.load %arg33[%c0_38, %c0_39, %c0_40, %c0_41, %c0_42] : memref<1x1x4x8x8xbf16, #tpu.memory_space<vmem>>, vector<1x1x4x8x8xbf16>
    %98 = vector.shape_cast %97 : vector<1x1x4x8x8xbf16> to vector<4x8x8xbf16>
    %99 = vector.shape_cast %96 : vector<4x8x8xbf16> to vector<1x1x4x8x8xbf16>
    tpu.vector_store %arg33[%c0_38, %c0_39, %c0_40, %c0_41, %c0_42], %99 {strides = array<i32>} : memref<1x1x4x8x8xbf16, #tpu.memory_space<vmem>>, vector<1x1x4x8x8xbf16>,
    "tpu.trace_start"() <{level = 10 : i32, message = "hnm,hmd->hnd"}> : () -> ()
    %cst_43 = arith.constant dense<0.000000e+00> : vector<4x8x8xf32>
    %100 = tpu.matmul %96, %82, %cst_43 {dimension_numbers = #tpu.dot_dimension_numbers<[2], [1], [1], [2], [0, 0, 0, 1, 1, 2], [0], [0]>} : vector<4x8x8xbf16>, vector<4x8x8xbf16>, vector<4x8x8xf32> -> vector<4x8x8xf32>
    "tpu.trace_stop"() : () -> ()
    %101 = vector.extract_strided_slice %100 {offsets = [0, 0, 0], sizes = [1, 8, 8], strides = [1, 1, 1]} : vector<4x8x8xf32> to vector<1x8x8xf32>
    %102 = vector.shape_cast %101 : vector<1x8x8xf32> to vector<8x8xf32>
    %103 = vector.extract_strided_slice %100 {offsets = [1, 0, 0], sizes = [1, 8, 8], strides = [1, 1, 1]} : vector<4x8x8xf32> to vector<1x8x8xf32>
    %104 = vector.shape_cast %103 : vector<1x8x8xf32> to vector<8x8xf32>
    %105 = vector.extract_strided_slice %100 {offsets = [2, 0, 0], sizes = [1, 8, 8], strides = [1, 1, 1]} : vector<4x8x8xf32> to vector<1x8x8xf32>
    %106 = vector.shape_cast %105 : vector<1x8x8xf32> to vector<8x8xf32>
    %107 = vector.extract_strided_slice %100 {offsets = [3, 0, 0], sizes = [1, 8, 8], strides = [1, 1, 1]} : vector<4x8x8xf32> to vector<1x8x8xf32>
    %108 = vector.shape_cast %107 : vector<1x8x8xf32> to vector<8x8xf32>
    %109 = tpu.concatenate %102, %104, %106, %108 in 1 : vector<8x8xf32>, vector<8x8xf32>, vector<8x8xf32>, vector<8x8xf32> -> vector<8x32xf32>
    %110 = arith.truncf %109 : vector<8x32xf32> to vector<8x32xbf16>
    %c0_44 = arith.constant 0 : index
    %c0_45 = arith.constant 0 : index
    %c0_46 = arith.constant 0 : index
    %111 = vector.load %arg15[%c0_44, %c0_45, %c0_46] : memref<1x32x32xbf16, #tpu.memory_space<vmem>>, vector<1x32x32xbf16>
    %112 = vector.shape_cast %111 : vector<1x32x32xbf16> to vector<32x32xbf16>
    %cst_47 = arith.constant dense<0.000000e+00> : vector<8x32xf32>
    %113 = tpu.matmul %110, %112, %cst_47 {dimension_numbers = #tpu.dot_dimension_numbers<[1], [0], [0], [1], [0, 0, 1, 1], [], []>} : vector<8x32xbf16>, vector<32x32xbf16>, vector<8x32xf32> -> vector<8x32xf32>
    %c0_48 = arith.constant 0 : index
    %c0_49 = arith.constant 0 : index
    %c0_50 = arith.constant 0 : index
    %114 = vector.load %arg16[%c0_48, %c0_49, %c0_50] : memref<1x1x32xf32, #tpu.memory_space<vmem>>, vector<1x1x32xf32>
    %115 = vector.shape_cast %114 : vector<1x1x32xf32> to vector<1x32xf32>
    %116 = vector.broadcast %115 : vector<1x32xf32> to vector<8x32xf32>
    %117 = arith.addf %113, %116 : vector<8x32xf32>
    %118 = arith.addf %4, %117 : vector<8x32xf32>
    %c0_51 = arith.constant 0 : index
    %c0_52 = arith.constant 0 : index
    %c0_53 = arith.constant 0 : index
    %119 = vector.load %arg17[%c0_51, %c0_52, %c0_53] : memref<1x1x32xf32, #tpu.memory_space<vmem>>, vector<1x1x32xf32>
    %120 = vector.shape_cast %119 : vector<1x1x32xf32> to vector<1x32xf32>
    %c0_54 = arith.constant 0 : index
    %c0_55 = arith.constant 0 : index
    %c0_56 = arith.constant 0 : index
    %121 = vector.load %arg18[%c0_54, %c0_55, %c0_56] : memref<1x1x32xf32, #tpu.memory_space<vmem>>, vector<1x1x32xf32>
    %122 = vector.shape_cast %121 : vector<1x1x32xf32> to vector<1x32xf32>
    %cst_57 = arith.constant dense<0.000000e+00> : vector<8xf32>
    %123 = vector.multi_reduction <add>, %118, %cst_57 [1] : vector<8x32xf32> to vector<8xf32>
    %124 = vector.shape_cast %123 : vector<8xf32> to vector<8x1xf32>
    %cst_58 = arith.constant 3.200000e+01 : f32
    %125 = vector.broadcast %cst_58 : f32 to vector<8x1xf32>
    %126 = arith.divf %124, %125 : vector<8x1xf32>
    %127 = vector.broadcast %126 : vector<8x1xf32> to vector<8x32xf32>
    %128 = arith.subf %118, %127 : vector<8x32xf32>
    %129 = arith.mulf %128, %128 : vector<8x32xf32>
    %cst_59 = arith.constant dense<0.000000e+00> : vector<8xf32>
    %130 = vector.multi_reduction <add>, %129, %cst_59 [1] : vector<8x32xf32> to vector<8xf32>
    %131 = vector.shape_cast %130 : vector<8xf32> to vector<8x1xf32>
    %cst_60 = arith.constant 3.200000e+01 : f32
    %132 = vector.broadcast %cst_60 : f32 to vector<8x1xf32>
    %133 = arith.divf %131, %132 : vector<8x1xf32>
    %134 = vector.broadcast %126 : vector<8x1xf32> to vector<8x32xf32>
    %135 = arith.subf %118, %134 : vector<8x32xf32>
    %cst_61 = arith.constant 9.99999974E-6 : f32
    %136 = vector.broadcast %cst_61 : f32 to vector<8x1xf32>
    %137 = arith.addf %133, %136 : vector<8x1xf32>
    %138 = math.rsqrt %137 : vector<8x1xf32>
    %139 = vector.broadcast %138 : vector<8x1xf32> to vector<8x32xf32>
    %140 = arith.mulf %135, %139 : vector<8x32xf32>
    %141 = vector.broadcast %120 : vector<1x32xf32> to vector<8x32xf32>
    %142 = arith.mulf %140, %141 : vector<8x32xf32>
    %143 = vector.broadcast %122 : vector<1x32xf32> to vector<8x32xf32>
    %144 = arith.addf %142, %143 : vector<8x32xf32>
    %145 = arith.truncf %144 : vector<8x32xf32> to vector<8x32xbf16>
    %c0_62 = arith.constant 0 : index
    %c0_63 = arith.constant 0 : index
    %c0_64 = arith.constant 0 : index
    %146 = vector.load %arg19[%c0_62, %c0_63, %c0_64] : memref<1x32x64xbf16, #tpu.memory_space<vmem>>, vector<1x32x64xbf16>
    %147 = vector.shape_cast %146 : vector<1x32x64xbf16> to vector<32x64xbf16>
    %cst_65 = arith.constant dense<0.000000e+00> : vector<8x64xf32>
    %148 = tpu.matmul %145, %147, %cst_65 {dimension_numbers = #tpu.dot_dimension_numbers<[1], [0], [0], [1], [0, 0, 1, 1], [], []>} : vector<8x32xbf16>, vector<32x64xbf16>, vector<8x64xf32> -> vector<8x64xf32>
    %c0_66 = arith.constant 0 : index
    %c0_67 = arith.constant 0 : index
    %c0_68 = arith.constant 0 : index
    %149 = vector.load %arg20[%c0_66, %c0_67, %c0_68] : memref<1x1x64xf32, #tpu.memory_space<vmem>>, vector<1x1x64xf32>
    %150 = vector.shape_cast %149 : vector<1x1x64xf32> to vector<1x64xf32>
    %151 = vector.broadcast %150 : vector<1x64xf32> to vector<8x64xf32>
    %152 = arith.addf %148, %151 : vector<8x64xf32>
    %cst_69 = arith.constant 5.000000e-01 : f32
    %153 = vector.broadcast %cst_69 : f32 to vector<8x64xf32>
    %154 = arith.mulf %153, %152 : vector<8x64xf32>
    %cst_70 = arith.constant 4.471500e-02 : f32
    %155 = vector.broadcast %cst_70 : f32 to vector<8x64xf32>
    %156 = arith.mulf %155, %152 : vector<8x64xf32>
    %157 = arith.mulf %156, %152 : vector<8x64xf32>
    %158 = arith.mulf %157, %152 : vector<8x64xf32>
    %159 = arith.addf %152, %158 : vector<8x64xf32>
    %cst_71 = arith.constant 0.797884583 : f32
    %160 = vector.broadcast %cst_71 : f32 to vector<8x64xf32>
    %161 = arith.mulf %160, %159 : vector<8x64xf32>
    %162 = math.tanh %161 : vector<8x64xf32>
    %cst_72 = arith.constant 1.000000e+00 : f32
    %163 = vector.broadcast %cst_72 : f32 to vector<8x64xf32>
    %164 = arith.addf %163, %162 : vector<8x64xf32>
    %165 = arith.mulf %154, %164 : vector<8x64xf32>
    %166 = arith.truncf %165 : vector<8x64xf32> to vector<8x64xbf16>
    %c0_73 = arith.constant 0 : index
    %c0_74 = arith.constant 0 : index
    %c0_75 = arith.constant 0 : index
    %167 = vector.load %arg21[%c0_73, %c0_74, %c0_75] : memref<1x64x32xbf16, #tpu.memory_space<vmem>>, vector<1x64x32xbf16>
    %168 = vector.shape_cast %167 : vector<1x64x32xbf16> to vector<64x32xbf16>
    %cst_76 = arith.constant dense<0.000000e+00> : vector<8x32xf32>
    %169 = tpu.matmul %166, %168, %cst_76 {dimension_numbers = #tpu.dot_dimension_numbers<[1], [0], [0], [1], [0, 0, 1, 1], [], []>} : vector<8x64xbf16>, vector<64x32xbf16>, vector<8x32xf32> -> vector<8x32xf32>
    %c0_77 = arith.constant 0 : index
    %c0_78 = arith.constant 0 : index
    %c0_79 = arith.constant 0 : index
    %170 = vector.load %arg22[%c0_77, %c0_78, %c0_79] : memref<1x1x32xf32, #tpu.memory_space<vmem>>, vector<1x1x32xf32>
    %171 = vector.shape_cast %170 : vector<1x1x32xf32> to vector<1x32xf32>
    %172 = vector.broadcast %171 : vector<1x32xf32> to vector<8x32xf32>
    %173 = arith.addf %169, %172 : vector<8x32xf32>
    %174 = arith.addf %118, %173 : vector<8x32xf32>
    %c0_80 = arith.constant 0 : index
    %c0_81 = arith.constant 0 : index
    %c0_82 = arith.constant 0 : index
    %175 = vector.load %arg32[%c0_80, %c0_81, %c0_82] : memref<1x8x32xf32, #tpu.memory_space<vmem>>, vector<1x8x32xf32>
    %176 = vector.shape_cast %175 : vector<1x8x32xf32> to vector<8x32xf32>
    %177 = vector.shape_cast %174 : vector<8x32xf32> to vector<1x8x32xf32>
    tpu.vector_store %arg32[%c0_80, %c0_81, %c0_82], %177 {strides = array<i32>} : memref<1x8x32xf32, #tpu.memory_space<vmem>>, vector<1x8x32xf32>,
    %c1_i32 = arith.constant 1 : i32
    %178 = arith.cmpi eq, %arg1, %c1_i32 : i32
    %179 = arith.extui %178 : i1 to i32
    %c0_i32_83 = arith.constant 0 : i32
    %180 = arith.cmpi ne, %179, %c0_i32_83 : i32
    scf.if %180 {
      %c0_84 = arith.constant 0 : index
      %c0_85 = arith.constant 0 : index
      %181 = vector.load %arg23[%c0_84, %c0_85] : memref<32x16xf32, #tpu.memory_space<vmem>>, vector<32x16xf32>
      %cst_86 = arith.constant dense<0.000000e+00> : vector<8x16xf32>
      %182 = tpu.matmul %174, %181, %cst_86 {dimension_numbers = #tpu.dot_dimension_numbers<[1], [0], [0], [1], [0, 0, 1, 1], [], []>} : vector<8x32xf32>, vector<32x16xf32>, vector<8x16xf32> -> vector<8x16xf32>
      %c0_87 = arith.constant 0 : index
      %c0_88 = arith.constant 0 : index
      %183 = vector.load %arg24[%c0_87, %c0_88] : memref<1x16xf32, #tpu.memory_space<vmem>>, vector<1x16xf32>
      %184 = vector.broadcast %183 : vector<1x16xf32> to vector<8x16xf32>
      %185 = arith.addf %182, %184 : vector<8x16xf32>
      %186 = math.tanh %185 : vector<8x16xf32>
      %c0_89 = arith.constant 0 : index
      %c0_90 = arith.constant 0 : index
      %187 = vector.load %arg25[%c0_89, %c0_90] : memref<1x16xf32, #tpu.memory_space<vmem>>, vector<1x16xf32>
      %cst_91 = arith.constant dense<0.000000e+00> : vector<1x8xf32>
      %188 = tpu.matmul %187, %186, %cst_91 {dimension_numbers = #tpu.dot_dimension_numbers<[1], [1], [0], [0], [0, 0, 1, 0], [], []>} : vector<1x16xf32>, vector<8x16xf32>, vector<1x8xf32> -> vector<1x8xf32>
      %cst_92 = arith.constant dense<0xFF800000> : vector<1xf32>
      %189 = vector.multi_reduction <maximumf>, %188, %cst_92 [1] : vector<1x8xf32> to vector<1xf32>
      %190 = vector.shape_cast %189 : vector<1xf32> to vector<1x1xf32>
      %191 = vector.broadcast %190 : vector<1x1xf32> to vector<1x8xf32>
      %192 = arith.subf %188, %191 : vector<1x8xf32>
      %193 = math.exp %192 : vector<1x8xf32>
      %cst_93 = arith.constant dense<0.000000e+00> : vector<1xf32>
      %194 = vector.multi_reduction <add>, %193, %cst_93 [1] : vector<1x8xf32> to vector<1xf32>
      %195 = vector.shape_cast %194 : vector<1xf32> to vector<1x1xf32>
      %196 = vector.broadcast %195 : vector<1x1xf32> to vector<1x8xf32>
      %197 = arith.divf %193, %196 : vector<1x8xf32>
      %cst_94 = arith.constant dense<0.000000e+00> : vector<1x32xf32>
      %198 = tpu.matmul %197, %174, %cst_94 {dimension_numbers = #tpu.dot_dimension_numbers<[1], [0], [0], [1], [0, 0, 1, 1], [], []>} : vector<1x8xf32>, vector<8x32xf32>, vector<1x32xf32> -> vector<1x32xf32>
      %c0_95 = arith.constant 0 : index
      %c0_96 = arith.constant 0 : index
      %199 = vector.load %arg26[%c0_95, %c0_96] : memref<2x32xf32, #tpu.memory_space<vmem>>, vector<2x32xf32>
      %cst_97 = arith.constant dense<0.000000e+00> : vector<2x8xf32>
      %200 = tpu.matmul %199, %174, %cst_97 {dimension_numbers = #tpu.dot_dimension_numbers<[1], [1], [0], [0], [0, 0, 1, 0], [], []>} : vector<2x32xf32>, vector<8x32xf32>, vector<2x8xf32> -> vector<2x8xf32>
      %c0_98 = arith.constant 0 : index
      %c0_99 = arith.constant 0 : index
      %201 = vector.load %arg27[%c0_98, %c0_99] : memref<2x1xf32, #tpu.memory_space<vmem>>, vector<2x1xf32>
      %202 = vector.broadcast %201 : vector<2x1xf32> to vector<2x8xf32>
      %203 = arith.addf %200, %202 : vector<2x8xf32>
      %c0_100 = arith.constant 0 : index
      %c0_101 = arith.constant 0 : index
      %204 = vector.load %arg28[%c0_100, %c0_101] : memref<32x16xf32, #tpu.memory_space<vmem>>, vector<32x16xf32>
      %cst_102 = arith.constant dense<0.000000e+00> : vector<1x16xf32>
      %205 = tpu.matmul %198, %204, %cst_102 {dimension_numbers = #tpu.dot_dimension_numbers<[1], [0], [0], [1], [0, 0, 1, 1], [], []>} : vector<1x32xf32>, vector<32x16xf32>, vector<1x16xf32> -> vector<1x16xf32>
      %c0_103 = arith.constant 0 : index
      %c0_104 = arith.constant 0 : index
      %206 = vector.load %arg29[%c0_103, %c0_104] : memref<1x16xf32, #tpu.memory_space<vmem>>, vector<1x16xf32>
      %207 = arith.addf %205, %206 : vector<1x16xf32>
      %cst_105 = arith.constant 5.000000e-01 : f32
      %208 = vector.broadcast %cst_105 : f32 to vector<1x16xf32>
      %209 = arith.mulf %208, %207 : vector<1x16xf32>
      %cst_106 = arith.constant 4.471500e-02 : f32
      %210 = vector.broadcast %cst_106 : f32 to vector<1x16xf32>
      %211 = arith.mulf %210, %207 : vector<1x16xf32>
      %212 = arith.mulf %211, %207 : vector<1x16xf32>
      %213 = arith.mulf %212, %207 : vector<1x16xf32>
      %214 = arith.addf %207, %213 : vector<1x16xf32>
      %cst_107 = arith.constant 0.797884583 : f32
      %215 = vector.broadcast %cst_107 : f32 to vector<1x16xf32>
      %216 = arith.mulf %215, %214 : vector<1x16xf32>
      %217 = math.tanh %216 : vector<1x16xf32>
      %cst_108 = arith.constant 1.000000e+00 : f32
      %218 = vector.broadcast %cst_108 : f32 to vector<1x16xf32>
      %219 = arith.addf %218, %217 : vector<1x16xf32>
      %220 = arith.mulf %209, %219 : vector<1x16xf32>
      %c0_109 = arith.constant 0 : index
      %c0_110 = arith.constant 0 : index
      %221 = vector.load %arg30[%c0_109, %c0_110] : memref<16x1xf32, #tpu.memory_space<vmem>>, vector<16x1xf32>
      %cst_111 = arith.constant dense<0.000000e+00> : vector<1x1xf32>
      %222 = tpu.matmul %220, %221, %cst_111 {dimension_numbers = #tpu.dot_dimension_numbers<[1], [0], [0], [1], [0, 0, 1, 1], [], []>} : vector<1x16xf32>, vector<16x1xf32>, vector<1x1xf32> -> vector<1x1xf32>
      %c0_112 = arith.constant 0 : index
      %c0_113 = arith.constant 0 : index
      %223 = vector.load %arg31[%c0_112, %c0_113] : memref<1x1xf32, #tpu.memory_space<vmem>>, vector<1x1xf32>
      %224 = arith.addf %222, %223 : vector<1x1xf32>
      %cst_114 = arith.constant 0.000000e+00 : f32
      %cst_115 = arith.constant 3.000000e+00 : f32
      %225 = vector.broadcast %cst_114 : f32 to vector<1x1xf32>
      %226 = arith.maximumf %225, %224 : vector<1x1xf32>
      %227 = vector.broadcast %cst_115 : f32 to vector<1x1xf32>
      %228 = arith.minimumf %227, %226 : vector<1x1xf32>
      %c0_116 = arith.constant 0 : index
      %c0_117 = arith.constant 0 : index
      %c0_118 = arith.constant 0 : index
      %229 = vector.load %arg34[%c0_116, %c0_117, %c0_118] : memref<1x4x8xf32, #tpu.memory_space<vmem>>, vector<1x1x8xf32>
      %230 = vector.shape_cast %229 : vector<1x1x8xf32> to vector<1x8xf32>
      %231 = vector.shape_cast %197 : vector<1x8xf32> to vector<1x1x8xf32>
      tpu.vector_store %arg34[%c0_116, %c0_117, %c0_118], %231 {strides = array<i32>} : memref<1x4x8xf32, #tpu.memory_space<vmem>>, vector<1x1x8xf32>,
      %c0_119 = arith.constant 0 : index
      %c1 = arith.constant 1 : index
      %c0_120 = arith.constant 0 : index
      %232 = vector.load %arg34[%c0_119, %c1, %c0_120] : memref<1x4x8xf32, #tpu.memory_space<vmem>>, vector<1x2x8xf32>
      %233 = vector.shape_cast %232 : vector<1x2x8xf32> to vector<2x8xf32>
      %234 = vector.shape_cast %203 : vector<2x8xf32> to vector<1x2x8xf32>
      tpu.vector_store %arg34[%c0_119, %c1, %c0_120], %234 {strides = array<i32>} : memref<1x4x8xf32, #tpu.memory_space<vmem>>, vector<1x2x8xf32>,
      %235 = vector.shape_cast %228 : vector<1x1xf32> to vector<1x1xf32>
      %236 = vector.broadcast %235 : vector<1x1xf32> to vector<1x8xf32>
      %c0_121 = arith.constant 0 : index
      %c3 = arith.constant 3 : index
      %c0_122 = arith.constant 0 : index
      %237 = vector.load %arg34[%c0_121, %c3, %c0_122] : memref<1x4x8xf32, #tpu.memory_space<vmem>>, vector<1x1x8xf32>
      %238 = vector.shape_cast %237 : vector<1x1x8xf32> to vector<1x8xf32>
      %239 = vector.shape_cast %236 : vector<1x8xf32> to vector<1x1x8xf32>
      tpu.vector_store %arg34[%c0_121, %c3, %c0_122], %239 {strides = array<i32>} : memref<1x4x8xf32, #tpu.memory_space<vmem>>, vector<1x1x8xf32>,
    } else {
    }
    return
  }
  func.func @transform_0(%arg0: i32, %arg1: i32) -> (i32, i32, i32) {
    %c0_i32 = arith.constant 0 : i32
    %c0_i32_0 = arith.constant 0 : i32
    %c0_i32_1 = arith.constant 0 : i32
    return %arg0, %c0_i32, %c0_i32_0 : i32, i32, i32
  }
  func.func @transform_1(%arg0: i32, %arg1: i32) -> (i32, i32, i32) {
    %c0_i32 = arith.constant 0 : i32
    %c0_i32_0 = arith.constant 0 : i32
    %c0_i32_1 = arith.constant 0 : i32
    return %arg0, %c0_i32, %c0_i32_0 : i32, i32, i32
  }
  func.func @transform_2(%arg0: i32, %arg1: i32) -> (i32, i32) {
    %c0_i32 = arith.constant 0 : i32
    %c0_i32_0 = arith.constant 0 : i32
    %c0_i32_1 = arith.constant 0 : i32
    return %c0_i32, %c0_i32_0 : i32, i32
  }
  func.func @transform_3(%arg0: i32, %arg1: i32) -> (i32, i32) {
    %c0_i32 = arith.constant 0 : i32
    %c0_i32_0 = arith.constant 0 : i32
    %c0_i32_1 = arith.constant 0 : i32
    return %c0_i32, %c0_i32_0 : i32, i32
  }
  func.func @transform_4(%arg0: i32, %arg1: i32) -> (i32, i32) {
    %c0_i32 = arith.constant 0 : i32
    %c0_i32_0 = arith.constant 0 : i32
    %c0_i32_1 = arith.constant 0 : i32
    return %c0_i32, %c0_i32_0 : i32, i32
  }
  func.func @transform_5(%arg0: i32, %arg1: i32) -> (i32, i32, i32) {
    %c0_i32 = arith.constant 0 : i32
    %c0_i32_0 = arith.constant 0 : i32
    %c0_i32_1 = arith.constant 0 : i32
    return %arg1, %c0_i32, %c0_i32_0 : i32, i32, i32
  }
  func.func @transform_6(%arg0: i32, %arg1: i32) -> (i32, i32, i32) {
    %c0_i32 = arith.constant 0 : i32
    %c0_i32_0 = arith.constant 0 : i32
    %c0_i32_1 = arith.constant 0 : i32
    return %arg1, %c0_i32, %c0_i32_0 : i32, i32, i32
  }
  func.func @transform_7(%arg0: i32, %arg1: i32) -> (i32, i32, i32) {
    %c0_i32 = arith.constant 0 : i32
    %c0_i32_0 = arith.constant 0 : i32
    %c0_i32_1 = arith.constant 0 : i32
    return %arg1, %c0_i32, %c0_i32_0 : i32, i32, i32
  }
  func.func @transform_8(%arg0: i32, %arg1: i32) -> (i32, i32, i32) {
    %c0_i32 = arith.constant 0 : i32
    %c0_i32_0 = arith.constant 0 : i32
    %c0_i32_1 = arith.constant 0 : i32
    return %arg1, %c0_i32, %c0_i32_0 : i32, i32, i32
  }
  func.func @transform_9(%arg0: i32, %arg1: i32) -> (i32, i32, i32) {
    %c0_i32 = arith.constant 0 : i32
    %c0_i32_0 = arith.constant 0 : i32
    %c0_i32_1 = arith.constant 0 : i32
    return %arg1, %c0_i32, %c0_i32_0 : i32, i32, i32
  }
  func.func @transform_10(%arg0: i32, %arg1: i32) -> (i32, i32, i32) {
    %c0_i32 = arith.constant 0 : i32
    %c0_i32_0 = arith.constant 0 : i32
    %c0_i32_1 = arith.constant 0 : i32
    return %arg1, %c0_i32, %c0_i32_0 : i32, i32, i32
  }
  func.func @transform_11(%arg0: i32, %arg1: i32) -> (i32, i32, i32) {
    %c0_i32 = arith.constant 0 : i32
    %c0_i32_0 = arith.constant 0 : i32
    %c0_i32_1 = arith.constant 0 : i32
    return %arg1, %c0_i32, %c0_i32_0 : i32, i32, i32
  }
  func.func @transform_12(%arg0: i32, %arg1: i32) -> (i32, i32, i32) {
    %c0_i32 = arith.constant 0 : i32
    %c0_i32_0 = arith.constant 0 : i32
    %c0_i32_1 = arith.constant 0 : i32
    return %arg1, %c0_i32, %c0_i32_0 : i32, i32, i32
  }
  func.func @transform_13(%arg0: i32, %arg1: i32) -> (i32, i32, i32) {
    %c0_i32 = arith.constant 0 : i32
    %c0_i32_0 = arith.constant 0 : i32
    %c0_i32_1 = arith.constant 0 : i32
    return %arg1, %c0_i32, %c0_i32_0 : i32, i32, i32
  }
  func.func @transform_14(%arg0: i32, %arg1: i32) -> (i32, i32, i32) {
    %c0_i32 = arith.constant 0 : i32
    %c0_i32_0 = arith.constant 0 : i32
    %c0_i32_1 = arith.constant 0 : i32
    return %arg1, %c0_i32, %c0_i32_0 : i32, i32, i32
  }
  func.func @transform_15(%arg0: i32, %arg1: i32) -> (i32, i32, i32) {
    %c0_i32 = arith.constant 0 : i32
    %c0_i32_0 = arith.constant 0 : i32
    %c0_i32_1 = arith.constant 0 : i32
    return %arg1, %c0_i32, %c0_i32_0 : i32, i32, i32
  }
  func.func @transform_16(%arg0: i32, %arg1: i32) -> (i32, i32, i32) {
    %c0_i32 = arith.constant 0 : i32
    %c0_i32_0 = arith.constant 0 : i32
    %c0_i32_1 = arith.constant 0 : i32
    return %arg1, %c0_i32, %c0_i32_0 : i32, i32, i32
  }
  func.func @transform_17(%arg0: i32, %arg1: i32) -> (i32, i32, i32) {
    %c0_i32 = arith.constant 0 : i32
    %c0_i32_0 = arith.constant 0 : i32
    %c0_i32_1 = arith.constant 0 : i32
    return %arg1, %c0_i32, %c0_i32_0 : i32, i32, i32
  }
  func.func @transform_18(%arg0: i32, %arg1: i32) -> (i32, i32, i32) {
    %c0_i32 = arith.constant 0 : i32
    %c0_i32_0 = arith.constant 0 : i32
    %c0_i32_1 = arith.constant 0 : i32
    return %arg1, %c0_i32, %c0_i32_0 : i32, i32, i32
  }
  func.func @transform_19(%arg0: i32, %arg1: i32) -> (i32, i32, i32) {
    %c0_i32 = arith.constant 0 : i32
    %c0_i32_0 = arith.constant 0 : i32
    %c0_i32_1 = arith.constant 0 : i32
    return %arg1, %c0_i32, %c0_i32_0 : i32, i32, i32
  }
  func.func @transform_20(%arg0: i32, %arg1: i32) -> (i32, i32, i32) {
    %c0_i32 = arith.constant 0 : i32
    %c0_i32_0 = arith.constant 0 : i32
    %c0_i32_1 = arith.constant 0 : i32
    return %arg1, %c0_i32, %c0_i32_0 : i32, i32, i32
  }
  func.func @transform_21(%arg0: i32, %arg1: i32) -> (i32, i32) {
    %c0_i32 = arith.constant 0 : i32
    %c0_i32_0 = arith.constant 0 : i32
    %c0_i32_1 = arith.constant 0 : i32
    return %c0_i32, %c0_i32_0 : i32, i32
  }
  func.func @transform_22(%arg0: i32, %arg1: i32) -> (i32, i32) {
    %c0_i32 = arith.constant 0 : i32
    %c0_i32_0 = arith.constant 0 : i32
    %c0_i32_1 = arith.constant 0 : i32
    return %c0_i32, %c0_i32_0 : i32, i32
  }
  func.func @transform_23(%arg0: i32, %arg1: i32) -> (i32, i32) {
    %c0_i32 = arith.constant 0 : i32
    %c0_i32_0 = arith.constant 0 : i32
    %c0_i32_1 = arith.constant 0 : i32
    return %c0_i32, %c0_i32_0 : i32, i32
  }
  func.func @transform_24(%arg0: i32, %arg1: i32) -> (i32, i32) {
    %c0_i32 = arith.constant 0 : i32
    %c0_i32_0 = arith.constant 0 : i32
    %c0_i32_1 = arith.constant 0 : i32
    return %c0_i32, %c0_i32_0 : i32, i32
  }
  func.func @transform_25(%arg0: i32, %arg1: i32) -> (i32, i32) {
    %c0_i32 = arith.constant 0 : i32
    %c0_i32_0 = arith.constant 0 : i32
    %c0_i32_1 = arith.constant 0 : i32
    return %c0_i32, %c0_i32_0 : i32, i32
  }
  func.func @transform_26(%arg0: i32, %arg1: i32) -> (i32, i32) {
    %c0_i32 = arith.constant 0 : i32
    %c0_i32_0 = arith.constant 0 : i32
    %c0_i32_1 = arith.constant 0 : i32
    return %c0_i32, %c0_i32_0 : i32, i32
  }
  func.func @transform_27(%arg0: i32, %arg1: i32) -> (i32, i32) {
    %c0_i32 = arith.constant 0 : i32
    %c0_i32_0 = arith.constant 0 : i32
    %c0_i32_1 = arith.constant 0 : i32
    return %c0_i32, %c0_i32_0 : i32, i32
  }
  func.func @transform_28(%arg0: i32, %arg1: i32) -> (i32, i32) {
    %c0_i32 = arith.constant 0 : i32
    %c0_i32_0 = arith.constant 0 : i32
    %c0_i32_1 = arith.constant 0 : i32
    return %c0_i32, %c0_i32_0 : i32, i32
  }
  func.func @transform_29(%arg0: i32, %arg1: i32) -> (i32, i32) {
    %c0_i32 = arith.constant 0 : i32
    %c0_i32_0 = arith.constant 0 : i32
    %c0_i32_1 = arith.constant 0 : i32
    return %c0_i32, %c0_i32_0 : i32, i32
  }
  func.func @transform_30(%arg0: i32, %arg1: i32) -> (i32, i32, i32) {
    %c0_i32 = arith.constant 0 : i32
    %c0_i32_0 = arith.constant 0 : i32
    %c0_i32_1 = arith.constant 0 : i32
    return %arg0, %c0_i32, %c0_i32_0 : i32, i32, i32
  }
  func.func @transform_31(%arg0: i32, %arg1: i32) -> (i32, i32, i32, i32, i32) {
    %c0_i32 = arith.constant 0 : i32
    %c0_i32_0 = arith.constant 0 : i32
    %c0_i32_1 = arith.constant 0 : i32
    %c0_i32_2 = arith.constant 0 : i32
    return %arg0, %arg1, %c0_i32, %c0_i32_0, %c0_i32_1 : i32, i32, i32, i32, i32
  }
  func.func @transform_32(%arg0: i32, %arg1: i32) -> (i32, i32, i32) {
    %c0_i32 = arith.constant 0 : i32
    %c0_i32_0 = arith.constant 0 : i32
    %c0_i32_1 = arith.constant 0 : i32
    return %arg0, %c0_i32, %c0_i32_0 : i32, i32, i32
  }
}

</mosaic_0001>

<llo_original>
// kernel: tpu_custom_call.1
$region0: #{tpu_custom_call.1}
  #allocation0 [shape = 'u32[]', space=smem, size = 0x4, offset = 0x4, fixed_abs, tag = 'smem constant byte address 0x4 - core index']
  #allocation1 [shape = 'u32[72,128]{1,0:T(1,128)}', space=vmem, size = 0x9000, scoped, tag = 'internal scratch']
  #allocation2 [shape = 'f32[1,1]{1,0:T(1,128)S(1)}', space=vmem, size = 0x200, scoped, tag = 'scoped memory for tpu_custom_call.1']
  %s0 = inlined_call_operand.smem [shape: u32[33], index: -1, kind: input, shape index: {}]
  %s1 = sld [smem:[%s0]]
  %s2 = scalar_lea.smem %s0, 1
  %s3 = sld [smem:[%s2]]
  %s4 = scalar_lea.smem %s0, 2
  %s5 = sld [smem:[%s4]]
  %s6 = scalar_lea.smem %s0, 3
  %s7 = sld [smem:[%s6]]
  %s8 = scalar_lea.smem %s0, 4
  %s9 = sld [smem:[%s8]]
  %s10 = scalar_lea.smem %s0, 5
  %s11 = sld [smem:[%s10]]
  %s12 = scalar_lea.smem %s0, 6
  %s13 = sld [smem:[%s12]]
  %s14 = scalar_lea.smem %s0, 7
  %s15 = sld [smem:[%s14]]
  %s16 = scalar_lea.smem %s0, 8
  %s17 = sld [smem:[%s16]]
  %s18 = scalar_lea.smem %s0, 9
  %s19 = sld [smem:[%s18]]
  %s20 = scalar_lea.smem %s0, 10
  %s21 = sld [smem:[%s20]]
  %s22 = scalar_lea.smem %s0, 11
  %s23 = sld [smem:[%s22]]
  %s24 = scalar_lea.smem %s0, 12
  %s25 = sld [smem:[%s24]]
  %s26 = scalar_lea.smem %s0, 13
  %s27 = sld [smem:[%s26]]
  %s28 = scalar_lea.smem %s0, 14
  %s29 = sld [smem:[%s28]]
  %s30 = scalar_lea.smem %s0, 15
  %s31 = sld [smem:[%s30]]
  %s32 = scalar_lea.smem %s0, 16
  %s33 = sld [smem:[%s32]]
  %s34 = scalar_lea.smem %s0, 17
  %s35 = sld [smem:[%s34]]
  %s36 = scalar_lea.smem %s0, 18
  %s37 = sld [smem:[%s36]]
  %s38 = scalar_lea.smem %s0, 19
  %s39 = sld [smem:[%s38]]
  %s40 = scalar_lea.smem %s0, 20
  %s41 = sld [smem:[%s40]]
  %s42 = scalar_lea.smem %s0, 21
  %s43 = sld [smem:[%s42]]
  %s44 = scalar_lea.smem %s0, 22
  %s45 = sld [smem:[%s44]]
  %s46 = scalar_lea.smem %s0, 23
  %s47 = sld [smem:[%s46]]
  %s48 = scalar_lea.smem %s0, 24
  %s49 = sld [smem:[%s48]]
  %s50 = scalar_lea.smem %s0, 25
  %s51 = sld [smem:[%s50]]
  %s52 = scalar_lea.smem %s0, 26
  %s53 = sld [smem:[%s52]]
  %s54 = scalar_lea.smem %s0, 27
  %s55 = sld [smem:[%s54]]
  %s56 = scalar_lea.smem %s0, 28
  %s57 = sld [smem:[%s56]]
  %s58 = scalar_lea.smem %s0, 29
  %s59 = sld [smem:[%s58]]
  %s60 = scalar_lea.smem %s0, 30
  %s61 = sld [smem:[%s60]]
  %s62 = scalar_lea.smem %s0, 31
  %s63 = sld [smem:[%s62]]
  %s64 = scalar_lea.smem %s0, 32
  %s65 = sld [smem:[%s64]]
  %66 = xla_tuple %s61, %s63, %s65
  %s67 = sld [smem:[#allocation0]]
  $region193: #{tpu_custom_call.1} parent=0
    _
  %s69 = ssub.s32 1, %s67
  %s70 = scalar_select 0, %s69, %s67
  %v71 = vstv %s59
  %72 = vst [vmem:[#allocation2] sm:$0x1] %v71
  $region1: #{tpu_custom_call.1} parent=0
    #allocation3 [shape = 'u8[4096]{0}', space=vmem, size = 0x1000, scoped, tag = 'input window, operand 0']
    #allocation4 [shape = 's32[2]{0}', space=sflag, size = 0x8, scoped, tag = 'scoped memory for tpu_custom_call.1']
    #allocation5 [shape = 's32[2]{0}', space=sflag, size = 0x8, scoped, tag = 'scoped memory for tpu_custom_call.1']
    #allocation6 [shape = 'u8[4096]{0}', space=vmem, size = 0x1000, scoped, tag = 'input window, operand 2, single buffered']
    #allocation7 [shape = 's32[1]{0}', space=sflag, size = 0x4, scoped, tag = 'scoped memory for tpu_custom_call.1']
    #allocation8 [shape = 'u8[512]{0}', space=vmem, size = 0x400, scoped, tag = 'input window, operand 4, single buffered']
    #allocation9 [shape = 'u8[1024]{0}', space=vmem, size = 0x400, scoped, tag = 'input window, operand 18']
    #allocation10 [shape = 's32[2]{0}', space=sflag, size = 0x8, scoped, tag = 'scoped memory for tpu_custom_call.1']
    #allocation11 [shape = 'u8[8192]{0}', space=vmem, size = 0x2000, scoped, tag = 'output window, operand 0']
    #allocation12 [shape = 'u8[16384]{0}', space=vmem, size = 0x4000, scoped, tag = 'output window, operand 1']
    #allocation13 [shape = 's32[2]{0}', space=sflag, size = 0x8, scoped, tag = 'scoped memory for tpu_custom_call.1']
    #allocation14 [shape = 'u8[4096]{0}', space=vmem, size = 0x1000, scoped, tag = 'output window, operand 2']
    %73 = vsyncpa [#allocation4], 0
    %s74 = scalar_lea.sflag [#allocation4], 1
    %75 = vsyncpa %s74, 0
    %76 = vsyncpa [#allocation7], 0
    %77 = vsyncpa [#allocation10], 0
    %s78 = scalar_lea.sflag [#allocation10], 1
    %79 = vsyncpa %s78, 0
    %80 = vsyncpa [#allocation5], 0
    %s81 = scalar_lea.sflag [#allocation5], 1
    %82 = vsyncpa %s81, 0
    %83 = vsyncpa [#allocation13], 0
    %s84 = scalar_lea.sflag [#allocation13], 1
    %85 = vsyncpa %s84, 0
    loop: start=0, step=1, limit=6
    $region2: #{tpu_custom_call.1} parent=1 // loop_pre_header
      _
    $region3: #{tpu_custom_call.1} parent=1 // loop_header
      %s87 = sphi 0, %s91
      %p88 = scmp.ge.s32.totalorder %s87, 6
      %s94 = sphi 0, %s106
      %s95 = sphi 0, %s102
      %s96 = sphi 0, %s94
      %s97 = sphi 0, %s95
      %s98 = sphi 0, %s96
      %s99 = sphi 0, %s97
      %s109 = sphi 0, %s111
      %s112 = sphi 0, %s109
      %s113 = sphi 0, %s112
      %s129 = sphi 0, %s113
      %s135 = sphi 0, %s137
      %s138 = sphi 0, %s135
      %s139 = sphi 0, %s138
      %s155 = sphi 0, %s139
      %s159 = sphi 0, %s159
      %s161 = sphi 0, %s159
      %s162 = sphi 0, %s161
      %s176 = sphi 0, %s162
      %s180 = sphi 0, %s180
      %s182 = sphi 0, %s180
      %s183 = sphi 0, %s182
      %s197 = sphi 0, %s183
      %s201 = sphi 0, %s201
      %s203 = sphi 0, %s201
      %s204 = sphi 0, %s203
      %s218 = sphi 0, %s204
      %s224 = sphi 0, %s226
      %s227 = sphi 0, %s224
      %s228 = sphi 0, %s227
      %s244 = sphi 0, %s228
      %s250 = sphi 0, %s252
      %s253 = sphi 0, %s250
      %s254 = sphi 0, %s253
      %s270 = sphi 0, %s254
      %s276 = sphi 0, %s278
      %s279 = sphi 0, %s276
      %s280 = sphi 0, %s279
      %s296 = sphi 0, %s280
      %s302 = sphi 0, %s304
      %s305 = sphi 0, %s302
      %s306 = sphi 0, %s305
      %s322 = sphi 0, %s306
      %s328 = sphi 0, %s330
      %s331 = sphi 0, %s328
      %s332 = sphi 0, %s331
      %s348 = sphi 0, %s332
      %s354 = sphi 0, %s356
      %s357 = sphi 0, %s354
      %s358 = sphi 0, %s357
      %s374 = sphi 0, %s358
      %s380 = sphi 0, %s382
      %s383 = sphi 0, %s380
      %s384 = sphi 0, %s383
      %s400 = sphi 0, %s384
      %s406 = sphi 0, %s408
      %s409 = sphi 0, %s406
      %s410 = sphi 0, %s409
      %s426 = sphi 0, %s410
      %s432 = sphi 0, %s434
      %s435 = sphi 0, %s432
      %s436 = sphi 0, %s435
      %s452 = sphi 0, %s436
      %s458 = sphi 0, %s460
      %s461 = sphi 0, %s458
      %s462 = sphi 0, %s461
      %s478 = sphi 0, %s462
      %s484 = sphi 0, %s486
      %s487 = sphi 0, %s484
      %s488 = sphi 0, %s487
      %s504 = sphi 0, %s488
      %s510 = sphi 0, %s512
      %s513 = sphi 0, %s510
      %s514 = sphi 0, %s513
      %s530 = sphi 0, %s514
      %s536 = sphi 0, %s538
      %s539 = sphi 0, %s536
      %s540 = sphi 0, %s539
      %s556 = sphi 0, %s540
      %s562 = sphi 0, %s564
      %s565 = sphi 0, %s562
      %s566 = sphi 0, %s565
      %s582 = sphi 0, %s566
      %s588 = sphi 0, %s590
      %s591 = sphi 0, %s588
      %s592 = sphi 0, %s591
      %s608 = sphi 0, %s592
      %s614 = sphi 0, %s616
      %s617 = sphi 0, %s614
      %s618 = sphi 0, %s617
      %s634 = sphi 0, %s618
      %s638 = sphi 0, %s638
      %s640 = sphi 0, %s638
      %s641 = sphi 0, %s640
      %s655 = sphi 0, %s641
      %s659 = sphi 0, %s659
      %s661 = sphi 0, %s659
      %s662 = sphi 0, %s661
      %s676 = sphi 0, %s662
      %s680 = sphi 0, %s680
      %s682 = sphi 0, %s680
      %s683 = sphi 0, %s682
      %s697 = sphi 0, %s683
      %s701 = sphi 0, %s701
      %s703 = sphi 0, %s701
      %s704 = sphi 0, %s703
      %s718 = sphi 0, %s704
      %s722 = sphi 0, %s722
      %s724 = sphi 0, %s722
      %s725 = sphi 0, %s724
      %s739 = sphi 0, %s725
      %s743 = sphi 0, %s743
      %s745 = sphi 0, %s743
      %s746 = sphi 0, %s745
      %s760 = sphi 0, %s746
      %s764 = sphi 0, %s764
      %s766 = sphi 0, %s764
      %s767 = sphi 0, %s766
      %s781 = sphi 0, %s767
      %s785 = sphi 0, %s785
      %s787 = sphi 0, %s785
      %s788 = sphi 0, %s787
      %s802 = sphi 0, %s788
      %s806 = sphi 0, %s806
      %s808 = sphi 0, %s806
      %s809 = sphi 0, %s808
      %s823 = sphi 0, %s809
      %s829 = sphi 0, %s831
      %s832 = sphi 0, %s829
      %s833 = sphi 0, %s832
      %s849 = sphi 0, %s833
      %s857 = sphi 0, %s859
      %s860 = sphi 0, %s857
      %s861 = sphi 0, %s860
      %s877 = sphi 0, %s861
      %s883 = sphi 0, %s885
      %s886 = sphi 0, %s883
      %s887 = sphi 0, %s886
      %s903 = sphi 0, %s887
    $region4: #{tpu_custom_call.1} parent=1 // loop_header_branch
      %90 = sbr.rel (%p88) target = $region8
    $region5: #{tpu_custom_call.1} parent=1 // loop_body
      %s92 = ssub.s32 %s87, 1
      %s93 = ssub.s32 %s87, 2
      %s100 = sadd.s32 1, %s95
      %p101 = scmp.ge.s32.totalorder %s100, 2
      %s102 = scalar_select %p101, 0, %s100
      %s103 = sadd.s32 1, %s94
      %s104 = scalar_select %p101, %s103, %s94
      %p105 = scmp.ge.s32.totalorder %s104, 2
      %s106 = scalar_select %p105, 0, %s104
      %s107 = ssub.s32 %s94, %s106
      %p108 = scmp.eq.s32.totalorder %s107, 0
      %s110 = sadd.s32 %s109, 1
      %s111 = scalar_select %p108, %s109, %s110
      %p114 = pneg %p108
      %p115 = scmp.eq.s32.totalorder %s87, 3
      %p116 = por %p114, %p115
      %p117 = scmp.ne.s32.totalorder %s109, %s112
      %p118 = scmp.eq.s32.totalorder %s87, 0
      %p119 = por %p117, %p118
      %p120 = scmp.ne.s32.totalorder %s109, %s112
      %p121 = scmp.eq.s32.totalorder %s92, 3
      %p122 = por %p120, %p121
      %p123 = scmp.ne.s32.totalorder %s112, %s113
      %p124 = scmp.eq.s32.totalorder %s92, 0
      %p125 = por %p123, %p124
      %p126 = scmp.ne.s32.totalorder %s112, %s113
      %p127 = scmp.eq.s32.totalorder %s93, 3
      %p128 = por %p126, %p127
      %p130 = scmp.ne.s32.totalorder %s113, %s129
      %p131 = scmp.eq.s32.totalorder %s93, 0
      %p132 = por %p130, %p131
      %s133 = ssub.s32 %s94, %s106
      %p134 = scmp.eq.s32.totalorder %s133, 0
      %s136 = sadd.s32 %s135, 1
      %s137 = scalar_select %p134, %s135, %s136
      %p140 = pneg %p134
      %p141 = scmp.eq.s32.totalorder %s87, 3
      %p142 = por %p140, %p141
      %p143 = scmp.ne.s32.totalorder %s135, %s138
      %p144 = scmp.eq.s32.totalorder %s87, 0
      %p145 = por %p143, %p144
      %p146 = scmp.ne.s32.totalorder %s135, %s138
      %p147 = scmp.eq.s32.totalorder %s92, 3
      %p148 = por %p146, %p147
      %p149 = scmp.ne.s32.totalorder %s138, %s139
      %p150 = scmp.eq.s32.totalorder %s92, 0
      %p151 = por %p149, %p150
      %p152 = scmp.ne.s32.totalorder %s138, %s139
      %p153 = scmp.eq.s32.totalorder %s93, 3
      %p154 = por %p152, %p153
      %p156 = scmp.ne.s32.totalorder %s139, %s155
      %p157 = scmp.eq.s32.totalorder %s93, 0
      %p158 = por %p156, %p157
      %s160 = sadd.s32 %s159, 1
      %p163 = scmp.eq.s32.totalorder %s87, 3
      %p164 = scmp.ne.s32.totalorder %s159, %s161
      %p165 = scmp.eq.s32.totalorder %s87, 0
      %p166 = por %p164, %p165
      %p167 = scmp.ne.s32.totalorder %s159, %s161
      %p168 = scmp.eq.s32.totalorder %s92, 3
      %p169 = por %p167, %p168
      %p170 = scmp.ne.s32.totalorder %s161, %s162
      %p171 = scmp.eq.s32.totalorder %s92, 0
      %p172 = por %p170, %p171
      %p173 = scmp.ne.s32.totalorder %s161, %s162
      %p174 = scmp.eq.s32.totalorder %s93, 3
      %p175 = por %p173, %p174
      %p177 = scmp.ne.s32.totalorder %s162, %s176
      %p178 = scmp.eq.s32.totalorder %s93, 0
      %p179 = por %p177, %p178
      %s181 = sadd.s32 %s180, 1
      %p184 = scmp.eq.s32.totalorder %s87, 3
      %p185 = scmp.ne.s32.totalorder %s180, %s182
      %p186 = scmp.eq.s32.totalorder %s87, 0
      %p187 = por %p185, %p186
      %p188 = scmp.ne.s32.totalorder %s180, %s182
      %p189 = scmp.eq.s32.totalorder %s92, 3
      %p190 = por %p188, %p189
      %p191 = scmp.ne.s32.totalorder %s182, %s183
      %p192 = scmp.eq.s32.totalorder %s92, 0
      %p193 = por %p191, %p192
      %p194 = scmp.ne.s32.totalorder %s182, %s183
      %p195 = scmp.eq.s32.totalorder %s93, 3
      %p196 = por %p194, %p195
      %p198 = scmp.ne.s32.totalorder %s183, %s197
      %p199 = scmp.eq.s32.totalorder %s93, 0
      %p200 = por %p198, %p199
      %s202 = sadd.s32 %s201, 1
      %p205 = scmp.eq.s32.totalorder %s87, 3
      %p206 = scmp.ne.s32.totalorder %s201, %s203
      %p207 = scmp.eq.s32.totalorder %s87, 0
      %p208 = por %p206, %p207
      %p209 = scmp.ne.s32.totalorder %s201, %s203
      %p210 = scmp.eq.s32.totalorder %s92, 3
      %p211 = por %p209, %p210
      %p212 = scmp.ne.s32.totalorder %s203, %s204
      %p213 = scmp.eq.s32.totalorder %s92, 0
      %p214 = por %p212, %p213
      %p215 = scmp.ne.s32.totalorder %s203, %s204
      %p216 = scmp.eq.s32.totalorder %s93, 3
      %p217 = por %p215, %p216
      %p219 = scmp.ne.s32.totalorder %s204, %s218
      %p220 = scmp.eq.s32.totalorder %s93, 0
      %p221 = por %p219, %p220
      %s222 = ssub.s32 %s95, %s102
      %p223 = scmp.eq.s32.totalorder %s222, 0
      %s225 = sadd.s32 %s224, 1
      %s226 = scalar_select %p223, %s224, %s225
      %p229 = pneg %p223
      %p230 = scmp.eq.s32.totalorder %s87, 3
      %p231 = por %p229, %p230
      %p232 = scmp.ne.s32.totalorder %s224, %s227
      %p233 = scmp.eq.s32.totalorder %s87, 0
      %p234 = por %p232, %p233
      %p235 = scmp.ne.s32.totalorder %s224, %s227
      %p236 = scmp.eq.s32.totalorder %s92, 3
      %p237 = por %p235, %p236
      %p238 = scmp.ne.s32.totalorder %s227, %s228
      %p239 = scmp.eq.s32.totalorder %s92, 0
      %p240 = por %p238, %p239
      %p241 = scmp.ne.s32.totalorder %s227, %s228
      %p242 = scmp.eq.s32.totalorder %s93, 3
      %p243 = por %p241, %p242
      %p245 = scmp.ne.s32.totalorder %s228, %s244
      %p246 = scmp.eq.s32.totalorder %s93, 0
      %p247 = por %p245, %p246
      %s248 = ssub.s32 %s95, %s102
      %p249 = scmp.eq.s32.totalorder %s248, 0
      %s251 = sadd.s32 %s250, 1
      %s252 = scalar_select %p249, %s250, %s251
      %p255 = pneg %p249
      %p256 = scmp.eq.s32.totalorder %s87, 3
      %p257 = por %p255, %p256
      %p258 = scmp.ne.s32.totalorder %s250, %s253
      %p259 = scmp.eq.s32.totalorder %s87, 0
      %p260 = por %p258, %p259
      %p261 = scmp.ne.s32.totalorder %s250, %s253
      %p262 = scmp.eq.s32.totalorder %s92, 3
      %p263 = por %p261, %p262
      %p264 = scmp.ne.s32.totalorder %s253, %s254
      %p265 = scmp.eq.s32.totalorder %s92, 0
      %p266 = por %p264, %p265
      %p267 = scmp.ne.s32.totalorder %s253, %s254
      %p268 = scmp.eq.s32.totalorder %s93, 3
      %p269 = por %p267, %p268
      %p271 = scmp.ne.s32.totalorder %s254, %s270
      %p272 = scmp.eq.s32.totalorder %s93, 0
      %p273 = por %p271, %p272
      %s274 = ssub.s32 %s95, %s102
      %p275 = scmp.eq.s32.totalorder %s274, 0
      %s277 = sadd.s32 %s276, 1
      %s278 = scalar_select %p275, %s276, %s277
      %p281 = pneg %p275
      %p282 = scmp.eq.s32.totalorder %s87, 3
      %p283 = por %p281, %p282
      %p284 = scmp.ne.s32.totalorder %s276, %s279
      %p285 = scmp.eq.s32.totalorder %s87, 0
      %p286 = por %p284, %p285
      %p287 = scmp.ne.s32.totalorder %s276, %s279
      %p288 = scmp.eq.s32.totalorder %s92, 3
      %p289 = por %p287, %p288
      %p290 = scmp.ne.s32.totalorder %s279, %s280
      %p291 = scmp.eq.s32.totalorder %s92, 0
      %p292 = por %p290, %p291
      %p293 = scmp.ne.s32.totalorder %s279, %s280
      %p294 = scmp.eq.s32.totalorder %s93, 3
      %p295 = por %p293, %p294
      %p297 = scmp.ne.s32.totalorder %s280, %s296
      %p298 = scmp.eq.s32.totalorder %s93, 0
      %p299 = por %p297, %p298
      %s300 = ssub.s32 %s95, %s102
      %p301 = scmp.eq.s32.totalorder %s300, 0
      %s303 = sadd.s32 %s302, 1
      %s304 = scalar_select %p301, %s302, %s303
      %p307 = pneg %p301
      %p308 = scmp.eq.s32.totalorder %s87, 3
      %p309 = por %p307, %p308
      %p310 = scmp.ne.s32.totalorder %s302, %s305
      %p311 = scmp.eq.s32.totalorder %s87, 0
      %p312 = por %p310, %p311
      %p313 = scmp.ne.s32.totalorder %s302, %s305
      %p314 = scmp.eq.s32.totalorder %s92, 3
      %p315 = por %p313, %p314
      %p316 = scmp.ne.s32.totalorder %s305, %s306
      %p317 = scmp.eq.s32.totalorder %s92, 0
      %p318 = por %p316, %p317
      %p319 = scmp.ne.s32.totalorder %s305, %s306
      %p320 = scmp.eq.s32.totalorder %s93, 3
      %p321 = por %p319, %p320
      %p323 = scmp.ne.s32.totalorder %s306, %s322
      %p324 = scmp.eq.s32.totalorder %s93, 0
      %p325 = por %p323, %p324
      %s326 = ssub.s32 %s95, %s102
      %p327 = scmp.eq.s32.totalorder %s326, 0
      %s329 = sadd.s32 %s328, 1
      %s330 = scalar_select %p327, %s328, %s329
      %p333 = pneg %p327
      %p334 = scmp.eq.s32.totalorder %s87, 3
      %p335 = por %p333, %p334
      %p336 = scmp.ne.s32.totalorder %s328, %s331
      %p337 = scmp.eq.s32.totalorder %s87, 0
      %p338 = por %p336, %p337
      %p339 = scmp.ne.s32.totalorder %s328, %s331
      %p340 = scmp.eq.s32.totalorder %s92, 3
      %p341 = por %p339, %p340
      %p342 = scmp.ne.s32.totalorder %s331, %s332
      %p343 = scmp.eq.s32.totalorder %s92, 0
      %p344 = por %p342, %p343
      %p345 = scmp.ne.s32.totalorder %s331, %s332
      %p346 = scmp.eq.s32.totalorder %s93, 3
      %p347 = por %p345, %p346
      %p349 = scmp.ne.s32.totalorder %s332, %s348
      %p350 = scmp.eq.s32.totalorder %s93, 0
      %p351 = por %p349, %p350
      %s352 = ssub.s32 %s95, %s102
      %p353 = scmp.eq.s32.totalorder %s352, 0
      %s355 = sadd.s32 %s354, 1
      %s356 = scalar_select %p353, %s354, %s355
      %p359 = pneg %p353
      %p360 = scmp.eq.s32.totalorder %s87, 3
      %p361 = por %p359, %p360
      %p362 = scmp.ne.s32.totalorder %s354, %s357
      %p363 = scmp.eq.s32.totalorder %s87, 0
      %p364 = por %p362, %p363
      %p365 = scmp.ne.s32.totalorder %s354, %s357
      %p366 = scmp.eq.s32.totalorder %s92, 3
      %p367 = por %p365, %p366
      %p368 = scmp.ne.s32.totalorder %s357, %s358
      %p369 = scmp.eq.s32.totalorder %s92, 0
      %p370 = por %p368, %p369
      %p371 = scmp.ne.s32.totalorder %s357, %s358
      %p372 = scmp.eq.s32.totalorder %s93, 3
      %p373 = por %p371, %p372
      %p375 = scmp.ne.s32.totalorder %s358, %s374
      %p376 = scmp.eq.s32.totalorder %s93, 0
      %p377 = por %p375, %p376
      %s378 = ssub.s32 %s95, %s102
      %p379 = scmp.eq.s32.totalorder %s378, 0
      %s381 = sadd.s32 %s380, 1
      %s382 = scalar_select %p379, %s380, %s381
      %p385 = pneg %p379
      %p386 = scmp.eq.s32.totalorder %s87, 3
      %p387 = por %p385, %p386
      %p388 = scmp.ne.s32.totalorder %s380, %s383
      %p389 = scmp.eq.s32.totalorder %s87, 0
      %p390 = por %p388, %p389
      %p391 = scmp.ne.s32.totalorder %s380, %s383
      %p392 = scmp.eq.s32.totalorder %s92, 3
      %p393 = por %p391, %p392
      %p394 = scmp.ne.s32.totalorder %s383, %s384
      %p395 = scmp.eq.s32.totalorder %s92, 0
      %p396 = por %p394, %p395
      %p397 = scmp.ne.s32.totalorder %s383, %s384
      %p398 = scmp.eq.s32.totalorder %s93, 3
      %p399 = por %p397, %p398
      %p401 = scmp.ne.s32.totalorder %s384, %s400
      %p402 = scmp.eq.s32.totalorder %s93, 0
      %p403 = por %p401, %p402
      %s404 = ssub.s32 %s95, %s102
      %p405 = scmp.eq.s32.totalorder %s404, 0
      %s407 = sadd.s32 %s406, 1
      %s408 = scalar_select %p405, %s406, %s407
      %p411 = pneg %p405
      %p412 = scmp.eq.s32.totalorder %s87, 3
      %p413 = por %p411, %p412
      %p414 = scmp.ne.s32.totalorder %s406, %s409
      %p415 = scmp.eq.s32.totalorder %s87, 0
      %p416 = por %p414, %p415
      %p417 = scmp.ne.s32.totalorder %s406, %s409
      %p418 = scmp.eq.s32.totalorder %s92, 3
      %p419 = por %p417, %p418
      %p420 = scmp.ne.s32.totalorder %s409, %s410
      %p421 = scmp.eq.s32.totalorder %s92, 0
      %p422 = por %p420, %p421
      %p423 = scmp.ne.s32.totalorder %s409, %s410
      %p424 = scmp.eq.s32.totalorder %s93, 3
      %p425 = por %p423, %p424
      %p427 = scmp.ne.s32.totalorder %s410, %s426
      %p428 = scmp.eq.s32.totalorder %s93, 0
      %p429 = por %p427, %p428
      %s430 = ssub.s32 %s95, %s102
      %p431 = scmp.eq.s32.totalorder %s430, 0
      %s433 = sadd.s32 %s432, 1
      %s434 = scalar_select %p431, %s432, %s433
      %p437 = pneg %p431
      %p438 = scmp.eq.s32.totalorder %s87, 3
      %p439 = por %p437, %p438
      %p440 = scmp.ne.s32.totalorder %s432, %s435
      %p441 = scmp.eq.s32.totalorder %s87, 0
      %p442 = por %p440, %p441
      %p443 = scmp.ne.s32.totalorder %s432, %s435
      %p444 = scmp.eq.s32.totalorder %s92, 3
      %p445 = por %p443, %p444
      %p446 = scmp.ne.s32.totalorder %s435, %s436
      %p447 = scmp.eq.s32.totalorder %s92, 0
      %p448 = por %p446, %p447
      %p449 = scmp.ne.s32.totalorder %s435, %s436
      %p450 = scmp.eq.s32.totalorder %s93, 3
      %p451 = por %p449, %p450
      %p453 = scmp.ne.s32.totalorder %s436, %s452
      %p454 = scmp.eq.s32.totalorder %s93, 0
      %p455 = por %p453, %p454
      %s456 = ssub.s32 %s95, %s102
      %p457 = scmp.eq.s32.totalorder %s456, 0
      %s459 = sadd.s32 %s458, 1
      %s460 = scalar_select %p457, %s458, %s459
      %p463 = pneg %p457
      %p464 = scmp.eq.s32.totalorder %s87, 3
      %p465 = por %p463, %p464
      %p466 = scmp.ne.s32.totalorder %s458, %s461
      %p467 = scmp.eq.s32.totalorder %s87, 0
      %p468 = por %p466, %p467
      %p469 = scmp.ne.s32.totalorder %s458, %s461
      %p470 = scmp.eq.s32.totalorder %s92, 3
      %p471 = por %p469, %p470
      %p472 = scmp.ne.s32.totalorder %s461, %s462
      %p473 = scmp.eq.s32.totalorder %s92, 0
      %p474 = por %p472, %p473
      %p475 = scmp.ne.s32.totalorder %s461, %s462
      %p476 = scmp.eq.s32.totalorder %s93, 3
      %p477 = por %p475, %p476
      %p479 = scmp.ne.s32.totalorder %s462, %s478
      %p480 = scmp.eq.s32.totalorder %s93, 0
      %p481 = por %p479, %p480
      %s482 = ssub.s32 %s95, %s102
      %p483 = scmp.eq.s32.totalorder %s482, 0
      %s485 = sadd.s32 %s484, 1
      %s486 = scalar_select %p483, %s484, %s485
      %p489 = pneg %p483
      %p490 = scmp.eq.s32.totalorder %s87, 3
      %p491 = por %p489, %p490
      %p492 = scmp.ne.s32.totalorder %s484, %s487
      %p493 = scmp.eq.s32.totalorder %s87, 0
      %p494 = por %p492, %p493
      %p495 = scmp.ne.s32.totalorder %s484, %s487
      %p496 = scmp.eq.s32.totalorder %s92, 3
      %p497 = por %p495, %p496
      %p498 = scmp.ne.s32.totalorder %s487, %s488
      %p499 = scmp.eq.s32.totalorder %s92, 0
      %p500 = por %p498, %p499
      %p501 = scmp.ne.s32.totalorder %s487, %s488
      %p502 = scmp.eq.s32.totalorder %s93, 3
      %p503 = por %p501, %p502
      %p505 = scmp.ne.s32.totalorder %s488, %s504
      %p506 = scmp.eq.s32.totalorder %s93, 0
      %p507 = por %p505, %p506
      %s508 = ssub.s32 %s95, %s102
      %p509 = scmp.eq.s32.totalorder %s508, 0
      %s511 = sadd.s32 %s510, 1
      %s512 = scalar_select %p509, %s510, %s511
      %p515 = pneg %p509
      %p516 = scmp.eq.s32.totalorder %s87, 3
      %p517 = por %p515, %p516
      %p518 = scmp.ne.s32.totalorder %s510, %s513
      %p519 = scmp.eq.s32.totalorder %s87, 0
      %p520 = por %p518, %p519
      %p521 = scmp.ne.s32.totalorder %s510, %s513
      %p522 = scmp.eq.s32.totalorder %s92, 3
      %p523 = por %p521, %p522
      %p524 = scmp.ne.s32.totalorder %s513, %s514
      %p525 = scmp.eq.s32.totalorder %s92, 0
      %p526 = por %p524, %p525
      %p527 = scmp.ne.s32.totalorder %s513, %s514
      %p528 = scmp.eq.s32.totalorder %s93, 3
      %p529 = por %p527, %p528
      %p531 = scmp.ne.s32.totalorder %s514, %s530
      %p532 = scmp.eq.s32.totalorder %s93, 0
      %p533 = por %p531, %p532
      %s534 = ssub.s32 %s95, %s102
      %p535 = scmp.eq.s32.totalorder %s534, 0
      %s537 = sadd.s32 %s536, 1
      %s538 = scalar_select %p535, %s536, %s537
      %p541 = pneg %p535
      %p542 = scmp.eq.s32.totalorder %s87, 3
      %p543 = por %p541, %p542
      %p544 = scmp.ne.s32.totalorder %s536, %s539
      %p545 = scmp.eq.s32.totalorder %s87, 0
      %p546 = por %p544, %p545
      %p547 = scmp.ne.s32.totalorder %s536, %s539
      %p548 = scmp.eq.s32.totalorder %s92, 3
      %p549 = por %p547, %p548
      %p550 = scmp.ne.s32.totalorder %s539, %s540
      %p551 = scmp.eq.s32.totalorder %s92, 0
      %p552 = por %p550, %p551
      %p553 = scmp.ne.s32.totalorder %s539, %s540
      %p554 = scmp.eq.s32.totalorder %s93, 3
      %p555 = por %p553, %p554
      %p557 = scmp.ne.s32.totalorder %s540, %s556
      %p558 = scmp.eq.s32.totalorder %s93, 0
      %p559 = por %p557, %p558
      %s560 = ssub.s32 %s95, %s102
      %p561 = scmp.eq.s32.totalorder %s560, 0
      %s563 = sadd.s32 %s562, 1
      %s564 = scalar_select %p561, %s562, %s563
      %p567 = pneg %p561
      %p568 = scmp.eq.s32.totalorder %s87, 3
      %p569 = por %p567, %p568
      %p570 = scmp.ne.s32.totalorder %s562, %s565
      %p571 = scmp.eq.s32.totalorder %s87, 0
      %p572 = por %p570, %p571
      %p573 = scmp.ne.s32.totalorder %s562, %s565
      %p574 = scmp.eq.s32.totalorder %s92, 3
      %p575 = por %p573, %p574
      %p576 = scmp.ne.s32.totalorder %s565, %s566
      %p577 = scmp.eq.s32.totalorder %s92, 0
      %p578 = por %p576, %p577
      %p579 = scmp.ne.s32.totalorder %s565, %s566
      %p580 = scmp.eq.s32.totalorder %s93, 3
      %p581 = por %p579, %p580
      %p583 = scmp.ne.s32.totalorder %s566, %s582
      %p584 = scmp.eq.s32.totalorder %s93, 0
      %p585 = por %p583, %p584
      %s586 = ssub.s32 %s95, %s102
      %p587 = scmp.eq.s32.totalorder %s586, 0
      %s589 = sadd.s32 %s588, 1
      %s590 = scalar_select %p587, %s588, %s589
      %p593 = pneg %p587
      %p594 = scmp.eq.s32.totalorder %s87, 3
      %p595 = por %p593, %p594
      %p596 = scmp.ne.s32.totalorder %s588, %s591
      %p597 = scmp.eq.s32.totalorder %s87, 0
      %p598 = por %p596, %p597
      %p599 = scmp.ne.s32.totalorder %s588, %s591
      %p600 = scmp.eq.s32.totalorder %s92, 3
      %p601 = por %p599, %p600
      %p602 = scmp.ne.s32.totalorder %s591, %s592
      %p603 = scmp.eq.s32.totalorder %s92, 0
      %p604 = por %p602, %p603
      %p605 = scmp.ne.s32.totalorder %s591, %s592
      %p606 = scmp.eq.s32.totalorder %s93, 3
      %p607 = por %p605, %p606
      %p609 = scmp.ne.s32.totalorder %s592, %s608
      %p610 = scmp.eq.s32.totalorder %s93, 0
      %p611 = por %p609, %p610
      %s612 = ssub.s32 %s95, %s102
      %p613 = scmp.eq.s32.totalorder %s612, 0
      %s615 = sadd.s32 %s614, 1
      %s616 = scalar_select %p613, %s614, %s615
      %p619 = pneg %p613
      %p620 = scmp.eq.s32.totalorder %s87, 3
      %p621 = por %p619, %p620
      %p622 = scmp.ne.s32.totalorder %s614, %s617
      %p623 = scmp.eq.s32.totalorder %s87, 0
      %p624 = por %p622, %p623
      %p625 = scmp.ne.s32.totalorder %s614, %s617
      %p626 = scmp.eq.s32.totalorder %s92, 3
      %p627 = por %p625, %p626
      %p628 = scmp.ne.s32.totalorder %s617, %s618
      %p629 = scmp.eq.s32.totalorder %s92, 0
      %p630 = por %p628, %p629
      %p631 = scmp.ne.s32.totalorder %s617, %s618
      %p632 = scmp.eq.s32.totalorder %s93, 3
      %p633 = por %p631, %p632
      %p635 = scmp.ne.s32.totalorder %s618, %s634
      %p636 = scmp.eq.s32.totalorder %s93, 0
      %p637 = por %p635, %p636
      %s639 = sadd.s32 %s638, 1
      %p642 = scmp.eq.s32.totalorder %s87, 3
      %p643 = scmp.ne.s32.totalorder %s638, %s640
      %p644 = scmp.eq.s32.totalorder %s87, 0
      %p645 = por %p643, %p644
      %p646 = scmp.ne.s32.totalorder %s638, %s640
      %p647 = scmp.eq.s32.totalorder %s92, 3
      %p648 = por %p646, %p647
      %p649 = scmp.ne.s32.totalorder %s640, %s641
      %p650 = scmp.eq.s32.totalorder %s92, 0
      %p651 = por %p649, %p650
      %p652 = scmp.ne.s32.totalorder %s640, %s641
      %p653 = scmp.eq.s32.totalorder %s93, 3
      %p654 = por %p652, %p653
      %p656 = scmp.ne.s32.totalorder %s641, %s655
      %p657 = scmp.eq.s32.totalorder %s93, 0
      %p658 = por %p656, %p657
      %s660 = sadd.s32 %s659, 1
      %p663 = scmp.eq.s32.totalorder %s87, 3
      %p664 = scmp.ne.s32.totalorder %s659, %s661
      %p665 = scmp.eq.s32.totalorder %s87, 0
      %p666 = por %p664, %p665
      %p667 = scmp.ne.s32.totalorder %s659, %s661
      %p668 = scmp.eq.s32.totalorder %s92, 3
      %p669 = por %p667, %p668
      %p670 = scmp.ne.s32.totalorder %s661, %s662
      %p671 = scmp.eq.s32.totalorder %s92, 0
      %p672 = por %p670, %p671
      %p673 = scmp.ne.s32.totalorder %s661, %s662
      %p674 = scmp.eq.s32.totalorder %s93, 3
      %p675 = por %p673, %p674
      %p677 = scmp.ne.s32.totalorder %s662, %s676
      %p678 = scmp.eq.s32.totalorder %s93, 0
      %p679 = por %p677, %p678
      %s681 = sadd.s32 %s680, 1
      %p684 = scmp.eq.s32.totalorder %s87, 3
      %p685 = scmp.ne.s32.totalorder %s680, %s682
      %p686 = scmp.eq.s32.totalorder %s87, 0
      %p687 = por %p685, %p686
      %p688 = scmp.ne.s32.totalorder %s680, %s682
      %p689 = scmp.eq.s32.totalorder %s92, 3
      %p690 = por %p688, %p689
      %p691 = scmp.ne.s32.totalorder %s682, %s683
      %p692 = scmp.eq.s32.totalorder %s92, 0
      %p693 = por %p691, %p692
      %p694 = scmp.ne.s32.totalorder %s682, %s683
      %p695 = scmp.eq.s32.totalorder %s93, 3
      %p696 = por %p694, %p695
      %p698 = scmp.ne.s32.totalorder %s683, %s697
      %p699 = scmp.eq.s32.totalorder %s93, 0
      %p700 = por %p698, %p699
      %s702 = sadd.s32 %s701, 1
      %p705 = scmp.eq.s32.totalorder %s87, 3
      %p706 = scmp.ne.s32.totalorder %s701, %s703
      %p707 = scmp.eq.s32.totalorder %s87, 0
      %p708 = por %p706, %p707
      %p709 = scmp.ne.s32.totalorder %s701, %s703
      %p710 = scmp.eq.s32.totalorder %s92, 3
      %p711 = por %p709, %p710
      %p712 = scmp.ne.s32.totalorder %s703, %s704
      %p713 = scmp.eq.s32.totalorder %s92, 0
      %p714 = por %p712, %p713
      %p715 = scmp.ne.s32.totalorder %s703, %s704
      %p716 = scmp.eq.s32.totalorder %s93, 3
      %p717 = por %p715, %p716
      %p719 = scmp.ne.s32.totalorder %s704, %s718
      %p720 = scmp.eq.s32.totalorder %s93, 0
      %p721 = por %p719, %p720
      %s723 = sadd.s32 %s722, 1
      %p726 = scmp.eq.s32.totalorder %s87, 3
      %p727 = scmp.ne.s32.totalorder %s722, %s724
      %p728 = scmp.eq.s32.totalorder %s87, 0
      %p729 = por %p727, %p728
      %p730 = scmp.ne.s32.totalorder %s722, %s724
      %p731 = scmp.eq.s32.totalorder %s92, 3
      %p732 = por %p730, %p731
      %p733 = scmp.ne.s32.totalorder %s724, %s725
      %p734 = scmp.eq.s32.totalorder %s92, 0
      %p735 = por %p733, %p734
      %p736 = scmp.ne.s32.totalorder %s724, %s725
      %p737 = scmp.eq.s32.totalorder %s93, 3
      %p738 = por %p736, %p737
      %p740 = scmp.ne.s32.totalorder %s725, %s739
      %p741 = scmp.eq.s32.totalorder %s93, 0
      %p742 = por %p740, %p741
      %s744 = sadd.s32 %s743, 1
      %p747 = scmp.eq.s32.totalorder %s87, 3
      %p748 = scmp.ne.s32.totalorder %s743, %s745
      %p749 = scmp.eq.s32.totalorder %s87, 0
      %p750 = por %p748, %p749
      %p751 = scmp.ne.s32.totalorder %s743, %s745
      %p752 = scmp.eq.s32.totalorder %s92, 3
      %p753 = por %p751, %p752
      %p754 = scmp.ne.s32.totalorder %s745, %s746
      %p755 = scmp.eq.s32.totalorder %s92, 0
      %p756 = por %p754, %p755
      %p757 = scmp.ne.s32.totalorder %s745, %s746
      %p758 = scmp.eq.s32.totalorder %s93, 3
      %p759 = por %p757, %p758
      %p761 = scmp.ne.s32.totalorder %s746, %s760
      %p762 = scmp.eq.s32.totalorder %s93, 0
      %p763 = por %p761, %p762
      %s765 = sadd.s32 %s764, 1
      %p768 = scmp.eq.s32.totalorder %s87, 3
      %p769 = scmp.ne.s32.totalorder %s764, %s766
      %p770 = scmp.eq.s32.totalorder %s87, 0
      %p771 = por %p769, %p770
      %p772 = scmp.ne.s32.totalorder %s764, %s766
      %p773 = scmp.eq.s32.totalorder %s92, 3
      %p774 = por %p772, %p773
      %p775 = scmp.ne.s32.totalorder %s766, %s767
      %p776 = scmp.eq.s32.totalorder %s92, 0
      %p777 = por %p775, %p776
      %p778 = scmp.ne.s32.totalorder %s766, %s767
      %p779 = scmp.eq.s32.totalorder %s93, 3
      %p780 = por %p778, %p779
      %p782 = scmp.ne.s32.totalorder %s767, %s781
      %p783 = scmp.eq.s32.totalorder %s93, 0
      %p784 = por %p782, %p783
      %s786 = sadd.s32 %s785, 1
      %p789 = scmp.eq.s32.totalorder %s87, 3
      %p790 = scmp.ne.s32.totalorder %s785, %s787
      %p791 = scmp.eq.s32.totalorder %s87, 0
      %p792 = por %p790, %p791
      %p793 = scmp.ne.s32.totalorder %s785, %s787
      %p794 = scmp.eq.s32.totalorder %s92, 3
      %p795 = por %p793, %p794
      %p796 = scmp.ne.s32.totalorder %s787, %s788
      %p797 = scmp.eq.s32.totalorder %s92, 0
      %p798 = por %p796, %p797
      %p799 = scmp.ne.s32.totalorder %s787, %s788
      %p800 = scmp.eq.s32.totalorder %s93, 3
      %p801 = por %p799, %p800
      %p803 = scmp.ne.s32.totalorder %s788, %s802
      %p804 = scmp.eq.s32.totalorder %s93, 0
      %p805 = por %p803, %p804
      %s807 = sadd.s32 %s806, 1
      %p810 = scmp.eq.s32.totalorder %s87, 3
      %p811 = scmp.ne.s32.totalorder %s806, %s808
      %p812 = scmp.eq.s32.totalorder %s87, 0
      %p813 = por %p811, %p812
      %p814 = scmp.ne.s32.totalorder %s806, %s808
      %p815 = scmp.eq.s32.totalorder %s92, 3
      %p816 = por %p814, %p815
      %p817 = scmp.ne.s32.totalorder %s808, %s809
      %p818 = scmp.eq.s32.totalorder %s92, 0
      %p819 = por %p817, %p818
      %p820 = scmp.ne.s32.totalorder %s808, %s809
      %p821 = scmp.eq.s32.totalorder %s93, 3
      %p822 = por %p820, %p821
      %p824 = scmp.ne.s32.totalorder %s809, %s823
      %p825 = scmp.eq.s32.totalorder %s93, 0
      %p826 = por %p824, %p825
      %s827 = ssub.s32 %s94, %s106
      %p828 = scmp.eq.s32.totalorder %s827, 0
      %s830 = sadd.s32 %s829, 1
      %s831 = scalar_select %p828, %s829, %s830
      %p834 = pneg %p828
      %p835 = scmp.eq.s32.totalorder %s87, 3
      %p836 = por %p834, %p835
      %p837 = scmp.ne.s32.totalorder %s829, %s832
      %p838 = scmp.eq.s32.totalorder %s87, 0
      %p839 = por %p837, %p838
      %p840 = scmp.ne.s32.totalorder %s829, %s832
      %p841 = scmp.eq.s32.totalorder %s92, 3
      %p842 = por %p840, %p841
      %p843 = scmp.ne.s32.totalorder %s832, %s833
      %p844 = scmp.eq.s32.totalorder %s92, 0
      %p845 = por %p843, %p844
      %p846 = scmp.ne.s32.totalorder %s832, %s833
      %p847 = scmp.eq.s32.totalorder %s93, 3
      %p848 = por %p846, %p847
      %p850 = scmp.ne.s32.totalorder %s833, %s849
      %p851 = scmp.eq.s32.totalorder %s93, 0
      %p852 = por %p850, %p851
      %s853 = ssub.s32 %s94, %s106
      %s854 = ssub.s32 %s95, %s102
      %s855 = sor.u32 %s853, %s854
      %p856 = scmp.eq.s32.totalorder %s855, 0
      %s858 = sadd.s32 %s857, 1
      %s859 = scalar_select %p856, %s857, %s858
      %p862 = pneg %p856
      %p863 = scmp.eq.s32.totalorder %s87, 3
      %p864 = por %p862, %p863
      %p865 = scmp.ne.s32.totalorder %s857, %s860
      %p866 = scmp.eq.s32.totalorder %s87, 0
      %p867 = por %p865, %p866
      %p868 = scmp.ne.s32.totalorder %s857, %s860
      %p869 = scmp.eq.s32.totalorder %s92, 3
      %p870 = por %p868, %p869
      %p871 = scmp.ne.s32.totalorder %s860, %s861
      %p872 = scmp.eq.s32.totalorder %s92, 0
      %p873 = por %p871, %p872
      %p874 = scmp.ne.s32.totalorder %s860, %s861
      %p875 = scmp.eq.s32.totalorder %s93, 3
      %p876 = por %p874, %p875
      %p878 = scmp.ne.s32.totalorder %s861, %s877
      %p879 = scmp.eq.s32.totalorder %s93, 0
      %p880 = por %p878, %p879
      %s881 = ssub.s32 %s94, %s106
      %p882 = scmp.eq.s32.totalorder %s881, 0
      %s884 = sadd.s32 %s883, 1
      %s885 = scalar_select %p882, %s883, %s884
      %p888 = pneg %p882
      %p889 = scmp.eq.s32.totalorder %s87, 3
      %p890 = por %p888, %p889
      %p891 = scmp.ne.s32.totalorder %s883, %s886
      %p892 = scmp.eq.s32.totalorder %s87, 0
      %p893 = por %p891, %p892
      %p894 = scmp.ne.s32.totalorder %s883, %s886
      %p895 = scmp.eq.s32.totalorder %s92, 3
      %p896 = por %p894, %p895
      %p897 = scmp.ne.s32.totalorder %s886, %s887
      %p898 = scmp.eq.s32.totalorder %s92, 0
      %p899 = por %p897, %p898
      %p900 = scmp.ne.s32.totalorder %s886, %s887
      %p901 = scmp.eq.s32.totalorder %s93, 3
      %p902 = por %p900, %p901
      %p904 = scmp.ne.s32.totalorder %s887, %s903
      %p905 = scmp.eq.s32.totalorder %s93, 0
      %p906 = por %p904, %p905
      %p907 = scmp.le.s32.totalorder 1, %s87
      %p908 = scmp.lt.s32.totalorder %s87, 5
      %p909 = pnand %p907, %p908
      %p910 = pneg %p909
      // Predicated region
      $region9: #{tpu_custom_call.1} parent=5 // pred_check
        _
      $region10: #{tpu_custom_call.1} parent=5 // pred_check_branch
        %912 = sbr.rel (%p909) target = $region12
      $region11: #{tpu_custom_call.1} parent=5 // pred_region
        %s913 = ssub.s32 %s87, 1
        // Predicated region
        $region13: #{tpu_custom_call.1} parent=11 // pred_check
          %p914 = pneg %p172
        $region14: #{tpu_custom_call.1} parent=11 // pred_check_branch
          %916 = sbr.rel (%p914) target = $region16
        $region15: #{tpu_custom_call.1} parent=11 // pred_region
          %918 = vsyncadd [#allocation7], 0
          %s919 = sshll.u32 %s5, 4
          %s920 = int_to_ptr.hbm [resolvable:$true] %s919
          %s921 = sshll.u32 [#allocation6], 4
          %s922 = int_to_ptr.vmem [resolvable:$true] %s921
          %927 = dma.hbm_to_vmem [thread:$0]  %s920, 128, %s922, [#allocation7], 64, 64, 4
        $region16: #{tpu_custom_call.1} parent=11 // pred_fallthru
          _
        // Predicated region
        $region17: #{tpu_custom_call.1} parent=11 // pred_check
          %p928 = pneg %p193
        $region18: #{tpu_custom_call.1} parent=11 // pred_check_branch
          %930 = sbr.rel (%p928) target = $region20
        $region19: #{tpu_custom_call.1} parent=11 // pred_region
          _
        $region20: #{tpu_custom_call.1} parent=11 // pred_fallthru
          _
        // Predicated region
        $region21: #{tpu_custom_call.1} parent=11 // pred_check
          %p931 = pneg %p214
        $region22: #{tpu_custom_call.1} parent=11 // pred_check_branch
          %933 = sbr.rel (%p931) target = $region24
        $region23: #{tpu_custom_call.1} parent=11 // pred_region
          %935 = vsyncadd [#allocation7], 0
          %s937 = sshll.u32 %s9, 4
          %s938 = int_to_ptr.hbm [resolvable:$true] %s937
          %s939 = sshll.u32 [#allocation8], 4
          %s940 = int_to_ptr.vmem [resolvable:$true] %s939
          %942 = dma.hbm_to_vmem [thread:$0]  %s938, 16, %s940, [#allocation7]
        $region24: #{tpu_custom_call.1} parent=11 // pred_fallthru
          _
        // Predicated region
        $region25: #{tpu_custom_call.1} parent=11 // pred_check
          %p943 = pneg %p651
        $region26: #{tpu_custom_call.1} parent=11 // pred_check_branch
          %945 = sbr.rel (%p943) target = $region28
        $region27: #{tpu_custom_call.1} parent=11 // pred_region
          _
        $region28: #{tpu_custom_call.1} parent=11 // pred_fallthru
          _
        // Predicated region
        $region29: #{tpu_custom_call.1} parent=11 // pred_check
          %p946 = pneg %p672
        $region30: #{tpu_custom_call.1} parent=11 // pred_check_branch
          %948 = sbr.rel (%p946) target = $region32
        $region31: #{tpu_custom_call.1} parent=11 // pred_region
          _
        $region32: #{tpu_custom_call.1} parent=11 // pred_fallthru
          _
        // Predicated region
        $region33: #{tpu_custom_call.1} parent=11 // pred_check
          %p949 = pneg %p693
        $region34: #{tpu_custom_call.1} parent=11 // pred_check_branch
          %951 = sbr.rel (%p949) target = $region36
        $region35: #{tpu_custom_call.1} parent=11 // pred_region
          _
        $region36: #{tpu_custom_call.1} parent=11 // pred_fallthru
          _
        // Predicated region
        $region37: #{tpu_custom_call.1} parent=11 // pred_check
          %p952 = pneg %p714
        $region38: #{tpu_custom_call.1} parent=11 // pred_check_branch
          %954 = sbr.rel (%p952) target = $region40
        $region39: #{tpu_custom_call.1} parent=11 // pred_region
          _
        $region40: #{tpu_custom_call.1} parent=11 // pred_fallthru
          _
        // Predicated region
        $region41: #{tpu_custom_call.1} parent=11 // pred_check
          %p955 = pneg %p735
        $region42: #{tpu_custom_call.1} parent=11 // pred_check_branch
          %957 = sbr.rel (%p955) target = $region44
        $region43: #{tpu_custom_call.1} parent=11 // pred_region
          _
        $region44: #{tpu_custom_call.1} parent=11 // pred_fallthru
          _
        // Predicated region
        $region45: #{tpu_custom_call.1} parent=11 // pred_check
          %p958 = pneg %p756
        $region46: #{tpu_custom_call.1} parent=11 // pred_check_branch
          %960 = sbr.rel (%p958) target = $region48
        $region47: #{tpu_custom_call.1} parent=11 // pred_region
          _
        $region48: #{tpu_custom_call.1} parent=11 // pred_fallthru
          _
        // Predicated region
        $region49: #{tpu_custom_call.1} parent=11 // pred_check
          %p961 = pneg %p777
        $region50: #{tpu_custom_call.1} parent=11 // pred_check_branch
          %963 = sbr.rel (%p961) target = $region52
        $region51: #{tpu_custom_call.1} parent=11 // pred_region
          _
        $region52: #{tpu_custom_call.1} parent=11 // pred_fallthru
          _
        // Predicated region
        $region53: #{tpu_custom_call.1} parent=11 // pred_check
          %p964 = pneg %p798
        $region54: #{tpu_custom_call.1} parent=11 // pred_check_branch
          %966 = sbr.rel (%p964) target = $region56
        $region55: #{tpu_custom_call.1} parent=11 // pred_region
          _
        $region56: #{tpu_custom_call.1} parent=11 // pred_fallthru
          _
        // Predicated region
        $region57: #{tpu_custom_call.1} parent=11 // pred_check
          %p967 = pneg %p819
        $region58: #{tpu_custom_call.1} parent=11 // pred_check_branch
          %969 = sbr.rel (%p967) target = $region60
        $region59: #{tpu_custom_call.1} parent=11 // pred_region
          _
        $region60: #{tpu_custom_call.1} parent=11 // pred_fallthru
          _
      $region12: #{tpu_custom_call.1} parent=5 // pred_fallthru
        _
      %p970 = scmp.lt.s32.totalorder %s87, 4
      // Predicated region
      $region61: #{tpu_custom_call.1} parent=5 // pred_check
        %p971 = pneg %p970
      $region62: #{tpu_custom_call.1} parent=5 // pred_check_branch
        %973 = sbr.rel (%p971) target = $region64
      $region63: #{tpu_custom_call.1} parent=5 // pred_region
        // Predicated region
        $region65: #{tpu_custom_call.1} parent=63 // pred_check
          %p974 = pneg %p119
        $region66: #{tpu_custom_call.1} parent=63 // pred_check_branch
          %976 = sbr.rel (%p974) target = $region68
        $region67: #{tpu_custom_call.1} parent=63 // pred_region
          %s977 = sand.u32 %s109, 1
          %s978 = scalar_lea.sflag [#allocation4], %s977
          %s979 = sand.u32 %s109, 1
          %s980 = smul.addr %s979, 4
          %s981 = scalar_lea.vmem [#allocation3], %s980
          %983 = vsyncadd %s978, 0
          %s984 = smul.addr %s94, 4
          %s985 = scalar_lea.hbm %s1, %s984
          %s987 = sshll.u32 %s985, 4
          %s988 = int_to_ptr.hbm [resolvable:$true] %s987
          %s989 = sshll.u32 %s981, 4
          %s990 = int_to_ptr.vmem [resolvable:$true] %s989
          %992 = dma.hbm_to_vmem [thread:$0]  %s988, 64, %s990, %s978
        $region68: #{tpu_custom_call.1} parent=63 // pred_fallthru
          _
        // Predicated region
        $region69: #{tpu_custom_call.1} parent=63 // pred_check
          %p993 = pneg %p145
        $region70: #{tpu_custom_call.1} parent=63 // pred_check_branch
          %995 = sbr.rel (%p993) target = $region72
        $region71: #{tpu_custom_call.1} parent=63 // pred_region
          %p996 = scmp.lt.s32.totalorder %s94, 1
          %s997 = scalar_select %p996, %s94, 1
          %s998 = smul.addr %s997, 8
          %s999 = scalar_lea.vmem %s3, %s998
        $region72: #{tpu_custom_call.1} parent=63 // pred_fallthru
          _
        // Predicated region
        $region73: #{tpu_custom_call.1} parent=63 // pred_check
          %p1000 = pneg %p234
        $region74: #{tpu_custom_call.1} parent=63 // pred_check_branch
          %1002 = sbr.rel (%p1000) target = $region76
        $region75: #{tpu_custom_call.1} parent=63 // pred_region
          %p1003 = scmp.lt.s32.totalorder %s95, 1
          %s1004 = scalar_select %p1003, %s95, 1
          %s1005 = scalar_lea.vmem %s11, %s1004
        $region76: #{tpu_custom_call.1} parent=63 // pred_fallthru
          _
        // Predicated region
        $region77: #{tpu_custom_call.1} parent=63 // pred_check
          %p1006 = pneg %p260
        $region78: #{tpu_custom_call.1} parent=63 // pred_check_branch
          %1008 = sbr.rel (%p1006) target = $region80
        $region79: #{tpu_custom_call.1} parent=63 // pred_region
          %p1009 = scmp.lt.s32.totalorder %s95, 1
          %s1010 = scalar_select %p1009, %s95, 1
          %s1011 = scalar_lea.vmem %s13, %s1010
        $region80: #{tpu_custom_call.1} parent=63 // pred_fallthru
          _
        // Predicated region
        $region81: #{tpu_custom_call.1} parent=63 // pred_check
          %p1012 = pneg %p286
        $region82: #{tpu_custom_call.1} parent=63 // pred_check_branch
          %1014 = sbr.rel (%p1012) target = $region84
        $region83: #{tpu_custom_call.1} parent=63 // pred_region
          %p1015 = scmp.lt.s32.totalorder %s95, 1
          %s1016 = scalar_select %p1015, %s95, 1
          %s1017 = smul.addr %s1016, 4
          %s1018 = smul.addr %s1017, 4
          %s1019 = scalar_lea.vmem %s15, %s1018
        $region84: #{tpu_custom_call.1} parent=63 // pred_fallthru
          _
        // Predicated region
        $region85: #{tpu_custom_call.1} parent=63 // pred_check
          %p1020 = pneg %p312
        $region86: #{tpu_custom_call.1} parent=63 // pred_check_branch
          %1022 = sbr.rel (%p1020) target = $region88
        $region87: #{tpu_custom_call.1} parent=63 // pred_region
          %p1023 = scmp.lt.s32.totalorder %s95, 1
          %s1024 = scalar_select %p1023, %s95, 1
          %s1025 = scalar_lea.vmem %s17, %s1024
        $region88: #{tpu_custom_call.1} parent=63 // pred_fallthru
          _
        // Predicated region
        $region89: #{tpu_custom_call.1} parent=63 // pred_check
          %p1026 = pneg %p338
        $region90: #{tpu_custom_call.1} parent=63 // pred_check_branch
          %1028 = sbr.rel (%p1026) target = $region92
        $region91: #{tpu_custom_call.1} parent=63 // pred_region
          %p1029 = scmp.lt.s32.totalorder %s95, 1
          %s1030 = scalar_select %p1029, %s95, 1
          %s1031 = smul.addr %s1030, 4
          %s1032 = smul.addr %s1031, 4
          %s1033 = scalar_lea.vmem %s19, %s1032
        $region92: #{tpu_custom_call.1} parent=63 // pred_fallthru
          _
        // Predicated region
        $region93: #{tpu_custom_call.1} parent=63 // pred_check
          %p1034 = pneg %p364
        $region94: #{tpu_custom_call.1} parent=63 // pred_check_branch
          %1036 = sbr.rel (%p1034) target = $region96
        $region95: #{tpu_custom_call.1} parent=63 // pred_region
          %p1037 = scmp.lt.s32.totalorder %s95, 1
          %s1038 = scalar_select %p1037, %s95, 1
          %s1039 = scalar_lea.vmem %s21, %s1038
        $region96: #{tpu_custom_call.1} parent=63 // pred_fallthru
          _
        // Predicated region
        $region97: #{tpu_custom_call.1} parent=63 // pred_check
          %p1040 = pneg %p390
        $region98: #{tpu_custom_call.1} parent=63 // pred_check_branch
          %1042 = sbr.rel (%p1040) target = $region100
        $region99: #{tpu_custom_call.1} parent=63 // pred_region
          %p1043 = scmp.lt.s32.totalorder %s95, 1
          %s1044 = scalar_select %p1043, %s95, 1
          %s1045 = smul.addr %s1044, 4
          %s1046 = smul.addr %s1045, 4
          %s1047 = scalar_lea.vmem %s23, %s1046
        $region100: #{tpu_custom_call.1} parent=63 // pred_fallthru
          _
        // Predicated region
        $region101: #{tpu_custom_call.1} parent=63 // pred_check
          %p1048 = pneg %p416
        $region102: #{tpu_custom_call.1} parent=63 // pred_check_branch
          %1050 = sbr.rel (%p1048) target = $region104
        $region103: #{tpu_custom_call.1} parent=63 // pred_region
          %p1051 = scmp.lt.s32.totalorder %s95, 1
          %s1052 = scalar_select %p1051, %s95, 1
          %s1053 = scalar_lea.vmem %s25, %s1052
        $region104: #{tpu_custom_call.1} parent=63 // pred_fallthru
          _
        // Predicated region
        $region105: #{tpu_custom_call.1} parent=63 // pred_check
          %p1054 = pneg %p442
        $region106: #{tpu_custom_call.1} parent=63 // pred_check_branch
          %1056 = sbr.rel (%p1054) target = $region108
        $region107: #{tpu_custom_call.1} parent=63 // pred_region
          %p1057 = scmp.lt.s32.totalorder %s95, 1
          %s1058 = scalar_select %p1057, %s95, 1
          %s1059 = smul.addr %s1058, 4
          %s1060 = smul.addr %s1059, 4
          %s1061 = scalar_lea.vmem %s27, %s1060
        $region108: #{tpu_custom_call.1} parent=63 // pred_fallthru
          _
        // Predicated region
        $region109: #{tpu_custom_call.1} parent=63 // pred_check
          %p1062 = pneg %p468
        $region110: #{tpu_custom_call.1} parent=63 // pred_check_branch
          %1064 = sbr.rel (%p1062) target = $region112
        $region111: #{tpu_custom_call.1} parent=63 // pred_region
          %p1065 = scmp.lt.s32.totalorder %s95, 1
          %s1066 = scalar_select %p1065, %s95, 1
          %s1067 = scalar_lea.vmem %s29, %s1066
        $region112: #{tpu_custom_call.1} parent=63 // pred_fallthru
          _
        // Predicated region
        $region113: #{tpu_custom_call.1} parent=63 // pred_check
          %p1068 = pneg %p494
        $region114: #{tpu_custom_call.1} parent=63 // pred_check_branch
          %1070 = sbr.rel (%p1068) target = $region116
        $region115: #{tpu_custom_call.1} parent=63 // pred_region
          %p1071 = scmp.lt.s32.totalorder %s95, 1
          %s1072 = scalar_select %p1071, %s95, 1
          %s1073 = scalar_lea.vmem %s31, %s1072
        $region116: #{tpu_custom_call.1} parent=63 // pred_fallthru
          _
        // Predicated region
        $region117: #{tpu_custom_call.1} parent=63 // pred_check
          %p1074 = pneg %p520
        $region118: #{tpu_custom_call.1} parent=63 // pred_check_branch
          %1076 = sbr.rel (%p1074) target = $region120
        $region119: #{tpu_custom_call.1} parent=63 // pred_region
          %p1077 = scmp.lt.s32.totalorder %s95, 1
          %s1078 = scalar_select %p1077, %s95, 1
          %s1079 = scalar_lea.vmem %s33, %s1078
        $region120: #{tpu_custom_call.1} parent=63 // pred_fallthru
          _
        // Predicated region
        $region121: #{tpu_custom_call.1} parent=63 // pred_check
          %p1080 = pneg %p546
        $region122: #{tpu_custom_call.1} parent=63 // pred_check_branch
          %1082 = sbr.rel (%p1080) target = $region124
        $region123: #{tpu_custom_call.1} parent=63 // pred_region
          %p1083 = scmp.lt.s32.totalorder %s95, 1
          %s1084 = scalar_select %p1083, %s95, 1
          %s1085 = smul.addr %s1084, 4
          %s1086 = smul.addr %s1085, 4
          %s1087 = scalar_lea.vmem %s35, %s1086
        $region124: #{tpu_custom_call.1} parent=63 // pred_fallthru
          _
        // Predicated region
        $region125: #{tpu_custom_call.1} parent=63 // pred_check
          %p1088 = pneg %p572
        $region126: #{tpu_custom_call.1} parent=63 // pred_check_branch
          %1090 = sbr.rel (%p1088) target = $region128
        $region127: #{tpu_custom_call.1} parent=63 // pred_region
          %s1091 = sand.u32 %s562, 1
          %s1092 = scalar_lea.sflag [#allocation10], %s1091
          %s1093 = sand.u32 %s562, 1
          %s1094 = scalar_lea.vmem [#allocation9], %s1093
          %1096 = vsyncadd %s1092, 0
          %s1097 = scalar_lea.hbm %s37, %s95
          %s1099 = sshll.u32 %s1097, 4
          %s1100 = int_to_ptr.hbm [resolvable:$true] %s1099
          %s1101 = sshll.u32 %s1094, 4
          %s1102 = int_to_ptr.vmem [resolvable:$true] %s1101
          %1104 = dma.hbm_to_vmem [thread:$0]  %s1100, 16, %s1102, %s1092
        $region128: #{tpu_custom_call.1} parent=63 // pred_fallthru
          _
        // Predicated region
        $region129: #{tpu_custom_call.1} parent=63 // pred_check
          %p1105 = pneg %p598
        $region130: #{tpu_custom_call.1} parent=63 // pred_check_branch
          %1107 = sbr.rel (%p1105) target = $region132
        $region131: #{tpu_custom_call.1} parent=63 // pred_region
          %p1108 = scmp.lt.s32.totalorder %s95, 1
          %s1109 = scalar_select %p1108, %s95, 1
          %s1110 = smul.addr %s1109, 8
          %s1111 = smul.addr %s1110, 4
          %s1112 = scalar_lea.vmem %s39, %s1111
        $region132: #{tpu_custom_call.1} parent=63 // pred_fallthru
          _
        // Predicated region
        $region133: #{tpu_custom_call.1} parent=63 // pred_check
          %p1113 = pneg %p624
        $region134: #{tpu_custom_call.1} parent=63 // pred_check_branch
          %1115 = sbr.rel (%p1113) target = $region136
        $region135: #{tpu_custom_call.1} parent=63 // pred_region
          %p1116 = scmp.lt.s32.totalorder %s95, 1
          %s1117 = scalar_select %p1116, %s95, 1
          %s1118 = scalar_lea.vmem %s41, %s1117
        $region136: #{tpu_custom_call.1} parent=63 // pred_fallthru
          _
      $region64: #{tpu_custom_call.1} parent=5 // pred_fallthru
        _
      %p1119 = scmp.le.s32.totalorder 1, %s87
      %p1120 = scmp.lt.s32.totalorder %s87, 5
      %p1121 = pnand %p1119, %p1120
      %p1122 = pneg %p1121
      // Predicated region
      $region137: #{tpu_custom_call.1} parent=5 // pred_check
        _
      $region138: #{tpu_custom_call.1} parent=5 // pred_check_branch
        %1124 = sbr.rel (%p1121) target = $region140
      $region139: #{tpu_custom_call.1} parent=5 // pred_region
        %s1125 = ssub.s32 %s87, 1
        %s1126 = sand.u32 %s112, 1
        %s1127 = scalar_lea.sflag [#allocation4], %s1126
        %s1128 = sand.u32 %s112, 1
        %s1129 = smul.addr %s1128, 4
        %s1130 = scalar_lea.vmem [#allocation3], %s1129
        // Predicated region
        $region141: #{tpu_custom_call.1} parent=139 // pred_check
          %p1131 = pneg %p125
        $region142: #{tpu_custom_call.1} parent=139 // pred_check_branch
          %1133 = sbr.rel (%p1131) target = $region144
        $region143: #{tpu_custom_call.1} parent=139 // pred_region
          %1135 = dma.done %s1127, 64
        $region144: #{tpu_custom_call.1} parent=139 // pred_fallthru
          _
        // Predicated region
        $region145: #{tpu_custom_call.1} parent=139 // pred_check
          %p1136 = pneg %p172
        $region146: #{tpu_custom_call.1} parent=139 // pred_check_branch
          %1138 = sbr.rel (%p1136) target = $region148
        $region147: #{tpu_custom_call.1} parent=139 // pred_region
          %1140 = dma.done [#allocation7], 128
        $region148: #{tpu_custom_call.1} parent=139 // pred_fallthru
          _
        // Predicated region
        $region149: #{tpu_custom_call.1} parent=139 // pred_check
          %p1141 = pneg %p214
        $region150: #{tpu_custom_call.1} parent=139 // pred_check_branch
          %1143 = sbr.rel (%p1141) target = $region152
        $region151: #{tpu_custom_call.1} parent=139 // pred_region
          %1145 = dma.done [#allocation7], 16
        $region152: #{tpu_custom_call.1} parent=139 // pred_fallthru
          _
        %s1146 = sand.u32 %s565, 1
        %s1147 = scalar_lea.sflag [#allocation10], %s1146
        %s1148 = sand.u32 %s565, 1
        %s1149 = scalar_lea.vmem [#allocation9], %s1148
        // Predicated region
        $region153: #{tpu_custom_call.1} parent=139 // pred_check
          %p1150 = pneg %p578
        $region154: #{tpu_custom_call.1} parent=139 // pred_check_branch
          %1152 = sbr.rel (%p1150) target = $region156
        $region155: #{tpu_custom_call.1} parent=139 // pred_region
          %1154 = dma.done %s1147, 16
        $region156: #{tpu_custom_call.1} parent=139 // pred_fallthru
          _
        %s1155 = sand.u32 %s112, 1
        %s1156 = scalar_lea.sflag [#allocation4], %s1155
        %s1157 = sand.u32 %s112, 1
        %s1158 = smul.addr %s1157, 4
        %s1159 = scalar_lea.vmem [#allocation3], %s1158
        %p1160 = pneg %p125
        %p1161 = pneg %p122
        %p1162 = scmp.lt.s32.totalorder %s96, 1
        %s1163 = scalar_select %p1162, %s96, 1
        %s1164 = smul.addr %s1163, 8
        %s1165 = scalar_lea.vmem %s3, %s1164
        %p1166 = pneg %p151
        %p1167 = pneg %p148
        %p1168 = pneg %p172
        %p1169 = pneg %p169
        %p1170 = pneg %p193
        %p1171 = pneg %p190
        %p1172 = pneg %p214
        %p1173 = pneg %p211
        %p1174 = scmp.lt.s32.totalorder %s97, 1
        %s1175 = scalar_select %p1174, %s97, 1
        %s1176 = scalar_lea.vmem %s11, %s1175
        %p1177 = pneg %p240
        %p1178 = pneg %p237
        %p1179 = scmp.lt.s32.totalorder %s97, 1
        %s1180 = scalar_select %p1179, %s97, 1
        %s1181 = scalar_lea.vmem %s13, %s1180
        %p1182 = pneg %p266
        %p1183 = pneg %p263
        %p1184 = scmp.lt.s32.totalorder %s97, 1
        %s1185 = scalar_select %p1184, %s97, 1
        %s1186 = smul.addr %s1185, 4
        %s1187 = smul.addr %s1186, 4
        %s1188 = scalar_lea.vmem %s15, %s1187
        %p1189 = pneg %p292
        %p1190 = pneg %p289
        %p1191 = scmp.lt.s32.totalorder %s97, 1
        %s1192 = scalar_select %p1191, %s97, 1
        %s1193 = scalar_lea.vmem %s17, %s1192
        %p1194 = pneg %p318
        %p1195 = pneg %p315
        %p1196 = scmp.lt.s32.totalorder %s97, 1
        %s1197 = scalar_select %p1196, %s97, 1
        %s1198 = smul.addr %s1197, 4
        %s1199 = smul.addr %s1198, 4
        %s1200 = scalar_lea.vmem %s19, %s1199
        %p1201 = pneg %p344
        %p1202 = pneg %p341
        %p1203 = scmp.lt.s32.totalorder %s97, 1
        %s1204 = scalar_select %p1203, %s97, 1
        %s1205 = scalar_lea.vmem %s21, %s1204
        %p1206 = pneg %p370
        %p1207 = pneg %p367
        %p1208 = scmp.lt.s32.totalorder %s97, 1
        %s1209 = scalar_select %p1208, %s97, 1
        %s1210 = smul.addr %s1209, 4
        %s1211 = smul.addr %s1210, 4
        %s1212 = scalar_lea.vmem %s23, %s1211
        %p1213 = pneg %p396
        %p1214 = pneg %p393
        %p1215 = scmp.lt.s32.totalorder %s97, 1
        %s1216 = scalar_select %p1215, %s97, 1
        %s1217 = scalar_lea.vmem %s25, %s1216
        %p1218 = pneg %p422
        %p1219 = pneg %p419
        %p1220 = scmp.lt.s32.totalorder %s97, 1
        %s1221 = scalar_select %p1220, %s97, 1
        %s1222 = smul.addr %s1221, 4
        %s1223 = smul.addr %s1222, 4
        %s1224 = scalar_lea.vmem %s27, %s1223
        %p1225 = pneg %p448
        %p1226 = pneg %p445
        %p1227 = scmp.lt.s32.totalorder %s97, 1
        %s1228 = scalar_select %p1227, %s97, 1
        %s1229 = scalar_lea.vmem %s29, %s1228
        %p1230 = pneg %p474
        %p1231 = pneg %p471
        %p1232 = scmp.lt.s32.totalorder %s97, 1
        %s1233 = scalar_select %p1232, %s97, 1
        %s1234 = scalar_lea.vmem %s31, %s1233
        %p1235 = pneg %p500
        %p1236 = pneg %p497
        %p1237 = scmp.lt.s32.totalorder %s97, 1
        %s1238 = scalar_select %p1237, %s97, 1
        %s1239 = scalar_lea.vmem %s33, %s1238
        %p1240 = pneg %p526
        %p1241 = pneg %p523
        %p1242 = scmp.lt.s32.totalorder %s97, 1
        %s1243 = scalar_select %p1242, %s97, 1
        %s1244 = smul.addr %s1243, 4
        %s1245 = smul.addr %s1244, 4
        %s1246 = scalar_lea.vmem %s35, %s1245
        %p1247 = pneg %p552
        %p1248 = pneg %p549
        %s1249 = sand.u32 %s565, 1
        %s1250 = scalar_lea.sflag [#allocation10], %s1249
        %s1251 = sand.u32 %s565, 1
        %s1252 = scalar_lea.vmem [#allocation9], %s1251
        %p1253 = pneg %p578
        %p1254 = pneg %p575
        %p1255 = scmp.lt.s32.totalorder %s97, 1
        %s1256 = scalar_select %p1255, %s97, 1
        %s1257 = smul.addr %s1256, 8
        %s1258 = smul.addr %s1257, 4
        %s1259 = scalar_lea.vmem %s39, %s1258
        %p1260 = pneg %p604
        %p1261 = pneg %p601
        %p1262 = scmp.lt.s32.totalorder %s97, 1
        %s1263 = scalar_select %p1262, %s97, 1
        %s1264 = scalar_lea.vmem %s41, %s1263
        %p1265 = pneg %p630
        %p1266 = pneg %p627
        %p1267 = pneg %p651
        %p1268 = pneg %p648
        %p1269 = pneg %p672
        %p1270 = pneg %p669
        %p1271 = pneg %p693
        %p1272 = pneg %p690
        %p1273 = pneg %p714
        %p1274 = pneg %p711
        %p1275 = pneg %p735
        %p1276 = pneg %p732
        %p1277 = pneg %p756
        %p1278 = pneg %p753
        %p1279 = pneg %p777
        %p1280 = pneg %p774
        %p1281 = pneg %p798
        %p1282 = pneg %p795
        %p1283 = pneg %p819
        %p1284 = pneg %p816
        %p1285 = pneg %p845
        %p1286 = pneg %p842
        %s1287 = sand.u32 %s832, 1
        %s1288 = scalar_lea.sflag [#allocation5], %s1287
        %s1289 = sand.u32 %s832, 1
        %s1290 = smul.addr %s1289, 8
        %s1291 = scalar_lea.vmem [#allocation11], %s1290
        %p1292 = pneg %p873
        %p1293 = pneg %p870
        %s1294 = sand.u32 %s92, 1
        %s1295 = scalar_lea.sflag [#allocation13], %s1294
        %s1296 = sand.u32 %s860, 1
        %s1297 = smul.addr %s1296, 16
        %s1298 = scalar_lea.vmem [#allocation12], %s1297
        %p1299 = pneg %p899
        %p1300 = pneg %p896
        %s1301 = sand.u32 %s92, 1
        %s1302 = scalar_lea.sflag [#allocation13], %s1301
        %s1303 = sand.u32 %s886, 1
        %s1304 = smul.addr %s1303, 4
        %s1305 = scalar_lea.vmem [#allocation14], %s1304
        %p1306 = scmp.lt.s32.totalorder %s96, 1
        %s1307 = scalar_select %p1306, %s96, 1
        %s1308 = smul.addr %s1307, 8
        %s1309 = scalar_lea.vmem %s3, %s1308
        %p1310 = scmp.lt.s32.totalorder %s97, 1
        %s1311 = scalar_select %p1310, %s97, 1
        %s1312 = scalar_lea.vmem %s11, %s1311
        %p1313 = scmp.lt.s32.totalorder %s97, 1
        %s1314 = scalar_select %p1313, %s97, 1
        %s1315 = scalar_lea.vmem %s13, %s1314
        %p1316 = scmp.lt.s32.totalorder %s97, 1
        %s1317 = scalar_select %p1316, %s97, 1
        %s1318 = smul.addr %s1317, 4
        %s1319 = smul.addr %s1318, 4
        %s1320 = scalar_lea.vmem %s15, %s1319
        %p1321 = scmp.lt.s32.totalorder %s97, 1
        %s1322 = scalar_select %p1321, %s97, 1
        %s1323 = scalar_lea.vmem %s17, %s1322
        %p1324 = scmp.lt.s32.totalorder %s97, 1
        %s1325 = scalar_select %p1324, %s97, 1
        %s1326 = smul.addr %s1325, 4
        %s1327 = smul.addr %s1326, 4
        %s1328 = scalar_lea.vmem %s19, %s1327
        %p1329 = scmp.lt.s32.totalorder %s97, 1
        %s1330 = scalar_select %p1329, %s97, 1
        %s1331 = scalar_lea.vmem %s21, %s1330
        %p1332 = scmp.lt.s32.totalorder %s97, 1
        %s1333 = scalar_select %p1332, %s97, 1
        %s1334 = smul.addr %s1333, 4
        %s1335 = smul.addr %s1334, 4
        %s1336 = scalar_lea.vmem %s23, %s1335
        %p1337 = scmp.lt.s32.totalorder %s97, 1
        %s1338 = scalar_select %p1337, %s97, 1
        %s1339 = scalar_lea.vmem %s25, %s1338
        %p1340 = scmp.lt.s32.totalorder %s97, 1
        %s1341 = scalar_select %p1340, %s97, 1
        %s1342 = smul.addr %s1341, 4
        %s1343 = smul.addr %s1342, 4
        %s1344 = scalar_lea.vmem %s27, %s1343
        %p1345 = scmp.lt.s32.totalorder %s97, 1
        %s1346 = scalar_select %p1345, %s97, 1
        %s1347 = scalar_lea.vmem %s29, %s1346
        %p1348 = scmp.lt.s32.totalorder %s97, 1
        %s1349 = scalar_select %p1348, %s97, 1
        %s1350 = scalar_lea.vmem %s31, %s1349
        %p1351 = scmp.lt.s32.totalorder %s97, 1
        %s1352 = scalar_select %p1351, %s97, 1
        %s1353 = scalar_lea.vmem %s33, %s1352
        %p1354 = scmp.lt.s32.totalorder %s97, 1
        %s1355 = scalar_select %p1354, %s97, 1
        %s1356 = smul.addr %s1355, 4
        %s1357 = smul.addr %s1356, 4
        %s1358 = scalar_lea.vmem %s35, %s1357
        %p1359 = scmp.lt.s32.totalorder %s97, 1
        %s1360 = scalar_select %p1359, %s97, 1
        %s1361 = smul.addr %s1360, 8
        %s1362 = smul.addr %s1361, 4
        %s1363 = scalar_lea.vmem %s39, %s1362
        %p1364 = scmp.lt.s32.totalorder %s97, 1
        %s1365 = scalar_select %p1364, %s97, 1
        %s1366 = scalar_lea.vmem %s41, %s1365
        %p1368 = scmp.eq.s32.totalorder %s97, 0
        // Predicated region
        $region157: #{tpu_custom_call.1} parent=139 // pred_check
          %p1369 = pneg %p1368
        $region158: #{tpu_custom_call.1} parent=139 // pred_check_branch
          %1371 = sbr.rel (%p1369) target = $region160
        $region159: #{tpu_custom_call.1} parent=139 // pred_region
          %v1372 = vld [vmem:[%s1130] sm:$0xf]
          %v1373 = vld [vmem:[#allocation6] sm:$0xf]
          %v1374 = vld [vmem:[#allocation6 + $0x4] sm:$0xf]
          %v1375 = vld [vmem:[%s1309] sm:$0xff]
          %v1376 = vld [vmem:[%s7] sm:$0x3]
          %vm1377 = vcmask 15360
          %v1379 = vsel %vm1377, %v1375, 0
          %vm1381 = vcmask 1041408
          %v1383 = vsel %vm1381, %v1376, 0
          %1385 = vmatpush.msra.mxu0 0.0
          %1386 = vmatpush.msra.mxu0 0.0
          %1387 = vmatpush.msra.mxu0 0.0
          %1388 = vmatpush.msra.mxu0 0.0
          %1389 = vmatpush.msra.mxu0 0.0
          %1390 = vmatpush.msra.mxu0 0.0
          %1391 = vmatpush.msra.mxu0 0.0
          %1392 = vmatpush.msra.mxu0 0.0
          %1393 = vmatpush.msra.mxu0 0.0
          %1394 = vmatpush.msra.mxu0 0.0
          %1395 = vmatpush.msra.mxu0 0.0
          %1396 = vmatpush.msra.mxu0 0.0
          %1397 = vmatpush.msra.mxu0 0.0
          %1398 = vmatpush.msra.mxu0 0.0
          %1399 = vmatpush.msra.mxu0 0.0
          %1400 = vmatpush.msra.mxu0 %v1383
          %1401 = vmatmul.f32.gmra.mxu0 %v1379
          %v1402 = vpop.f32.mrf.mxu0
          %v1403 = vadd.f32 0.0, %v1402
          %1404 = vdwg.mxu0
          %v1407 = vunpack.c.l.b16 %v1373
          %v1408 = vunpack.c.l.b16 %v1374
          %v1409 = vpack.c.b16 %v1408, %v1407
          %vm1411 = vcmask 130048
          %v1413 = vsel %vm1411, %v1372, 0
          %1415 = vmatpush.bf16.msra.mxu0 0
          %1416 = vmatpush.bf16.msra.mxu0 0
          %1417 = vmatpush.bf16.msra.mxu0 0
          %1418 = vmatpush.bf16.msra.mxu0 0
          %1419 = vmatpush.bf16.msra.mxu0 0
          %1420 = vmatpush.bf16.msra.mxu0 0
          %1421 = vmatpush.bf16.msra.mxu0 0
          %1422 = vmatpush.bf16.msra.mxu0 %v1409
          %1423 = vmatmul.bf16.gmra.mxu0 %v1413
          %v1424 = vpop.f32.mrf.mxu0
          %v1425 = vadd.f32 %v1403, %v1424
          %v1426 = vpop.f32.mrf.mxu0
          %1427 = vdwg.mxu0
          %v1428 = vld [vmem:[#allocation8] sm:$0x1]
          %v1430 = vperm.slane %v1428, 0
          %v1432 = vadd.f32 %v1425, %v1430
          %vm1433 = vcmask 261120
          %1434 = vst.msk [vmem:[%s1291] sm:$0xff] %vm1433, %v1432
        $region160: #{tpu_custom_call.1} parent=139 // pred_fallthru
          _
        %v1435 = vld [vmem:[%s1291] sm:$0xff]
        %v1436 = vld [vmem:[%s1312] sm:$0x1]
        %v1437 = vld [vmem:[%s1315] sm:$0x1]
        %vm1438 = vcmask 261120
        %v1439 = vsel %vm1438, %v1435, 0.0
        %1440 = vadd.xlane.f32.xlu0 %v1439
        %v1441 = vpop.xlane.xlu0 %1440
        %v1442 = vrcp.pop 32.0
        %v1443 = vmul.f32 32.0, %v1442
        %v1444 = vsub.f32 1.0, %v1443
        %v1445 = vmul.f32 %v1442, %v1444
        %v1446 = vadd.f32 %v1442, %v1445
        %vm1447 = vweird.f32 %v1442
        %v1448 = vsel %vm1447, %v1442, %v1446
        %v1449 = vmul.f32 %v1441, %v1448
        %v1450 = vsub.f32 %v1435, %v1449
        %v1451 = vmul.f32 %v1450, %v1450
        %v1452 = vsel %vm1438, %v1451, 0.0
        %1453 = vadd.xlane.f32.xlu0 %v1452
        %v1454 = vpop.xlane.xlu0 %1453
        %v1455 = vmul.f32 %v1454, %v1448
        %v1456 = vadd.f32 %v1455, 1e-05
        %v1457 = vrsqrt.pop %v1456
        %v1458 = vmul.f32 %v1457, %v1456
        %v1459 = vmul.f32 %v1458, %v1457
        %v1460 = vmul.f32 0.5, %v1459
        %v1461 = vsub.f32 1.5, %v1460
        %v1462 = vmul.f32 %v1457, %v1461
        %vm1463 = vweird.f32 %v1456
        %vm1464 = vweird.f32 %v1457
        %vm1465 = vmor %vm1463, %vm1464
        %v1466 = vsel %vm1465, %v1457, %v1462
        %v1467 = vmul.f32 %v1450, %v1466
        %v1469 = vperm.slane %v1436, 0
        %v1471 = vmul.f32 %v1467, %v1469
        %v1473 = vperm.slane %v1437, 0
        %v1475 = vadd.f32 %v1471, %v1473
        %v1476 = vpack.c.bf16 %v1475, %v1475
        %v1477 = vld [vmem:[%s1320] sm:$0xf]
        %v1478 = vld [vmem:[%s1320 + $0x4] sm:$0xf]
        %v1479 = vld [vmem:[%s1320 + $0x8] sm:$0xf]
        %v1480 = vld [vmem:[%s1320 + $0xc] sm:$0xf]
        %v1481 = vld [vmem:[%s1323] sm:$0x1]
        %v1483 = vperm.slane %v1481, 0
        %v1489 = vunpack.c.l.b16 %v1477
        %v1490 = vunpack.c.l.b16 %v1478
        %v1491 = vunpack.c.l.b16 %v1479
        %v1492 = vunpack.c.l.b16 %v1480
        %v1493 = vpack.c.b16 %v1490, %v1489
        %v1494 = vpack.c.b16 %v1492, %v1491
        %v1498 = vsel %vm1438, %v1476, 0
        %1500 = vmatpush.bf16.msra.mxu0 0
        %1501 = vmatpush.bf16.msra.mxu0 0
        %1502 = vmatpush.bf16.msra.mxu0 0
        %1503 = vmatpush.bf16.msra.mxu0 0
        %1504 = vmatpush.bf16.msra.mxu0 0
        %1505 = vmatpush.bf16.msra.mxu0 0
        %1506 = vmatpush.bf16.msra.mxu0 %v1494
        %1507 = vmatpush.bf16.msra.mxu0 %v1493
        %1508 = vmatmul.bf16.gmra.mxu0 %v1498
        %v1509 = vpop.f32.mrf.mxu0
        %v1510 = vadd.f32 %v1483, %v1509
        %v1511 = vpop.f32.mrf.mxu0
        %1512 = vdwg.mxu0
        %v1513 = vld [vmem:[%s1328] sm:$0xf]
        %v1514 = vld [vmem:[%s1328 + $0x4] sm:$0xf]
        %v1515 = vld [vmem:[%s1328 + $0x8] sm:$0xf]
        %v1516 = vld [vmem:[%s1328 + $0xc] sm:$0xf]
        %v1517 = vld [vmem:[%s1331] sm:$0x1]
        %v1519 = vperm.slane %v1517, 0
        %v1525 = vunpack.c.l.b16 %v1513
        %v1526 = vunpack.c.l.b16 %v1514
        %v1527 = vunpack.c.l.b16 %v1515
        %v1528 = vunpack.c.l.b16 %v1516
        %v1529 = vpack.c.b16 %v1526, %v1525
        %v1530 = vpack.c.b16 %v1528, %v1527
        %1533 = vmatpush.bf16.msra.mxu0 0
        %1534 = vmatpush.bf16.msra.mxu0 0
        %1535 = vmatpush.bf16.msra.mxu0 0
        %1536 = vmatpush.bf16.msra.mxu0 0
        %1537 = vmatpush.bf16.msra.mxu0 0
        %1538 = vmatpush.bf16.msra.mxu0 0
        %1539 = vmatpush.bf16.msra.mxu0 %v1530
        %1540 = vmatpush.bf16.msra.mxu0 %v1529
        %1541 = vmatmul.bf16.gmra.mxu0 %v1498
        %v1542 = vpop.f32.mrf.mxu0
        %v1543 = vadd.f32 %v1519, %v1542
        %v1544 = vpop.f32.mrf.mxu0
        %1545 = vdwg.mxu0
        %v1546 = vld [vmem:[%s1336] sm:$0xf]
        %v1547 = vld [vmem:[%s1336 + $0x4] sm:$0xf]
        %v1548 = vld [vmem:[%s1336 + $0x8] sm:$0xf]
        %v1549 = vld [vmem:[%s1336 + $0xc] sm:$0xf]
        %v1550 = vld [vmem:[%s1339] sm:$0x1]
        %v1552 = vperm.slane %v1550, 0
        %v1558 = vunpack.c.l.b16 %v1546
        %v1559 = vunpack.c.l.b16 %v1547
        %v1560 = vunpack.c.l.b16 %v1548
        %v1561 = vunpack.c.l.b16 %v1549
        %v1562 = vpack.c.b16 %v1559, %v1558
        %v1563 = vpack.c.b16 %v1561, %v1560
        %1566 = vmatpush.bf16.msra.mxu0 0
        %1567 = vmatpush.bf16.msra.mxu0 0
        %1568 = vmatpush.bf16.msra.mxu0 0
        %1569 = vmatpush.bf16.msra.mxu0 0
        %1570 = vmatpush.bf16.msra.mxu0 0
        %1571 = vmatpush.bf16.msra.mxu0 0
        %1572 = vmatpush.bf16.msra.mxu0 %v1563
        %1573 = vmatpush.bf16.msra.mxu0 %v1562
        %1574 = vmatmul.bf16.gmra.mxu0 %v1498
        %v1575 = vpop.f32.mrf.mxu0
        %v1576 = vadd.f32 %v1552, %v1575
        %v1577 = vpop.f32.mrf.mxu0
        %1578 = vdwg.mxu0
        %1580 = vrot.lane.b32.xlu0 %v1510, 120
        %v1581 = vpop.permute.xlu0 %1580
        %1583 = vrot.lane.b32.xlu0 %v1510, 112
        %v1584 = vpop.permute.xlu0 %1583
        %1586 = vrot.lane.b32.xlu0 %v1510, 104
        %v1587 = vpop.permute.xlu0 %1586
        %v1589 = vpack.c.bf16 %v1510, %v1510
        %v1590 = vpack.c.bf16 %v1581, %v1581
        %v1591 = vpack.c.bf16 %v1584, %v1584
        %v1592 = vpack.c.bf16 %v1587, %v1587
        %1594 = vrot.lane.b32.xlu0 %v1543, 120
        %v1595 = vpop.permute.xlu0 %1594
        %1597 = vrot.lane.b32.xlu0 %v1543, 112
        %v1598 = vpop.permute.xlu0 %1597
        %1600 = vrot.lane.b32.xlu0 %v1543, 104
        %v1601 = vpop.permute.xlu0 %1600
        %v1603 = vpack.c.bf16 %v1543, %v1543
        %v1604 = vpack.c.bf16 %v1595, %v1595
        %v1605 = vpack.c.bf16 %v1598, %v1598
        %v1606 = vpack.c.bf16 %v1601, %v1601
        %1608 = vrot.lane.b32.xlu0 %v1576, 120
        %v1609 = vpop.permute.xlu0 %1608
        %1611 = vrot.lane.b32.xlu0 %v1576, 112
        %v1612 = vpop.permute.xlu0 %1611
        %1614 = vrot.lane.b32.xlu0 %v1576, 104
        %v1615 = vpop.permute.xlu0 %1614
        %v1617 = vpack.c.bf16 %v1576, %v1576
        %v1618 = vpack.c.bf16 %v1609, %v1609
        %v1619 = vpack.c.bf16 %v1612, %v1612
        %v1620 = vpack.c.bf16 %v1615, %v1615
        %vm1621 = vcmask 64512
        %v1623 = vsel %vm1621, %v1589, 0
        %v1626 = vsel %vm1621, %v1603, 0
        %1628 = vmatpush.bf16.xpose.msra.mxu0 0
        %1629 = vmatpush.bf16.xpose.msra.mxu0 0
        %1630 = vmatpush.bf16.xpose.msra.mxu0 0
        %1631 = vmatpush.bf16.xpose.msra.mxu0 0
        %1632 = vmatpush.bf16.xpose.msra.mxu0 0
        %1633 = vmatpush.bf16.xpose.msra.mxu0 0
        %1634 = vmatpush.bf16.xpose.msra.mxu0 0
        %1635 = vmatpush.bf16.xpose.msra.mxu0 %v1626
        %1636 = vmatmul.bf16.gmra.mxu0 %v1623
        %v1637 = vpop.f32.mrf.mxu0
        %v1638 = vadd.f32 0.0, %v1637
        %v1639 = vpop.f32.mrf.mxu0
        %1640 = vdwg.mxu0
        %v1642 = vsel %vm1621, %v1590, 0
        %v1645 = vsel %vm1621, %v1604, 0
        %1647 = vmatpush.bf16.xpose.msra.mxu0 0
        %1648 = vmatpush.bf16.xpose.msra.mxu0 0
        %1649 = vmatpush.bf16.xpose.msra.mxu0 0
        %1650 = vmatpush.bf16.xpose.msra.mxu0 0
        %1651 = vmatpush.bf16.xpose.msra.mxu0 0
        %1652 = vmatpush.bf16.xpose.msra.mxu0 0
        %1653 = vmatpush.bf16.xpose.msra.mxu0 0
        %1654 = vmatpush.bf16.xpose.msra.mxu0 %v1645
        %1655 = vmatmul.bf16.gmra.mxu0 %v1642
        %v1656 = vpop.f32.mrf.mxu0
        %v1657 = vadd.f32 0.0, %v1656
        %v1658 = vpop.f32.mrf.mxu0
        %1659 = vdwg.mxu0
        %v1661 = vsel %vm1621, %v1591, 0
        %v1664 = vsel %vm1621, %v1605, 0
        %1666 = vmatpush.bf16.xpose.msra.mxu0 0
        %1667 = vmatpush.bf16.xpose.msra.mxu0 0
        %1668 = vmatpush.bf16.xpose.msra.mxu0 0
        %1669 = vmatpush.bf16.xpose.msra.mxu0 0
        %1670 = vmatpush.bf16.xpose.msra.mxu0 0
        %1671 = vmatpush.bf16.xpose.msra.mxu0 0
        %1672 = vmatpush.bf16.xpose.msra.mxu0 0
        %1673 = vmatpush.bf16.xpose.msra.mxu0 %v1664
        %1674 = vmatmul.bf16.gmra.mxu0 %v1661
        %v1675 = vpop.f32.mrf.mxu0
        %v1676 = vadd.f32 0.0, %v1675
        %v1677 = vpop.f32.mrf.mxu0
        %1678 = vdwg.mxu0
        %v1680 = vsel %vm1621, %v1592, 0
        %v1683 = vsel %vm1621, %v1606, 0
        %1685 = vmatpush.bf16.xpose.msra.mxu0 0
        %1686 = vmatpush.bf16.xpose.msra.mxu0 0
        %1687 = vmatpush.bf16.xpose.msra.mxu0 0
        %1688 = vmatpush.bf16.xpose.msra.mxu0 0
        %1689 = vmatpush.bf16.xpose.msra.mxu0 0
        %1690 = vmatpush.bf16.xpose.msra.mxu0 0
        %1691 = vmatpush.bf16.xpose.msra.mxu0 0
        %1692 = vmatpush.bf16.xpose.msra.mxu0 %v1683
        %1693 = vmatmul.bf16.gmra.mxu0 %v1680
        %v1694 = vpop.f32.mrf.mxu0
        %v1695 = vadd.f32 0.0, %v1694
        %v1696 = vpop.f32.mrf.mxu0
        %1697 = vdwg.mxu0
        %v1698 = vmul.f32 %v1638, 0.35355338
        %v1699 = vmul.f32 %v1657, 0.35355338
        %v1700 = vmul.f32 %v1676, 0.35355338
        %v1701 = vmul.f32 %v1695, 0.35355338
        %v1702 = vsel %vm1621, %v1698, -inf
        %1703 = vmax.xlane.f32.xlu0 %v1702
        %v1704 = vpop.xlane.xlu0 %1703
        %v1705 = vsel %vm1621, %v1699, -inf
        %1706 = vmax.xlane.f32.xlu0 %v1705
        %v1707 = vpop.xlane.xlu0 %1706
        %v1708 = vsel %vm1621, %v1700, -inf
        %1709 = vmax.xlane.f32.xlu0 %v1708
        %v1710 = vpop.xlane.xlu0 %1709
        %v1711 = vsel %vm1621, %v1701, -inf
        %1712 = vmax.xlane.f32.xlu0 %v1711
        %v1713 = vpop.xlane.xlu0 %1712
        %v1714 = vsub.f32 %v1698, %v1704
        %v1715 = vsub.f32 %v1699, %v1707
        %v1716 = vsub.f32 %v1700, %v1710
        %v1717 = vsub.f32 %v1701, %v1713
        %v1718 = vmul.f32 %v1714, 1.442695
        %v1719 = vpow.pop %v1718
        %v1720 = vmul.f32 %v1715, 1.442695
        %v1721 = vpow.pop %v1720
        %v1722 = vmul.f32 %v1716, 1.442695
        %v1723 = vpow.pop %v1722
        %v1724 = vmul.f32 %v1717, 1.442695
        %v1725 = vpow.pop %v1724
        %v1726 = vsel %vm1621, %v1719, 0.0
        %1727 = vadd.xlane.f32.xlu0 %v1726
        %v1728 = vpop.xlane.xlu0 %1727
        %v1729 = vsel %vm1621, %v1721, 0.0
        %1730 = vadd.xlane.f32.xlu0 %v1729
        %v1731 = vpop.xlane.xlu0 %1730
        %v1732 = vsel %vm1621, %v1723, 0.0
        %1733 = vadd.xlane.f32.xlu0 %v1732
        %v1734 = vpop.xlane.xlu0 %1733
        %v1735 = vsel %vm1621, %v1725, 0.0
        %1736 = vadd.xlane.f32.xlu0 %v1735
        %v1737 = vpop.xlane.xlu0 %1736
        %v1738 = vrcp.pop %v1728
        %v1739 = vrcp.pop %v1731
        %v1740 = vrcp.pop %v1734
        %v1741 = vrcp.pop %v1737
        %v1742 = vmul.f32 %v1719, %v1738
        %v1743 = vmul.f32 %v1721, %v1739
        %v1744 = vmul.f32 %v1723, %v1740
        %v1745 = vmul.f32 %v1725, %v1741
        %v1746 = vpack.c.bf16 %v1742, %v1742
        %v1747 = vpack.c.bf16 %v1743, %v1743
        %v1748 = vpack.c.bf16 %v1744, %v1744
        %v1749 = vpack.c.bf16 %v1745, %v1745
        %vm1750 = vcmask 60416
        %1751 = vst.msk [vmem:[%s1298] sm:$0xf] %vm1750, %v1746
        %1752 = vst.msk [vmem:[%s1298 + $0x4] sm:$0xf] %vm1750, %v1747
        %1753 = vst.msk [vmem:[%s1298 + $0x8] sm:$0xf] %vm1750, %v1748
        %1754 = vst.msk [vmem:[%s1298 + $0xc] sm:$0xf] %vm1750, %v1749
        %v1756 = vsel %vm1621, %v1746, 0
        %vm1758 = vcmask 1043456
        %v1760 = vsel %vm1758, %v1617, 0
        %1762 = vmatpush.bf16.msra.mxu0 0
        %1763 = vmatpush.bf16.msra.mxu0 0
        %1764 = vmatpush.bf16.msra.mxu0 0
        %1765 = vmatpush.bf16.msra.mxu0 0
        %1766 = vmatpush.bf16.msra.mxu0 0
        %1767 = vmatpush.bf16.msra.mxu0 0
        %1768 = vmatpush.bf16.msra.mxu0 0
        %1769 = vmatpush.bf16.msra.mxu0 %v1760
        %1770 = vmatmul.bf16.gmra.mxu0 %v1756
        %v1771 = vpop.f32.mrf.mxu0
        %v1772 = vadd.f32 0.0, %v1771
        %v1773 = vpop.f32.mrf.mxu0
        %1774 = vdwg.mxu0
        %v1776 = vsel %vm1621, %v1747, 0
        %v1779 = vsel %vm1758, %v1618, 0
        %1781 = vmatpush.bf16.msra.mxu0 0
        %1782 = vmatpush.bf16.msra.mxu0 0
        %1783 = vmatpush.bf16.msra.mxu0 0
        %1784 = vmatpush.bf16.msra.mxu0 0
        %1785 = vmatpush.bf16.msra.mxu0 0
        %1786 = vmatpush.bf16.msra.mxu0 0
        %1787 = vmatpush.bf16.msra.mxu0 0
        %1788 = vmatpush.bf16.msra.mxu0 %v1779
        %1789 = vmatmul.bf16.gmra.mxu0 %v1776
        %v1790 = vpop.f32.mrf.mxu0
        %v1791 = vadd.f32 0.0, %v1790
        %v1792 = vpop.f32.mrf.mxu0
        %1793 = vdwg.mxu0
        %v1795 = vsel %vm1621, %v1748, 0
        %v1798 = vsel %vm1758, %v1619, 0
        %1800 = vmatpush.bf16.msra.mxu0 0
        %1801 = vmatpush.bf16.msra.mxu0 0
        %1802 = vmatpush.bf16.msra.mxu0 0
        %1803 = vmatpush.bf16.msra.mxu0 0
        %1804 = vmatpush.bf16.msra.mxu0 0
        %1805 = vmatpush.bf16.msra.mxu0 0
        %1806 = vmatpush.bf16.msra.mxu0 0
        %1807 = vmatpush.bf16.msra.mxu0 %v1798
        %1808 = vmatmul.bf16.gmra.mxu0 %v1795
        %v1809 = vpop.f32.mrf.mxu0
        %v1810 = vadd.f32 0.0, %v1809
        %v1811 = vpop.f32.mrf.mxu0
        %1812 = vdwg.mxu0
        %v1814 = vsel %vm1621, %v1749, 0
        %v1817 = vsel %vm1758, %v1620, 0
        %1819 = vmatpush.bf16.msra.mxu0 0
        %1820 = vmatpush.bf16.msra.mxu0 0
        %1821 = vmatpush.bf16.msra.mxu0 0
        %1822 = vmatpush.bf16.msra.mxu0 0
        %1823 = vmatpush.bf16.msra.mxu0 0
        %1824 = vmatpush.bf16.msra.mxu0 0
        %1825 = vmatpush.bf16.msra.mxu0 0
        %1826 = vmatpush.bf16.msra.mxu0 %v1817
        %1827 = vmatmul.bf16.gmra.mxu0 %v1814
        %v1828 = vpop.f32.mrf.mxu0
        %v1829 = vadd.f32 0.0, %v1828
        %v1830 = vpop.f32.mrf.mxu0
        %1831 = vdwg.mxu0
        %1833 = vrot.lane.b32.xlu0 %v1791, 8
        %v1834 = vpop.permute.xlu0 %1833
        %1837 = vrot.lane.b32.xlu0 %v1810, 16
        %v1838 = vpop.permute.xlu0 %1837
        %1841 = vrot.lane.b32.xlu0 %v1829, 24
        %v1842 = vpop.permute.xlu0 %1841
        %v1844 = vsel %vm1621, %v1772, %v1834
        %vm1845 = vcmask 130048
        %v1846 = vsel %vm1845, %v1844, %v1838
        %vm1847 = vcmask 195584
        %v1848 = vsel %vm1847, %v1846, %v1842
        %v1849 = vpack.c.bf16 %v1848, %v1848
        %v1850 = vld [vmem:[%s1344] sm:$0xf]
        %v1851 = vld [vmem:[%s1344 + $0x4] sm:$0xf]
        %v1852 = vld [vmem:[%s1344 + $0x8] sm:$0xf]
        %v1853 = vld [vmem:[%s1344 + $0xc] sm:$0xf]
        %v1854 = vld [vmem:[%s1347] sm:$0x1]
        %v1856 = vperm.slane %v1854, 0
        %v1862 = vunpack.c.l.b16 %v1850
        %v1863 = vunpack.c.l.b16 %v1851
        %v1864 = vunpack.c.l.b16 %v1852
        %v1865 = vunpack.c.l.b16 %v1853
        %v1866 = vpack.c.b16 %v1863, %v1862
        %v1867 = vpack.c.b16 %v1865, %v1864
        %v1871 = vsel %vm1438, %v1849, 0
        %1873 = vmatpush.bf16.msra.mxu0 0
        %1874 = vmatpush.bf16.msra.mxu0 0
        %1875 = vmatpush.bf16.msra.mxu0 0
        %1876 = vmatpush.bf16.msra.mxu0 0
        %1877 = vmatpush.bf16.msra.mxu0 0
        %1878 = vmatpush.bf16.msra.mxu0 0
        %1879 = vmatpush.bf16.msra.mxu0 %v1867
        %1880 = vmatpush.bf16.msra.mxu0 %v1866
        %1881 = vmatmul.bf16.gmra.mxu0 %v1871
        %v1882 = vpop.f32.mrf.mxu0
        %v1883 = vadd.f32 %v1856, %v1882
        %v1884 = vpop.f32.mrf.mxu0
        %1885 = vdwg.mxu0
        %v1886 = vadd.f32 %v1435, %v1883
        %v1887 = vld [vmem:[%s1350] sm:$0x1]
        %v1888 = vld [vmem:[%s1353] sm:$0x1]
        %v1889 = vsel %vm1438, %v1886, 0.0
        %1890 = vadd.xlane.f32.xlu0 %v1889
        %v1891 = vpop.xlane.xlu0 %1890
        %v1892 = vmul.f32 %v1891, %v1448
        %v1893 = vsub.f32 %v1886, %v1892
        %v1894 = vmul.f32 %v1893, %v1893
        %v1895 = vsel %vm1438, %v1894, 0.0
        %1896 = vadd.xlane.f32.xlu0 %v1895
        %v1897 = vpop.xlane.xlu0 %1896
        %v1898 = vmul.f32 %v1897, %v1448
        %v1899 = vadd.f32 %v1898, 1e-05
        %v1900 = vrsqrt.pop %v1899
        %v1901 = vmul.f32 %v1900, %v1899
        %v1902 = vmul.f32 %v1901, %v1900
        %v1903 = vmul.f32 0.5, %v1902
        %v1904 = vsub.f32 1.5, %v1903
        %v1905 = vmul.f32 %v1900, %v1904
        %vm1906 = vweird.f32 %v1899
        %vm1907 = vweird.f32 %v1900
        %vm1908 = vmor %vm1906, %vm1907
        %v1909 = vsel %vm1908, %v1900, %v1905
        %v1910 = vmul.f32 %v1893, %v1909
        %v1912 = vperm.slane %v1887, 0
        %v1914 = vmul.f32 %v1910, %v1912
        %v1916 = vperm.slane %v1888, 0
        %v1918 = vadd.f32 %v1914, %v1916
        %v1919 = vpack.c.bf16 %v1918, %v1918
        %v1920 = vld [vmem:[%s1358] sm:$0xf]
        %v1921 = vld [vmem:[%s1358 + $0x4] sm:$0xf]
        %v1922 = vld [vmem:[%s1358 + $0x8] sm:$0xf]
        %v1923 = vld [vmem:[%s1358 + $0xc] sm:$0xf]
        %v1924 = vld [vmem:[%s1149] sm:$0x1]
        %v1926 = vperm.slane %v1924, 0
        %v1932 = vunpack.c.l.b16 %v1920
        %v1933 = vunpack.c.l.b16 %v1921
        %v1934 = vunpack.c.l.b16 %v1922
        %v1935 = vunpack.c.l.b16 %v1923
        %v1936 = vpack.c.b16 %v1933, %v1932
        %v1937 = vpack.c.b16 %v1935, %v1934
        %v1941 = vsel %vm1438, %v1919, 0
        %1943 = vmatpush.bf16.msra.mxu0 0
        %1944 = vmatpush.bf16.msra.mxu0 0
        %1945 = vmatpush.bf16.msra.mxu0 0
        %1946 = vmatpush.bf16.msra.mxu0 0
        %1947 = vmatpush.bf16.msra.mxu0 0
        %1948 = vmatpush.bf16.msra.mxu0 0
        %1949 = vmatpush.bf16.msra.mxu0 %v1937
        %1950 = vmatpush.bf16.msra.mxu0 %v1936
        %1951 = vmatmul.bf16.gmra.mxu0 %v1941
        %v1952 = vpop.f32.mrf.mxu0
        %v1953 = vadd.f32 %v1926, %v1952
        %v1954 = vpop.f32.mrf.mxu0
        %1955 = vdwg.mxu0
        %v1956 = vmul.f32 %v1953, 0.5
        %v1957 = vmul.f32 %v1953, 0.044715
        %v1958 = vmul.f32 %v1957, %v1953
        %v1959 = vmul.f32 %v1958, %v1953
        %v1960 = vadd.f32 %v1953, %v1959
        %v1961 = vmul.f32 %v1960, 0.7978846
        %v1962 = vtanh.pop %v1961
        %v1963 = vadd.f32 %v1962, 1.0
        %v1964 = vmul.f32 %v1956, %v1963
        %v1965 = vpack.c.bf16 %v1964, %v1964
        %v1966 = vld [vmem:[%s1363] sm:$0xf]
        %v1967 = vld [vmem:[%s1363 + $0x4] sm:$0xf]
        %v1968 = vld [vmem:[%s1363 + $0x8] sm:$0xf]
        %v1969 = vld [vmem:[%s1363 + $0xc] sm:$0xf]
        %v1970 = vld [vmem:[%s1363 + $0x10] sm:$0xf]
        %v1971 = vld [vmem:[%s1363 + $0x14] sm:$0xf]
        %v1972 = vld [vmem:[%s1363 + $0x18] sm:$0xf]
        %v1973 = vld [vmem:[%s1363 + $0x1c] sm:$0xf]
        %v1974 = vld [vmem:[%s1366] sm:$0x1]
        %v1976 = vperm.slane %v1974, 0
        %v1986 = vunpack.c.l.b16 %v1966
        %v1987 = vunpack.c.l.b16 %v1967
        %v1988 = vunpack.c.l.b16 %v1968
        %v1989 = vunpack.c.l.b16 %v1969
        %v1990 = vunpack.c.l.b16 %v1970
        %v1991 = vunpack.c.l.b16 %v1971
        %v1992 = vunpack.c.l.b16 %v1972
        %v1993 = vunpack.c.l.b16 %v1973
        %v1994 = vpack.c.b16 %v1987, %v1986
        %v1995 = vpack.c.b16 %v1989, %v1988
        %v1996 = vpack.c.b16 %v1991, %v1990
        %v1997 = vpack.c.b16 %v1993, %v1992
        %vm2002 = vcmask 523264
        %v2004 = vsel %vm2002, %v1965, 0
        %2006 = vmatpush.bf16.msra.mxu0 0
        %2007 = vmatpush.bf16.msra.mxu0 0
        %2008 = vmatpush.bf16.msra.mxu0 0
        %2009 = vmatpush.bf16.msra.mxu0 0
        %2010 = vmatpush.bf16.msra.mxu0 %v1997
        %2011 = vmatpush.bf16.msra.mxu0 %v1996
        %2012 = vmatpush.bf16.msra.mxu0 %v1995
        %2013 = vmatpush.bf16.msra.mxu0 %v1994
        %2014 = vmatmul.bf16.gmra.mxu0 %v2004
        %v2015 = vpop.f32.mrf.mxu0
        %v2016 = vadd.f32 %v1976, %v2015
        %v2017 = vpop.f32.mrf.mxu0
        %2018 = vdwg.mxu0
        %v2019 = vadd.f32 %v1886, %v2016
        %2020 = vst.msk [vmem:[%s1291] sm:$0xff] %vm1438, %v2019
        %p2021 = scmp.eq.s32.totalorder %s97, 1
        // Predicated region
        $region161: #{tpu_custom_call.1} parent=139 // pred_check
          %p2022 = pneg %p2021
        $region162: #{tpu_custom_call.1} parent=139 // pred_check_branch
          %2024 = sbr.rel (%p2022) target = $region164
        $region163: #{tpu_custom_call.1} parent=139 // pred_region
          %v2025 = vld [vmem:[%s43] sm:$0xff]
          %v2026 = vld [vmem:[%s43 + $0x8] sm:$0xff]
          %v2027 = vld [vmem:[%s43 + $0x10] sm:$0xff]
          %v2028 = vld [vmem:[%s43 + $0x18] sm:$0xff]
          %v2029 = vld [vmem:[%s45] sm:$0x1]
          %v2031 = vperm.slane %v2029, 0
          %v2034 = vsel %vm1438, %v2019, 0
          %2036 = vmatpush.msra.mxu0 0.0
          %2037 = vmatpush.msra.mxu0 0.0
          %2038 = vmatpush.msra.mxu0 0.0
          %2039 = vmatpush.msra.mxu0 0.0
          %2040 = vmatpush.msra.mxu0 0.0
          %2041 = vmatpush.msra.mxu0 0.0
          %2042 = vmatpush.msra.mxu0 0.0
          %2043 = vmatpush.msra.mxu0 0.0
          %2044 = vmatpush.msra.mxu0 0.0
          %2045 = vmatpush.msra.mxu0 0.0
          %2046 = vmatpush.msra.mxu0 0.0
          %2047 = vmatpush.msra.mxu0 0.0
          %2048 = vmatpush.msra.mxu0 %v2028
          %2049 = vmatpush.msra.mxu0 %v2027
          %2050 = vmatpush.msra.mxu0 %v2026
          %2051 = vmatpush.msra.mxu0 %v2025
          %2052 = vmatmul.f32.gmra.mxu0 %v2034
          %v2053 = vpop.f32.mrf.mxu0
          %v2054 = vadd.f32 %v2031, %v2053
          %2055 = vdwg.mxu0
          %v2056 = vtanh.pop %v2054
          %v2057 = vld [vmem:[%s47] sm:$0x1]
          %v2059 = vsel %vm1845, %v2057, 0
          %v2062 = vsel %vm1845, %v2056, 0
          %2064 = vmatpush.xpose.msra.mxu0 0.0
          %2065 = vmatpush.xpose.msra.mxu0 0.0
          %2066 = vmatpush.xpose.msra.mxu0 0.0
          %2067 = vmatpush.xpose.msra.mxu0 0.0
          %2068 = vmatpush.xpose.msra.mxu0 0.0
          %2069 = vmatpush.xpose.msra.mxu0 0.0
          %2070 = vmatpush.xpose.msra.mxu0 0.0
          %2071 = vmatpush.xpose.msra.mxu0 0.0
          %2072 = vmatpush.xpose.msra.mxu0 0.0
          %2073 = vmatpush.xpose.msra.mxu0 0.0
          %2074 = vmatpush.xpose.msra.mxu0 0.0
          %2075 = vmatpush.xpose.msra.mxu0 0.0
          %2076 = vmatpush.xpose.msra.mxu0 0.0
          %2077 = vmatpush.xpose.msra.mxu0 0.0
          %2078 = vmatpush.xpose.msra.mxu0 0.0
          %2079 = vmatpush.xpose.msra.mxu0 %v2062
          %2080 = vmatmul.f32.gmra.mxu0 %v2059
          %v2081 = vpop.f32.mrf.mxu0
          %v2082 = vadd.f32 0.0, %v2081
          %2083 = vdwg.mxu0
          %vm2084 = vcmask 57344
          %v2085 = vsel %vm2084, %v2082, -inf
          %2086 = vmax.xlane.f32.xlu0 %v2085
          %v2087 = vpop.xlane.xlu0 %2086
          %v2088 = vsub.f32 %v2082, %v2087
          %v2089 = vmul.f32 %v2088, 1.442695
          %v2090 = vpow.pop %v2089
          %v2091 = vsel %vm2084, %v2090, 0.0
          %2092 = vadd.xlane.f32.xlu0 %v2091
          %v2093 = vpop.xlane.xlu0 %2092
          %v2094 = vrcp.pop %v2093
          %v2095 = vmul.f32 %v2093, %v2094
          %v2096 = vsub.f32 1.0, %v2095
          %v2097 = vmul.f32 %v2094, %v2096
          %v2098 = vadd.f32 %v2094, %v2097
          %vm2099 = vweird.f32 %v2093
          %vm2100 = vweird.f32 %v2094
          %vm2101 = vmor %vm2099, %vm2100
          %v2102 = vsel %vm2101, %v2094, %v2098
          %v2103 = vand.u32 2147483647, %v2093
          %vm2104 = vcmp.eq.f32.partialorder %v2103, 8.507059e+37
          %v2105 = vand.u32 %v2093, 2147483648
          %v2106 = vor.u32 1.1754944e-38, %v2105
          %v2107 = vsel %vm2104, %v2106, %v2102
          %v2108 = vmul.f32 %v2090, %v2107
          %v2110 = vsel %vm1621, %v2108, 0
          %2112 = vmatpush.msra.mxu0 0.0
          %2113 = vmatpush.msra.mxu0 0.0
          %2114 = vmatpush.msra.mxu0 0.0
          %2115 = vmatpush.msra.mxu0 0.0
          %2116 = vmatpush.msra.mxu0 0.0
          %2117 = vmatpush.msra.mxu0 0.0
          %2118 = vmatpush.msra.mxu0 0.0
          %2119 = vmatpush.msra.mxu0 0.0
          %2120 = vmatpush.msra.mxu0 0.0
          %2121 = vmatpush.msra.mxu0 0.0
          %2122 = vmatpush.msra.mxu0 0.0
          %2123 = vmatpush.msra.mxu0 0.0
          %2124 = vmatpush.msra.mxu0 0.0
          %2125 = vmatpush.msra.mxu0 0.0
          %2126 = vmatpush.msra.mxu0 0.0
          %2127 = vmatpush.msra.mxu0 %v2019
          %2128 = vmatmul.f32.gmra.mxu0 %v2110
          %v2129 = vpop.f32.mrf.mxu0
          %v2130 = vadd.f32 0.0, %v2129
          %2131 = vdwg.mxu0
          %v2132 = vld [vmem:[%s49] sm:$0x3]
          %v2133 = vld [vmem:[%s51] sm:$0x3]
          %2135 = vset.pattern.permute.xlu0 0
          %2136 = vperm.xlu0 %2135, %v2133
          %v2137 = vpop.permute.xlu0 %2136
          %v2140 = vsel %vm1438, %v2132, 0
          %2142 = vmatpush.xpose.msra.mxu0 0.0
          %2143 = vmatpush.xpose.msra.mxu0 0.0
          %2144 = vmatpush.xpose.msra.mxu0 0.0
          %2145 = vmatpush.xpose.msra.mxu0 0.0
          %2146 = vmatpush.xpose.msra.mxu0 0.0
          %2147 = vmatpush.xpose.msra.mxu0 0.0
          %2148 = vmatpush.xpose.msra.mxu0 0.0
          %2149 = vmatpush.xpose.msra.mxu0 0.0
          %2150 = vmatpush.xpose.msra.mxu0 0.0
          %2151 = vmatpush.xpose.msra.mxu0 0.0
          %2152 = vmatpush.xpose.msra.mxu0 0.0
          %2153 = vmatpush.xpose.msra.mxu0 0.0
          %2154 = vmatpush.xpose.msra.mxu0 0.0
          %2155 = vmatpush.xpose.msra.mxu0 0.0
          %2156 = vmatpush.xpose.msra.mxu0 0.0
          %2157 = vmatpush.xpose.msra.mxu0 %v2034
          %2158 = vmatmul.f32.gmra.mxu0 %v2140
          %v2159 = vpop.f32.mrf.mxu0
          %v2160 = vadd.f32 %v2137, %v2159
          %2161 = vdwg.mxu0
          %v2162 = vld [vmem:[%s53] sm:$0xff]
          %v2163 = vld [vmem:[%s53 + $0x8] sm:$0xff]
          %v2164 = vld [vmem:[%s53 + $0x10] sm:$0xff]
          %v2165 = vld [vmem:[%s53 + $0x18] sm:$0xff]
          %v2166 = vld [vmem:[%s55] sm:$0x1]
          %v2168 = vsel %vm1438, %v2130, 0
          %2170 = vmatpush.msra.mxu0 0.0
          %2171 = vmatpush.msra.mxu0 0.0
          %2172 = vmatpush.msra.mxu0 0.0
          %2173 = vmatpush.msra.mxu0 0.0
          %2174 = vmatpush.msra.mxu0 0.0
          %2175 = vmatpush.msra.mxu0 0.0
          %2176 = vmatpush.msra.mxu0 0.0
          %2177 = vmatpush.msra.mxu0 0.0
          %2178 = vmatpush.msra.mxu0 0.0
          %2179 = vmatpush.msra.mxu0 0.0
          %2180 = vmatpush.msra.mxu0 0.0
          %2181 = vmatpush.msra.mxu0 0.0
          %2182 = vmatpush.msra.mxu0 %v2165
          %2183 = vmatpush.msra.mxu0 %v2164
          %2184 = vmatpush.msra.mxu0 %v2163
          %2185 = vmatpush.msra.mxu0 %v2162
          %2186 = vmatmul.f32.gmra.mxu0 %v2168
          %v2187 = vpop.f32.mrf.mxu0
          %v2188 = vadd.f32 %v2166, %v2187
          %2189 = vdwg.mxu0
          %v2190 = vmul.f32 %v2188, 0.5
          %v2191 = vmul.f32 %v2188, 0.044715
          %v2192 = vmul.f32 %v2191, %v2188
          %v2193 = vmul.f32 %v2192, %v2188
          %v2194 = vadd.f32 %v2188, %v2193
          %v2195 = vmul.f32 %v2194, 0.7978846
          %v2196 = vtanh.pop %v2195
          %v2197 = vadd.f32 %v2196, 1.0
          %v2198 = vmul.f32 %v2190, %v2197
          %v2199 = vld [vmem:[%s57] sm:$0xff]
          %v2200 = vld [vmem:[%s57 + $0x8] sm:$0xff]
          %v2201 = vld [vmem:[#allocation2] sm:$0x1]
          %v2203 = vsel %vm1845, %v2198, 0
          %2205 = vmatpush.msra.mxu0 0.0
          %2206 = vmatpush.msra.mxu0 0.0
          %2207 = vmatpush.msra.mxu0 0.0
          %2208 = vmatpush.msra.mxu0 0.0
          %2209 = vmatpush.msra.mxu0 0.0
          %2210 = vmatpush.msra.mxu0 0.0
          %2211 = vmatpush.msra.mxu0 0.0
          %2212 = vmatpush.msra.mxu0 0.0
          %2213 = vmatpush.msra.mxu0 0.0
          %2214 = vmatpush.msra.mxu0 0.0
          %2215 = vmatpush.msra.mxu0 0.0
          %2216 = vmatpush.msra.mxu0 0.0
          %2217 = vmatpush.msra.mxu0 0.0
          %2218 = vmatpush.msra.mxu0 0.0
          %2219 = vmatpush.msra.mxu0 %v2200
          %2220 = vmatpush.msra.mxu0 %v2199
          %2221 = vmatmul.f32.gmra.mxu0 %v2203
          %v2222 = vpop.f32.mrf.mxu0
          %v2223 = vadd.f32 %v2201, %v2222
          %2224 = vdwg.mxu0
          %v2225 = vmax.f32 %v2223, 0.0
          %v2226 = vmin.f32 %v2225, 3.0
          %2227 = vst.msk [vmem:[%s1305] sm:$0x1] %vm2084, %v2108
          %vm2228 = vcmask 58368
          %2229 = vst.msk [vmem:[%s1305 + $0x1] sm:$0x3] %vm2228, %v2160
          %2231 = vset.pattern.permute.xlu0 0
          %2232 = vperm.xlu0 %2231, %v2226
          %v2233 = vpop.permute.xlu0 %2232
          %2235 = vst.msk [vmem:[%s1305 + $0x3] sm:$0x1] %vm2084, %v2233
        $region164: #{tpu_custom_call.1} parent=139 // pred_fallthru
          _
        %s2236 = sand.u32 %s832, 1
        %s2237 = scalar_lea.sflag [#allocation5], %s2236
        %s2238 = sand.u32 %s832, 1
        %s2239 = smul.addr %s2238, 8
        %s2240 = scalar_lea.vmem [#allocation11], %s2239
        %s2241 = sand.u32 %s92, 1
        %s2242 = scalar_lea.sflag [#allocation13], %s2241
        %s2243 = sand.u32 %s860, 1
        %s2244 = smul.addr %s2243, 16
        %s2245 = scalar_lea.vmem [#allocation12], %s2244
        %s2246 = sand.u32 %s92, 1
        %s2247 = scalar_lea.sflag [#allocation13], %s2246
        %s2248 = sand.u32 %s886, 1
        %s2249 = smul.addr %s2248, 4
        %s2250 = scalar_lea.vmem [#allocation14], %s2249
        // Predicated region
        $region165: #{tpu_custom_call.1} parent=139 // pred_check
          %p2251 = pneg %p842
        $region166: #{tpu_custom_call.1} parent=139 // pred_check_branch
          %2253 = sbr.rel (%p2251) target = $region168
        $region167: #{tpu_custom_call.1} parent=139 // pred_region
          %2255 = vsyncadd %s2237, 0
          %s2256 = smul.addr %s96, 8
          %s2257 = scalar_lea.hbm %s61, %s2256
          %s2259 = sshll.u32 %s2240, 4
          %s2260 = int_to_ptr.vmem [resolvable:$true] %s2259
          %s2261 = sshll.u32 %s2257, 4
          %s2262 = int_to_ptr.hbm [resolvable:$true] %s2261
          %2264 = dma.vmem_to_hbm [thread:$0]  %s2260, 128, %s2262, %s2237
        $region168: #{tpu_custom_call.1} parent=139 // pred_fallthru
          _
        // Predicated region
        $region169: #{tpu_custom_call.1} parent=139 // pred_check
          %p2265 = pneg %p870
        $region170: #{tpu_custom_call.1} parent=139 // pred_check_branch
          %2267 = sbr.rel (%p2265) target = $region172
        $region171: #{tpu_custom_call.1} parent=139 // pred_region
          %2269 = vsyncadd %s2242, 0
          %s2270 = smul.addr %s97, 4
          %s2271 = smul.addr %s96, 8
          %s2272 = sadd.s32 %s2270, %s2271
          %s2273 = smul.addr %s2272, 4
          %s2274 = scalar_lea.hbm %s63, %s2273
          %s2275 = sshll.u32 %s2245, 4
          %s2276 = int_to_ptr.vmem [resolvable:$true] %s2275
          %s2277 = sshll.u32 %s2274, 4
          %s2278 = int_to_ptr.hbm [resolvable:$true] %s2277
          %2283 = dma.vmem_to_hbm [thread:$0]  %s2276, 256, %s2278, %s2242, 64, 64, 4
        $region172: #{tpu_custom_call.1} parent=139 // pred_fallthru
          _
        // Predicated region
        $region173: #{tpu_custom_call.1} parent=139 // pred_check
          %p2284 = pneg %p896
        $region174: #{tpu_custom_call.1} parent=139 // pred_check_branch
          %2286 = sbr.rel (%p2284) target = $region176
        $region175: #{tpu_custom_call.1} parent=139 // pred_region
          %2288 = vsyncadd %s2247, 0
          %s2289 = smul.addr %s96, 4
          %s2290 = scalar_lea.hbm %s65, %s2289
          %s2292 = sshll.u32 %s2250, 4
          %s2293 = int_to_ptr.vmem [resolvable:$true] %s2292
          %s2294 = sshll.u32 %s2290, 4
          %s2295 = int_to_ptr.hbm [resolvable:$true] %s2294
          %2297 = dma.vmem_to_hbm [thread:$0]  %s2293, 64, %s2295, %s2247
        $region176: #{tpu_custom_call.1} parent=139 // pred_fallthru
          _
      $region140: #{tpu_custom_call.1} parent=5 // pred_fallthru
        _
      %p2298 = scmp.le.s32.totalorder 2, %s87
      // Predicated region
      $region177: #{tpu_custom_call.1} parent=5 // pred_check
        %p2299 = pneg %p2298
      $region178: #{tpu_custom_call.1} parent=5 // pred_check_branch
        %2301 = sbr.rel (%p2299) target = $region180
      $region179: #{tpu_custom_call.1} parent=5 // pred_region
        %s2302 = ssub.s32 %s87, 2
        // Predicated region
        $region181: #{tpu_custom_call.1} parent=179 // pred_check
          %p2303 = pneg %p848
        $region182: #{tpu_custom_call.1} parent=179 // pred_check_branch
          %2305 = sbr.rel (%p2303) target = $region184
        $region183: #{tpu_custom_call.1} parent=179 // pred_region
          %s2306 = sand.u32 %s833, 1
          %s2307 = scalar_lea.sflag [#allocation5], %s2306
          %s2308 = sand.u32 %s833, 1
          %s2309 = smul.addr %s2308, 8
          %s2310 = scalar_lea.vmem [#allocation11], %s2309
          %2312 = dma.done %s2307, 128
        $region184: #{tpu_custom_call.1} parent=179 // pred_fallthru
          _
        // Predicated region
        $region185: #{tpu_custom_call.1} parent=179 // pred_check
          %p2313 = pneg %p876
        $region186: #{tpu_custom_call.1} parent=179 // pred_check_branch
          %2315 = sbr.rel (%p2313) target = $region188
        $region187: #{tpu_custom_call.1} parent=179 // pred_region
          %s2316 = sand.u32 %s93, 1
          %s2317 = scalar_lea.sflag [#allocation13], %s2316
          %s2318 = sand.u32 %s861, 1
          %s2319 = smul.addr %s2318, 16
          %s2320 = scalar_lea.vmem [#allocation12], %s2319
          %2322 = dma.done %s2317, 256
        $region188: #{tpu_custom_call.1} parent=179 // pred_fallthru
          _
        // Predicated region
        $region189: #{tpu_custom_call.1} parent=179 // pred_check
          %p2323 = pneg %p902
        $region190: #{tpu_custom_call.1} parent=179 // pred_check_branch
          %2325 = sbr.rel (%p2323) target = $region192
        $region191: #{tpu_custom_call.1} parent=179 // pred_region
          %s2326 = sand.u32 %s93, 1
          %s2327 = scalar_lea.sflag [#allocation13], %s2326
          %s2328 = sand.u32 %s887, 1
          %s2329 = smul.addr %s2328, 4
          %s2330 = scalar_lea.vmem [#allocation14], %s2329
          %2332 = dma.done %s2327, 64
        $region192: #{tpu_custom_call.1} parent=179 // pred_fallthru
          _
      $region180: #{tpu_custom_call.1} parent=5 // pred_fallthru
        _
    $region6: #{tpu_custom_call.1} parent=1 // loop_footer
      %s91 = sadd.s32 1, %s87
    $region7: #{tpu_custom_call.1} parent=1 // loop_footer_branch
      %86 = sbr.rel target = $region3
    $region8: #{tpu_custom_call.1} parent=1 // loop_exit
      _
    %2333 = vsyncpa [#allocation4], 1
    %s2334 = scalar_lea.sflag [#allocation4], 1
    %2335 = vsyncpa %s2334, 1
    %2336 = vsyncpa [#allocation7], 1
    %2337 = vsyncpa [#allocation10], 1
    %s2338 = scalar_lea.sflag [#allocation10], 1
    %2339 = vsyncpa %s2338, 1
    %2340 = vsyncpa [#allocation5], 1
    %s2341 = scalar_lea.sflag [#allocation5], 1
    %2342 = vsyncpa %s2341, 1
    %2343 = vsyncpa [#allocation13], 1
    %s2344 = scalar_lea.sflag [#allocation13], 1
    %2345 = vsyncpa %s2344, 1

// kernel: tpu_custom_call.1
$region0: #{tpu_custom_call.1}
  #allocation0 [shape = 'u32[]', space=smem, size = 0x4, offset = 0x4, fixed_abs, tag = 'smem constant byte address 0x4 - core index']
  #allocation1 [shape = 'u32[72,128]{1,0:T(1,128)}', space=vmem, size = 0x9000, scoped, tag = 'internal scratch']
  #allocation2 [shape = 'f32[1,1]{1,0:T(1,128)S(1)}', space=vmem, size = 0x200, scoped, tag = 'scoped memory for tpu_custom_call.1']
  %s0 = inlined_call_operand.smem [shape: u32[33], index: -1, kind: input, shape index: {}]
  %s1 = sld [smem:[%s0]]
  %s2 = scalar_lea.smem %s0, 1
  %s3 = sld [smem:[%s2]]
  %s4 = scalar_lea.smem %s0, 2
  %s5 = sld [smem:[%s4]]
  %s6 = scalar_lea.smem %s0, 3
  %s7 = sld [smem:[%s6]]
  %s8 = scalar_lea.smem %s0, 4
  %s9 = sld [smem:[%s8]]
  %s10 = scalar_lea.smem %s0, 5
  %s11 = sld [smem:[%s10]]
  %s12 = scalar_lea.smem %s0, 6
  %s13 = sld [smem:[%s12]]
  %s14 = scalar_lea.smem %s0, 7
  %s15 = sld [smem:[%s14]]
  %s16 = scalar_lea.smem %s0, 8
  %s17 = sld [smem:[%s16]]
  %s18 = scalar_lea.smem %s0, 9
  %s19 = sld [smem:[%s18]]
  %s20 = scalar_lea.smem %s0, 10
  %s21 = sld [smem:[%s20]]
  %s22 = scalar_lea.smem %s0, 11
  %s23 = sld [smem:[%s22]]
  %s24 = scalar_lea.smem %s0, 12
  %s25 = sld [smem:[%s24]]
  %s26 = scalar_lea.smem %s0, 13
  %s27 = sld [smem:[%s26]]
  %s28 = scalar_lea.smem %s0, 14
  %s29 = sld [smem:[%s28]]
  %s30 = scalar_lea.smem %s0, 15
  %s31 = sld [smem:[%s30]]
  %s32 = scalar_lea.smem %s0, 16
  %s33 = sld [smem:[%s32]]
  %s34 = scalar_lea.smem %s0, 17
  %s35 = sld [smem:[%s34]]
  %s36 = scalar_lea.smem %s0, 18
  %s37 = sld [smem:[%s36]]
  %s38 = scalar_lea.smem %s0, 19
  %s39 = sld [smem:[%s38]]
  %s40 = scalar_lea.smem %s0, 20
  %s41 = sld [smem:[%s40]]
  %s42 = scalar_lea.smem %s0, 21
  %s43 = sld [smem:[%s42]]
  %s44 = scalar_lea.smem %s0, 22
  %s45 = sld [smem:[%s44]]
  %s46 = scalar_lea.smem %s0, 23
  %s47 = sld [smem:[%s46]]
  %s48 = scalar_lea.smem %s0, 24
  %s49 = sld [smem:[%s48]]
  %s50 = scalar_lea.smem %s0, 25
  %s51 = sld [smem:[%s50]]
  %s52 = scalar_lea.smem %s0, 26
  %s53 = sld [smem:[%s52]]
  %s54 = scalar_lea.smem %s0, 27
  %s55 = sld [smem:[%s54]]
  %s56 = scalar_lea.smem %s0, 28
  %s57 = sld [smem:[%s56]]
  %s58 = scalar_lea.smem %s0, 29
  %s59 = sld [smem:[%s58]]
  %s60 = scalar_lea.smem %s0, 30
  %s61 = sld [smem:[%s60]]
  %s62 = scalar_lea.smem %s0, 31
  %s63 = sld [smem:[%s62]]
  %s64 = scalar_lea.smem %s0, 32
  %s65 = sld [smem:[%s64]]
  %66 = xla_tuple %s61, %s63, %s65
  %s67 = sld [smem:[#allocation0]]
  $region193: #{tpu_custom_call.1} parent=0
    _
  %s69 = ssub.s32 1, %s67
  %s70 = scalar_select 0, %s69, %s67
  %v71 = vstv %s59
  %72 = vst [vmem:[#allocation2] sm:$0x1] %v71
  $region1: #{tpu_custom_call.1} parent=0
    #allocation3 [shape = 'u8[4096]{0}', space=vmem, size = 0x1000, scoped, tag = 'input window, operand 0']
    #allocation4 [shape = 's32[2]{0}', space=sflag, size = 0x8, scoped, tag = 'scoped memory for tpu_custom_call.1']
    #allocation5 [shape = 's32[2]{0}', space=sflag, size = 0x8, scoped, tag = 'scoped memory for tpu_custom_call.1']
    #allocation6 [shape = 'u8[4096]{0}', space=vmem, size = 0x1000, scoped, tag = 'input window, operand 2, single buffered']
    #allocation7 [shape = 's32[1]{0}', space=sflag, size = 0x4, scoped, tag = 'scoped memory for tpu_custom_call.1']
    #allocation8 [shape = 'u8[512]{0}', space=vmem, size = 0x400, scoped, tag = 'input window, operand 4, single buffered']
    #allocation9 [shape = 'u8[1024]{0}', space=vmem, size = 0x400, scoped, tag = 'input window, operand 18']
    #allocation10 [shape = 's32[2]{0}', space=sflag, size = 0x8, scoped, tag = 'scoped memory for tpu_custom_call.1']
    #allocation11 [shape = 'u8[8192]{0}', space=vmem, size = 0x2000, scoped, tag = 'output window, operand 0']
    #allocation12 [shape = 'u8[16384]{0}', space=vmem, size = 0x4000, scoped, tag = 'output window, operand 1']
    #allocation13 [shape = 's32[2]{0}', space=sflag, size = 0x8, scoped, tag = 'scoped memory for tpu_custom_call.1']
    #allocation14 [shape = 'u8[4096]{0}', space=vmem, size = 0x1000, scoped, tag = 'output window, operand 2']
    %73 = vsyncpa [#allocation4], 0
    %s74 = scalar_lea.sflag [#allocation4], 1
    %75 = vsyncpa %s74, 0
    %76 = vsyncpa [#allocation7], 0
    %77 = vsyncpa [#allocation10], 0
    %s78 = scalar_lea.sflag [#allocation10], 1
    %79 = vsyncpa %s78, 0
    %80 = vsyncpa [#allocation5], 0
    %s81 = scalar_lea.sflag [#allocation5], 1
    %82 = vsyncpa %s81, 0
    %83 = vsyncpa [#allocation13], 0
    %s84 = scalar_lea.sflag [#allocation13], 1
    %85 = vsyncpa %s84, 0
    loop: start=0, step=1, limit=6
    $region2: #{tpu_custom_call.1} parent=1 // loop_pre_header
      _
    $region3: #{tpu_custom_call.1} parent=1 // loop_header
      %s87 = sphi 0, %s91
      %p88 = scmp.ge.s32.totalorder %s87, 6
      %s94 = sphi 0, %s106
      %s95 = sphi 0, %s102
      %s96 = sphi 0, %s94
      %s97 = sphi 0, %s95
      %s98 = sphi 0, %s96
      %s99 = sphi 0, %s97
      %s109 = sphi 0, %s111
      %s112 = sphi 0, %s109
      %s113 = sphi 0, %s112
      %s129 = sphi 0, %s113
      %s135 = sphi 0, %s137
      %s138 = sphi 0, %s135
      %s139 = sphi 0, %s138
      %s155 = sphi 0, %s139
      %s159 = sphi 0, %s159
      %s161 = sphi 0, %s159
      %s162 = sphi 0, %s161
      %s176 = sphi 0, %s162
      %s180 = sphi 0, %s180
      %s182 = sphi 0, %s180
      %s183 = sphi 0, %s182
      %s197 = sphi 0, %s183
      %s201 = sphi 0, %s201
      %s203 = sphi 0, %s201
      %s204 = sphi 0, %s203
      %s218 = sphi 0, %s204
      %s224 = sphi 0, %s226
      %s227 = sphi 0, %s224
      %s228 = sphi 0, %s227
      %s244 = sphi 0, %s228
      %s250 = sphi 0, %s252
      %s253 = sphi 0, %s250
      %s254 = sphi 0, %s253
      %s270 = sphi 0, %s254
      %s276 = sphi 0, %s278
      %s279 = sphi 0, %s276
      %s280 = sphi 0, %s279
      %s296 = sphi 0, %s280
      %s302 = sphi 0, %s304
      %s305 = sphi 0, %s302
      %s306 = sphi 0, %s305
      %s322 = sphi 0, %s306
      %s328 = sphi 0, %s330
      %s331 = sphi 0, %s328
      %s332 = sphi 0, %s331
      %s348 = sphi 0, %s332
      %s354 = sphi 0, %s356
      %s357 = sphi 0, %s354
      %s358 = sphi 0, %s357
      %s374 = sphi 0, %s358
      %s380 = sphi 0, %s382
      %s383 = sphi 0, %s380
      %s384 = sphi 0, %s383
      %s400 = sphi 0, %s384
      %s406 = sphi 0, %s408
      %s409 = sphi 0, %s406
      %s410 = sphi 0, %s409
      %s426 = sphi 0, %s410
      %s432 = sphi 0, %s434
      %s435 = sphi 0, %s432
      %s436 = sphi 0, %s435
      %s452 = sphi 0, %s436
      %s458 = sphi 0, %s460
      %s461 = sphi 0, %s458
      %s462 = sphi 0, %s461
      %s478 = sphi 0, %s462
      %s484 = sphi 0, %s486
      %s487 = sphi 0, %s484
      %s488 = sphi 0, %s487
      %s504 = sphi 0, %s488
      %s510 = sphi 0, %s512
      %s513 = sphi 0, %s510
      %s514 = sphi 0, %s513
      %s530 = sphi 0, %s514
      %s536 = sphi 0, %s538
      %s539 = sphi 0, %s536
      %s540 = sphi 0, %s539
      %s556 = sphi 0, %s540
      %s562 = sphi 0, %s564
      %s565 = sphi 0, %s562
      %s566 = sphi 0, %s565
      %s582 = sphi 0, %s566
      %s588 = sphi 0, %s590
      %s591 = sphi 0, %s588
      %s592 = sphi 0, %s591
      %s608 = sphi 0, %s592
      %s614 = sphi 0, %s616
      %s617 = sphi 0, %s614
      %s618 = sphi 0, %s617
      %s634 = sphi 0, %s618
      %s638 = sphi 0, %s638
      %s640 = sphi 0, %s638
      %s641 = sphi 0, %s640
      %s655 = sphi 0, %s641
      %s659 = sphi 0, %s659
      %s661 = sphi 0, %s659
      %s662 = sphi 0, %s661
      %s676 = sphi 0, %s662
      %s680 = sphi 0, %s680
      %s682 = sphi 0, %s680
      %s683 = sphi 0, %s682
      %s697 = sphi 0, %s683
      %s701 = sphi 0, %s701
      %s703 = sphi 0, %s701
      %s704 = sphi 0, %s703
      %s718 = sphi 0, %s704
      %s722 = sphi 0, %s722
      %s724 = sphi 0, %s722
      %s725 = sphi 0, %s724
      %s739 = sphi 0, %s725
      %s743 = sphi 0, %s743
      %s745 = sphi 0, %s743
      %s746 = sphi 0, %s745
      %s760 = sphi 0, %s746
      %s764 = sphi 0, %s764
      %s766 = sphi 0, %s764
      %s767 = sphi 0, %s766
      %s781 = sphi 0, %s767
      %s785 = sphi 0, %s785
      %s787 = sphi 0, %s785
      %s788 = sphi 0, %s787
      %s802 = sphi 0, %s788
      %s806 = sphi 0, %s806
      %s808 = sphi 0, %s806
      %s809 = sphi 0, %s808
      %s823 = sphi 0, %s809
      %s829 = sphi 0, %s831
      %s832 = sphi 0, %s829
      %s833 = sphi 0, %s832
      %s849 = sphi 0, %s833
      %s857 = sphi 0, %s859
      %s860 = sphi 0, %s857
      %s861 = sphi 0, %s860
      %s877 = sphi 0, %s861
      %s883 = sphi 0, %s885
      %s886 = sphi 0, %s883
      %s887 = sphi 0, %s886
      %s903 = sphi 0, %s887
    $region4: #{tpu_custom_call.1} parent=1 // loop_header_branch
      %90 = sbr.rel (%p88) target = $region8
    $region5: #{tpu_custom_call.1} parent=1 // loop_body
      %s92 = ssub.s32 %s87, 1
      %s93 = ssub.s32 %s87, 2
      %s100 = sadd.s32 1, %s95
      %p101 = scmp.ge.s32.totalorder %s100, 2
      %s102 = scalar_select %p101, 0, %s100
      %s103 = sadd.s32 1, %s94
      %s104 = scalar_select %p101, %s103, %s94
      %p105 = scmp.ge.s32.totalorder %s104, 2
      %s106 = scalar_select %p105, 0, %s104
      %s107 = ssub.s32 %s94, %s106
      %p108 = scmp.eq.s32.totalorder %s107, 0
      %s110 = sadd.s32 %s109, 1
      %s111 = scalar_select %p108, %s109, %s110
      %p114 = pneg %p108
      %p115 = scmp.eq.s32.totalorder %s87, 3
      %p116 = por %p114, %p115
      %p117 = scmp.ne.s32.totalorder %s109, %s112
      %p118 = scmp.eq.s32.totalorder %s87, 0
      %p119 = por %p117, %p118
      %p120 = scmp.ne.s32.totalorder %s109, %s112
      %p121 = scmp.eq.s32.totalorder %s92, 3
      %p122 = por %p120, %p121
      %p123 = scmp.ne.s32.totalorder %s112, %s113
      %p124 = scmp.eq.s32.totalorder %s92, 0
      %p125 = por %p123, %p124
      %p126 = scmp.ne.s32.totalorder %s112, %s113
      %p127 = scmp.eq.s32.totalorder %s93, 3
      %p128 = por %p126, %p127
      %p130 = scmp.ne.s32.totalorder %s113, %s129
      %p131 = scmp.eq.s32.totalorder %s93, 0
      %p132 = por %p130, %p131
      %s133 = ssub.s32 %s94, %s106
      %p134 = scmp.eq.s32.totalorder %s133, 0
      %s136 = sadd.s32 %s135, 1
      %s137 = scalar_select %p134, %s135, %s136
      %p140 = pneg %p134
      %p141 = scmp.eq.s32.totalorder %s87, 3
      %p142 = por %p140, %p141
      %p143 = scmp.ne.s32.totalorder %s135, %s138
      %p144 = scmp.eq.s32.totalorder %s87, 0
      %p145 = por %p143, %p144
      %p146 = scmp.ne.s32.totalorder %s135, %s138
      %p147 = scmp.eq.s32.totalorder %s92, 3
      %p148 = por %p146, %p147
      %p149 = scmp.ne.s32.totalorder %s138, %s139
      %p150 = scmp.eq.s32.totalorder %s92, 0
      %p151 = por %p149, %p150
      %p152 = scmp.ne.s32.totalorder %s138, %s139
      %p153 = scmp.eq.s32.totalorder %s93, 3
      %p154 = por %p152, %p153
      %p156 = scmp.ne.s32.totalorder %s139, %s155
      %p157 = scmp.eq.s32.totalorder %s93, 0
      %p158 = por %p156, %p157
      %s160 = sadd.s32 %s159, 1
      %p163 = scmp.eq.s32.totalorder %s87, 3
      %p164 = scmp.ne.s32.totalorder %s159, %s161
      %p165 = scmp.eq.s32.totalorder %s87, 0
      %p166 = por %p164, %p165
      %p167 = scmp.ne.s32.totalorder %s159, %s161
      %p168 = scmp.eq.s32.totalorder %s92, 3
      %p169 = por %p167, %p168
      %p170 = scmp.ne.s32.totalorder %s161, %s162
      %p171 = scmp.eq.s32.totalorder %s92, 0
      %p172 = por %p170, %p171
      %p173 = scmp.ne.s32.totalorder %s161, %s162
      %p174 = scmp.eq.s32.totalorder %s93, 3
      %p175 = por %p173, %p174
      %p177 = scmp.ne.s32.totalorder %s162, %s176
      %p178 = scmp.eq.s32.totalorder %s93, 0
      %p179 = por %p177, %p178
      %s181 = sadd.s32 %s180, 1
      %p184 = scmp.eq.s32.totalorder %s87, 3
      %p185 = scmp.ne.s32.totalorder %s180, %s182
      %p186 = scmp.eq.s32.totalorder %s87, 0
      %p187 = por %p185, %p186
      %p188 = scmp.ne.s32.totalorder %s180, %s182
      %p189 = scmp.eq.s32.totalorder %s92, 3
      %p190 = por %p188, %p189
      %p191 = scmp.ne.s32.totalorder %s182, %s183
      %p192 = scmp.eq.s32.totalorder %s92, 0
      %p193 = por %p191, %p192
      %p194 = scmp.ne.s32.totalorder %s182, %s183
      %p195 = scmp.eq.s32.totalorder %s93, 3
      %p196 = por %p194, %p195
      %p198 = scmp.ne.s32.totalorder %s183, %s197
      %p199 = scmp.eq.s32.totalorder %s93, 0
      %p200 = por %p198, %p199
      %s202 = sadd.s32 %s201, 1
      %p205 = scmp.eq.s32.totalorder %s87, 3
      %p206 = scmp.ne.s32.totalorder %s201, %s203
      %p207 = scmp.eq.s32.totalorder %s87, 0
      %p208 = por %p206, %p207
      %p209 = scmp.ne.s32.totalorder %s201, %s203
      %p210 = scmp.eq.s32.totalorder %s92, 3
      %p211 = por %p209, %p210
      %p212 = scmp.ne.s32.totalorder %s203, %s204
      %p213 = scmp.eq.s32.totalorder %s92, 0
      %p214 = por %p212, %p213
      %p215 = scmp.ne.s32.totalorder %s203, %s204
      %p216 = scmp.eq.s32.totalorder %s93, 3
      %p217 = por %p215, %p216
      %p219 = scmp.ne.s32.totalorder %s204, %s218
      %p220 = scmp.eq.s32.totalorder %s93, 0
      %p221 = por %p219, %p220
      %s222 = ssub.s32 %s95, %s102
      %p223 = scmp.eq.s32.totalorder %s222, 0
      %s225 = sadd.s32 %s224, 1
      %s226 = scalar_select %p223, %s224, %s225
      %p229 = pneg %p223
      %p230 = scmp.eq.s32.totalorder %s87, 3
      %p231 = por %p229, %p230
      %p232 = scmp.ne.s32.totalorder %s224, %s227
      %p233 = scmp.eq.s32.totalorder %s87, 0
      %p234 = por %p232, %p233
      %p235 = scmp.ne.s32.totalorder %s224, %s227
      %p236 = scmp.eq.s32.totalorder %s92, 3
      %p237 = por %p235, %p236
      %p238 = scmp.ne.s32.totalorder %s227, %s228
      %p239 = scmp.eq.s32.totalorder %s92, 0
      %p240 = por %p238, %p239
      %p241 = scmp.ne.s32.totalorder %s227, %s228
      %p242 = scmp.eq.s32.totalorder %s93, 3
      %p243 = por %p241, %p242
      %p245 = scmp.ne.s32.totalorder %s228, %s244
      %p246 = scmp.eq.s32.totalorder %s93, 0
      %p247 = por %p245, %p246
      %s248 = ssub.s32 %s95, %s102
      %p249 = scmp.eq.s32.totalorder %s248, 0
      %s251 = sadd.s32 %s250, 1
      %s252 = scalar_select %p249, %s250, %s251
      %p255 = pneg %p249
      %p256 = scmp.eq.s32.totalorder %s87, 3
      %p257 = por %p255, %p256
      %p258 = scmp.ne.s32.totalorder %s250, %s253
      %p259 = scmp.eq.s32.totalorder %s87, 0
      %p260 = por %p258, %p259
      %p261 = scmp.ne.s32.totalorder %s250, %s253
      %p262 = scmp.eq.s32.totalorder %s92, 3
      %p263 = por %p261, %p262
      %p264 = scmp.ne.s32.totalorder %s253, %s254
      %p265 = scmp.eq.s32.totalorder %s92, 0
      %p266 = por %p264, %p265
      %p267 = scmp.ne.s32.totalorder %s253, %s254
      %p268 = scmp.eq.s32.totalorder %s93, 3
      %p269 = por %p267, %p268
      %p271 = scmp.ne.s32.totalorder %s254, %s270
      %p272 = scmp.eq.s32.totalorder %s93, 0
      %p273 = por %p271, %p272
      %s274 = ssub.s32 %s95, %s102
      %p275 = scmp.eq.s32.totalorder %s274, 0
      %s277 = sadd.s32 %s276, 1
      %s278 = scalar_select %p275, %s276, %s277
      %p281 = pneg %p275
      %p282 = scmp.eq.s32.totalorder %s87, 3
      %p283 = por %p281, %p282
      %p284 = scmp.ne.s32.totalorder %s276, %s279
      %p285 = scmp.eq.s32.totalorder %s87, 0
      %p286 = por %p284, %p285
      %p287 = scmp.ne.s32.totalorder %s276, %s279
      %p288 = scmp.eq.s32.totalorder %s92, 3
      %p289 = por %p287, %p288
      %p290 = scmp.ne.s32.totalorder %s279, %s280
      %p291 = scmp.eq.s32.totalorder %s92, 0
      %p292 = por %p290, %p291
      %p293 = scmp.ne.s32.totalorder %s279, %s280
      %p294 = scmp.eq.s32.totalorder %s93, 3
      %p295 = por %p293, %p294
      %p297 = scmp.ne.s32.totalorder %s280, %s296
      %p298 = scmp.eq.s32.totalorder %s93, 0
      %p299 = por %p297, %p298
      %s300 = ssub.s32 %s95, %s102
      %p301 = scmp.eq.s32.totalorder %s300, 0
      %s303 = sadd.s32 %s302, 1
      %s304 = scalar_select %p301, %s302, %s303
      %p307 = pneg %p301
      %p308 = scmp.eq.s32.totalorder %s87, 3
      %p309 = por %p307, %p308
      %p310 = scmp.ne.s32.totalorder %s302, %s305
      %p311 = scmp.eq.s32.totalorder %s87, 0
      %p312 = por %p310, %p311
      %p313 = scmp.ne.s32.totalorder %s302, %s305
      %p314 = scmp.eq.s32.totalorder %s92, 3
      %p315 = por %p313, %p314
      %p316 = scmp.ne.s32.totalorder %s305, %s306
      %p317 = scmp.eq.s32.totalorder %s92, 0
      %p318 = por %p316, %p317
      %p319 = scmp.ne.s32.totalorder %s305, %s306
      %p320 = scmp.eq.s32.totalorder %s93, 3
      %p321 = por %p319, %p320
      %p323 = scmp.ne.s32.totalorder %s306, %s322
      %p324 = scmp.eq.s32.totalorder %s93, 0
      %p325 = por %p323, %p324
      %s326 = ssub.s32 %s95, %s102
      %p327 = scmp.eq.s32.totalorder %s326, 0
      %s329 = sadd.s32 %s328, 1
      %s330 = scalar_select %p327, %s328, %s329
      %p333 = pneg %p327
      %p334 = scmp.eq.s32.totalorder %s87, 3
      %p335 = por %p333, %p334
      %p336 = scmp.ne.s32.totalorder %s328, %s331
      %p337 = scmp.eq.s32.totalorder %s87, 0
      %p338 = por %p336, %p337
      %p339 = scmp.ne.s32.totalorder %s328, %s331
      %p340 = scmp.eq.s32.totalorder %s92, 3
      %p341 = por %p339, %p340
      %p342 = scmp.ne.s32.totalorder %s331, %s332
      %p343 = scmp.eq.s32.totalorder %s92, 0
      %p344 = por %p342, %p343
      %p345 = scmp.ne.s32.totalorder %s331, %s332
      %p346 = scmp.eq.s32.totalorder %s93, 3
      %p347 = por %p345, %p346
      %p349 = scmp.ne.s32.totalorder %s332, %s348
      %p350 = scmp.eq.s32.totalorder %s93, 0
      %p351 = por %p349, %p350
      %s352 = ssub.s32 %s95, %s102
      %p353 = scmp.eq.s32.totalorder %s352, 0
      %s355 = sadd.s32 %s354, 1
      %s356 = scalar_select %p353, %s354, %s355
      %p359 = pneg %p353
      %p360 = scmp.eq.s32.totalorder %s87, 3
      %p361 = por %p359, %p360
      %p362 = scmp.ne.s32.totalorder %s354, %s357
      %p363 = scmp.eq.s32.totalorder %s87, 0
      %p364 = por %p362, %p363
      %p365 = scmp.ne.s32.totalorder %s354, %s357
      %p366 = scmp.eq.s32.totalorder %s92, 3
      %p367 = por %p365, %p366
      %p368 = scmp.ne.s32.totalorder %s357, %s358
      %p369 = scmp.eq.s32.totalorder %s92, 0
      %p370 = por %p368, %p369
      %p371 = scmp.ne.s32.totalorder %s357, %s358
      %p372 = scmp.eq.s32.totalorder %s93, 3
      %p373 = por %p371, %p372
      %p375 = scmp.ne.s32.totalorder %s358, %s374
      %p376 = scmp.eq.s32.totalorder %s93, 0
      %p377 = por %p375, %p376
      %s378 = ssub.s32 %s95, %s102
      %p379 = scmp.eq.s32.totalorder %s378, 0
      %s381 = sadd.s32 %s380, 1
      %s382 = scalar_select %p379, %s380, %s381
      %p385 = pneg %p379
      %p386 = scmp.eq.s32.totalorder %s87, 3
      %p387 = por %p385, %p386
      %p388 = scmp.ne.s32.totalorder %s380, %s383
      %p389 = scmp.eq.s32.totalorder %s87, 0
      %p390 = por %p388, %p389
      %p391 = scmp.ne.s32.totalorder %s380, %s383
      %p392 = scmp.eq.s32.totalorder %s92, 3
      %p393 = por %p391, %p392
      %p394 = scmp.ne.s32.totalorder %s383, %s384
      %p395 = scmp.eq.s32.totalorder %s92, 0
      %p396 = por %p394, %p395
      %p397 = scmp.ne.s32.totalorder %s383, %s384
      %p398 = scmp.eq.s32.totalorder %s93, 3
      %p399 = por %p397, %p398
      %p401 = scmp.ne.s32.totalorder %s384, %s400
      %p402 = scmp.eq.s32.totalorder %s93, 0
      %p403 = por %p401, %p402
      %s404 = ssub.s32 %s95, %s102
      %p405 = scmp.eq.s32.totalorder %s404, 0
      %s407 = sadd.s32 %s406, 1
      %s408 = scalar_select %p405, %s406, %s407
      %p411 = pneg %p405
      %p412 = scmp.eq.s32.totalorder %s87, 3
      %p413 = por %p411, %p412
      %p414 = scmp.ne.s32.totalorder %s406, %s409
      %p415 = scmp.eq.s32.totalorder %s87, 0
      %p416 = por %p414, %p415
      %p417 = scmp.ne.s32.totalorder %s406, %s409
      %p418 = scmp.eq.s32.totalorder %s92, 3
      %p419 = por %p417, %p418
      %p420 = scmp.ne.s32.totalorder %s409, %s410
      %p421 = scmp.eq.s32.totalorder %s92, 0
      %p422 = por %p420, %p421
      %p423 = scmp.ne.s32.totalorder %s409, %s410
      %p424 = scmp.eq.s32.totalorder %s93, 3
      %p425 = por %p423, %p424
      %p427 = scmp.ne.s32.totalorder %s410, %s426
      %p428 = scmp.eq.s32.totalorder %s93, 0
      %p429 = por %p427, %p428
      %s430 = ssub.s32 %s95, %s102
      %p431 = scmp.eq.s32.totalorder %s430, 0
      %s433 = sadd.s32 %s432, 1
      %s434 = scalar_select %p431, %s432, %s433
      %p437 = pneg %p431
      %p438 = scmp.eq.s32.totalorder %s87, 3
      %p439 = por %p437, %p438
      %p440 = scmp.ne.s32.totalorder %s432, %s435
      %p441 = scmp.eq.s32.totalorder %s87, 0
      %p442 = por %p440, %p441
      %p443 = scmp.ne.s32.totalorder %s432, %s435
      %p444 = scmp.eq.s32.totalorder %s92, 3
      %p445 = por %p443, %p444
      %p446 = scmp.ne.s32.totalorder %s435, %s436
      %p447 = scmp.eq.s32.totalorder %s92, 0
      %p448 = por %p446, %p447
      %p449 = scmp.ne.s32.totalorder %s435, %s436
      %p450 = scmp.eq.s32.totalorder %s93, 3
      %p451 = por %p449, %p450
      %p453 = scmp.ne.s32.totalorder %s436, %s452
      %p454 = scmp.eq.s32.totalorder %s93, 0
      %p455 = por %p453, %p454
      %s456 = ssub.s32 %s95, %s102
      %p457 = scmp.eq.s32.totalorder %s456, 0
      %s459 = sadd.s32 %s458, 1
      %s460 = scalar_select %p457, %s458, %s459
      %p463 = pneg %p457
      %p464 = scmp.eq.s32.totalorder %s87, 3
      %p465 = por %p463, %p464
      %p466 = scmp.ne.s32.totalorder %s458, %s461
      %p467 = scmp.eq.s32.totalorder %s87, 0
      %p468 = por %p466, %p467
      %p469 = scmp.ne.s32.totalorder %s458, %s461
      %p470 = scmp.eq.s32.totalorder %s92, 3
      %p471 = por %p469, %p470
      %p472 = scmp.ne.s32.totalorder %s461, %s462
      %p473 = scmp.eq.s32.totalorder %s92, 0
      %p474 = por %p472, %p473
      %p475 = scmp.ne.s32.totalorder %s461, %s462
      %p476 = scmp.eq.s32.totalorder %s93, 3
      %p477 = por %p475, %p476
      %p479 = scmp.ne.s32.totalorder %s462, %s478
      %p480 = scmp.eq.s32.totalorder %s93, 0
      %p481 = por %p479, %p480
      %s482 = ssub.s32 %s95, %s102
      %p483 = scmp.eq.s32.totalorder %s482, 0
      %s485 = sadd.s32 %s484, 1
      %s486 = scalar_select %p483, %s484, %s485
      %p489 = pneg %p483
      %p490 = scmp.eq.s32.totalorder %s87, 3
      %p491 = por %p489, %p490
      %p492 = scmp.ne.s32.totalorder %s484, %s487
      %p493 = scmp.eq.s32.totalorder %s87, 0
      %p494 = por %p492, %p493
      %p495 = scmp.ne.s32.totalorder %s484, %s487
      %p496 = scmp.eq.s32.totalorder %s92, 3
      %p497 = por %p495, %p496
      %p498 = scmp.ne.s32.totalorder %s487, %s488
      %p499 = scmp.eq.s32.totalorder %s92, 0
      %p500 = por %p498, %p499
      %p501 = scmp.ne.s32.totalorder %s487, %s488
      %p502 = scmp.eq.s32.totalorder %s93, 3
      %p503 = por %p501, %p502
      %p505 = scmp.ne.s32.totalorder %s488, %s504
      %p506 = scmp.eq.s32.totalorder %s93, 0
      %p507 = por %p505, %p506
      %s508 = ssub.s32 %s95, %s102
      %p509 = scmp.eq.s32.totalorder %s508, 0
      %s511 = sadd.s32 %s510, 1
      %s512 = scalar_select %p509, %s510, %s511
      %p515 = pneg %p509
      %p516 = scmp.eq.s32.totalorder %s87, 3
      %p517 = por %p515, %p516
      %p518 = scmp.ne.s32.totalorder %s510, %s513
      %p519 = scmp.eq.s32.totalorder %s87, 0
      %p520 = por %p518, %p519
      %p521 = scmp.ne.s32.totalorder %s510, %s513
      %p522 = scmp.eq.s32.totalorder %s92, 3
      %p523 = por %p521, %p522
      %p524 = scmp.ne.s32.totalorder %s513, %s514
      %p525 = scmp.eq.s32.totalorder %s92, 0
      %p526 = por %p524, %p525
      %p527 = scmp.ne.s32.totalorder %s513, %s514
      %p528 = scmp.eq.s32.totalorder %s93, 3
      %p529 = por %p527, %p528
      %p531 = scmp.ne.s32.totalorder %s514, %s530
      %p532 = scmp.eq.s32.totalorder %s93, 0
      %p533 = por %p531, %p532
      %s534 = ssub.s32 %s95, %s102
      %p535 = scmp.eq.s32.totalorder %s534, 0
      %s537 = sadd.s32 %s536, 1
      %s538 = scalar_select %p535, %s536, %s537
      %p541 = pneg %p535
      %p542 = scmp.eq.s32.totalorder %s87, 3
      %p543 = por %p541, %p542
      %p544 = scmp.ne.s32.totalorder %s536, %s539
      %p545 = scmp.eq.s32.totalorder %s87, 0
      %p546 = por %p544, %p545
      %p547 = scmp.ne.s32.totalorder %s536, %s539
      %p548 = scmp.eq.s32.totalorder %s92, 3
      %p549 = por %p547, %p548
      %p550 = scmp.ne.s32.totalorder %s539, %s540
      %p551 = scmp.eq.s32.totalorder %s92, 0
      %p552 = por %p550, %p551
      %p553 = scmp.ne.s32.totalorder %s539, %s540
      %p554 = scmp.eq.s32.totalorder %s93, 3
      %p555 = por %p553, %p554
      %p557 = scmp.ne.s32.totalorder %s540, %s556
      %p558 = scmp.eq.s32.totalorder %s93, 0
      %p559 = por %p557, %p558
      %s560 = ssub.s32 %s95, %s102
      %p561 = scmp.eq.s32.totalorder %s560, 0
      %s563 = sadd.s32 %s562, 1
      %s564 = scalar_select %p561, %s562, %s563
      %p567 = pneg %p561
      %p568 = scmp.eq.s32.totalorder %s87, 3
      %p569 = por %p567, %p568
      %p570 = scmp.ne.s32.totalorder %s562, %s565
      %p571 = scmp.eq.s32.totalorder %s87, 0
      %p572 = por %p570, %p571
      %p573 = scmp.ne.s32.totalorder %s562, %s565
      %p574 = scmp.eq.s32.totalorder %s92, 3
      %p575 = por %p573, %p574
      %p576 = scmp.ne.s32.totalorder %s565, %s566
      %p577 = scmp.eq.s32.totalorder %s92, 0
      %p578 = por %p576, %p577
      %p579 = scmp.ne.s32.totalorder %s565, %s566
      %p580 = scmp.eq.s32.totalorder %s93, 3
      %p581 = por %p579, %p580
      %p583 = scmp.ne.s32.totalorder %s566, %s582
      %p584 = scmp.eq.s32.totalorder %s93, 0
      %p585 = por %p583, %p584
      %s586 = ssub.s32 %s95, %s102
      %p587 = scmp.eq.s32.totalorder %s586, 0
      %s589 = sadd.s32 %s588, 1
      %s590 = scalar_select %p587, %s588, %s589
      %p593 = pneg %p587
      %p594 = scmp.eq.s32.totalorder %s87, 3
      %p595 = por %p593, %p594
      %p596 = scmp.ne.s32.totalorder %s588, %s591
      %p597 = scmp.eq.s32.totalorder %s87, 0
      %p598 = por %p596, %p597
      %p599 = scmp.ne.s32.totalorder %s588, %s591
      %p600 = scmp.eq.s32.totalorder %s92, 3
      %p601 = por %p599, %p600
      %p602 = scmp.ne.s32.totalorder %s591, %s592
      %p603 = scmp.eq.s32.totalorder %s92, 0
      %p604 = por %p602, %p603
      %p605 = scmp.ne.s32.totalorder %s591, %s592
      %p606 = scmp.eq.s32.totalorder %s93, 3
      %p607 = por %p605, %p606
      %p609 = scmp.ne.s32.totalorder %s592, %s608
      %p610 = scmp.eq.s32.totalorder %s93, 0
      %p611 = por %p609, %p610
      %s612 = ssub.s32 %s95, %s102
      %p613 = scmp.eq.s32.totalorder %s612, 0
      %s615 = sadd.s32 %s614, 1
      %s616 = scalar_select %p613, %s614, %s615
      %p619 = pneg %p613
      %p620 = scmp.eq.s32.totalorder %s87, 3
      %p621 = por %p619, %p620
      %p622 = scmp.ne.s32.totalorder %s614, %s617
      %p623 = scmp.eq.s32.totalorder %s87, 0
      %p624 = por %p622, %p623
      %p625 = scmp.ne.s32.totalorder %s614, %s617
      %p626 = scmp.eq.s32.totalorder %s92, 3
      %p627 = por %p625, %p626
      %p628 = scmp.ne.s32.totalorder %s617, %s618
      %p629 = scmp.eq.s32.totalorder %s92, 0
      %p630 = por %p628, %p629
      %p631 = scmp.ne.s32.totalorder %s617, %s618
      %p632 = scmp.eq.s32.totalorder %s93, 3
      %p633 = por %p631, %p632
      %p635 = scmp.ne.s32.totalorder %s618, %s634
      %p636 = scmp.eq.s32.totalorder %s93, 0
      %p637 = por %p635, %p636
      %s639 = sadd.s32 %s638, 1
      %p642 = scmp.eq.s32.totalorder %s87, 3
      %p643 = scmp.ne.s32.totalorder %s638, %s640
      %p644 = scmp.eq.s32.totalorder %s87, 0
      %p645 = por %p643, %p644
      %p646 = scmp.ne.s32.totalorder %s638, %s640
      %p647 = scmp.eq.s32.totalorder %s92, 3
      %p648 = por %p646, %p647
      %p649 = scmp.ne.s32.totalorder %s640, %s641
      %p650 = scmp.eq.s32.totalorder %s92, 0
      %p651 = por %p649, %p650
      %p652 = scmp.ne.s32.totalorder %s640, %s641
      %p653 = scmp.eq.s32.totalorder %s93, 3
      %p654 = por %p652, %p653
      %p656 = scmp.ne.s32.totalorder %s641, %s655
      %p657 = scmp.eq.s32.totalorder %s93, 0
      %p658 = por %p656, %p657
      %s660 = sadd.s32 %s659, 1
      %p663 = scmp.eq.s32.totalorder %s87, 3
      %p664 = scmp.ne.s32.totalorder %s659, %s661
      %p665 = scmp.eq.s32.totalorder %s87, 0
      %p666 = por %p664, %p665
      %p667 = scmp.ne.s32.totalorder %s659, %s661
      %p668 = scmp.eq.s32.totalorder %s92, 3
      %p669 = por %p667, %p668
      %p670 = scmp.ne.s32.totalorder %s661, %s662
      %p671 = scmp.eq.s32.totalorder %s92, 0
      %p672 = por %p670, %p671
      %p673 = scmp.ne.s32.totalorder %s661, %s662
      %p674 = scmp.eq.s32.totalorder %s93, 3
      %p675 = por %p673, %p674
      %p677 = scmp.ne.s32.totalorder %s662, %s676
      %p678 = scmp.eq.s32.totalorder %s93, 0
      %p679 = por %p677, %p678
      %s681 = sadd.s32 %s680, 1
      %p684 = scmp.eq.s32.totalorder %s87, 3
      %p685 = scmp.ne.s32.totalorder %s680, %s682
      %p686 = scmp.eq.s32.totalorder %s87, 0
      %p687 = por %p685, %p686
      %p688 = scmp.ne.s32.totalorder %s680, %s682
      %p689 = scmp.eq.s32.totalorder %s92, 3
      %p690 = por %p688, %p689
      %p691 = scmp.ne.s32.totalorder %s682, %s683
      %p692 = scmp.eq.s32.totalorder %s92, 0
      %p693 = por %p691, %p692
      %p694 = scmp.ne.s32.totalorder %s682, %s683
      %p695 = scmp.eq.s32.totalorder %s93, 3
      %p696 = por %p694, %p695
      %p698 = scmp.ne.s32.totalorder %s683, %s697
      %p699 = scmp.eq.s32.totalorder %s93, 0
      %p700 = por %p698, %p699
      %s702 = sadd.s32 %s701, 1
      %p705 = scmp.eq.s32.totalorder %s87, 3
      %p706 = scmp.ne.s32.totalorder %s701, %s703
      %p707 = scmp.eq.s32.totalorder %s87, 0
      %p708 = por %p706, %p707
      %p709 = scmp.ne.s32.totalorder %s701, %s703
      %p710 = scmp.eq.s32.totalorder %s92, 3
      %p711 = por %p709, %p710
      %p712 = scmp.ne.s32.totalorder %s703, %s704
      %p713 = scmp.eq.s32.totalorder %s92, 0
      %p714 = por %p712, %p713
      %p715 = scmp.ne.s32.totalorder %s703, %s704
      %p716 = scmp.eq.s32.totalorder %s93, 3
      %p717 = por %p715, %p716
      %p719 = scmp.ne.s32.totalorder %s704, %s718
      %p720 = scmp.eq.s32.totalorder %s93, 0
      %p721 = por %p719, %p720
      %s723 = sadd.s32 %s722, 1
      %p726 = scmp.eq.s32.totalorder %s87, 3
      %p727 = scmp.ne.s32.totalorder %s722, %s724
      %p728 = scmp.eq.s32.totalorder %s87, 0
      %p729 = por %p727, %p728
      %p730 = scmp.ne.s32.totalorder %s722, %s724
      %p731 = scmp.eq.s32.totalorder %s92, 3
      %p732 = por %p730, %p731
      %p733 = scmp.ne.s32.totalorder %s724, %s725
      %p734 = scmp.eq.s32.totalorder %s92, 0
      %p735 = por %p733, %p734
      %p736 = scmp.ne.s32.totalorder %s724, %s725
      %p737 = scmp.eq.s32.totalorder %s93, 3
      %p738 = por %p736, %p737
      %p740 = scmp.ne.s32.totalorder %s725, %s739
      %p741 = scmp.eq.s32.totalorder %s93, 0
      %p742 = por %p740, %p741
      %s744 = sadd.s32 %s743, 1
      %p747 = scmp.eq.s32.totalorder %s87, 3
      %p748 = scmp.ne.s32.totalorder %s743, %s745
      %p749 = scmp.eq.s32.totalorder %s87, 0
      %p750 = por %p748, %p749
      %p751 = scmp.ne.s32.totalorder %s743, %s745
      %p752 = scmp.eq.s32.totalorder %s92, 3
      %p753 = por %p751, %p752
      %p754 = scmp.ne.s32.totalorder %s745, %s746
      %p755 = scmp.eq.s32.totalorder %s92, 0
      %p756 = por %p754, %p755
      %p757 = scmp.ne.s32.totalorder %s745, %s746
      %p758 = scmp.eq.s32.totalorder %s93, 3
      %p759 = por %p757, %p758
      %p761 = scmp.ne.s32.totalorder %s746, %s760
      %p762 = scmp.eq.s32.totalorder %s93, 0
      %p763 = por %p761, %p762
      %s765 = sadd.s32 %s764, 1
      %p768 = scmp.eq.s32.totalorder %s87, 3
      %p769 = scmp.ne.s32.totalorder %s764, %s766
      %p770 = scmp.eq.s32.totalorder %s87, 0
      %p771 = por %p769, %p770
      %p772 = scmp.ne.s32.totalorder %s764, %s766
      %p773 = scmp.eq.s32.totalorder %s92, 3
      %p774 = por %p772, %p773
      %p775 = scmp.ne.s32.totalorder %s766, %s767
      %p776 = scmp.eq.s32.totalorder %s92, 0
      %p777 = por %p775, %p776
      %p778 = scmp.ne.s32.totalorder %s766, %s767
      %p779 = scmp.eq.s32.totalorder %s93, 3
      %p780 = por %p778, %p779
      %p782 = scmp.ne.s32.totalorder %s767, %s781
      %p783 = scmp.eq.s32.totalorder %s93, 0
      %p784 = por %p782, %p783
      %s786 = sadd.s32 %s785, 1
      %p789 = scmp.eq.s32.totalorder %s87, 3
      %p790 = scmp.ne.s32.totalorder %s785, %s787
      %p791 = scmp.eq.s32.totalorder %s87, 0
      %p792 = por %p790, %p791
      %p793 = scmp.ne.s32.totalorder %s785, %s787
      %p794 = scmp.eq.s32.totalorder %s92, 3
      %p795 = por %p793, %p794
      %p796 = scmp.ne.s32.totalorder %s787, %s788
      %p797 = scmp.eq.s32.totalorder %s92, 0
      %p798 = por %p796, %p797
      %p799 = scmp.ne.s32.totalorder %s787, %s788
      %p800 = scmp.eq.s32.totalorder %s93, 3
      %p801 = por %p799, %p800
      %p803 = scmp.ne.s32.totalorder %s788, %s802
      %p804 = scmp.eq.s32.totalorder %s93, 0
      %p805 = por %p803, %p804
      %s807 = sadd.s32 %s806, 1
      %p810 = scmp.eq.s32.totalorder %s87, 3
      %p811 = scmp.ne.s32.totalorder %s806, %s808
      %p812 = scmp.eq.s32.totalorder %s87, 0
      %p813 = por %p811, %p812
      %p814 = scmp.ne.s32.totalorder %s806, %s808
      %p815 = scmp.eq.s32.totalorder %s92, 3
      %p816 = por %p814, %p815
      %p817 = scmp.ne.s32.totalorder %s808, %s809
      %p818 = scmp.eq.s32.totalorder %s92, 0
      %p819 = por %p817, %p818
      %p820 = scmp.ne.s32.totalorder %s808, %s809
      %p821 = scmp.eq.s32.totalorder %s93, 3
      %p822 = por %p820, %p821
      %p824 = scmp.ne.s32.totalorder %s809, %s823
      %p825 = scmp.eq.s32.totalorder %s93, 0
      %p826 = por %p824, %p825
      %s827 = ssub.s32 %s94, %s106
      %p828 = scmp.eq.s32.totalorder %s827, 0
      %s830 = sadd.s32 %s829, 1
      %s831 = scalar_select %p828, %s829, %s830
      %p834 = pneg %p828
      %p835 = scmp.eq.s32.totalorder %s87, 3
      %p836 = por %p834, %p835
      %p837 = scmp.ne.s32.totalorder %s829, %s832
      %p838 = scmp.eq.s32.totalorder %s87, 0
      %p839 = por %p837, %p838
      %p840 = scmp.ne.s32.totalorder %s829, %s832
      %p841 = scmp.eq.s32.totalorder %s92, 3
      %p842 = por %p840, %p841
      %p843 = scmp.ne.s32.totalorder %s832, %s833
      %p844 = scmp.eq.s32.totalorder %s92, 0
      %p845 = por %p843, %p844
      %p846 = scmp.ne.s32.totalorder %s832, %s833
      %p847 = scmp.eq.s32.totalorder %s93, 3
      %p848 = por %p846, %p847
      %p850 = scmp.ne.s32.totalorder %s833, %s849
      %p851 = scmp.eq.s32.totalorder %s93, 0
      %p852 = por %p850, %p851
      %s853 = ssub.s32 %s94, %s106
      %s854 = ssub.s32 %s95, %s102
      %s855 = sor.u32 %s853, %s854
      %p856 = scmp.eq.s32.totalorder %s855, 0
      %s858 = sadd.s32 %s857, 1
      %s859 = scalar_select %p856, %s857, %s858
      %p862 = pneg %p856
      %p863 = scmp.eq.s32.totalorder %s87, 3
      %p864 = por %p862, %p863
      %p865 = scmp.ne.s32.totalorder %s857, %s860
      %p866 = scmp.eq.s32.totalorder %s87, 0
      %p867 = por %p865, %p866
      %p868 = scmp.ne.s32.totalorder %s857, %s860
      %p869 = scmp.eq.s32.totalorder %s92, 3
      %p870 = por %p868, %p869
      %p871 = scmp.ne.s32.totalorder %s860, %s861
      %p872 = scmp.eq.s32.totalorder %s92, 0
      %p873 = por %p871, %p872
      %p874 = scmp.ne.s32.totalorder %s860, %s861
      %p875 = scmp.eq.s32.totalorder %s93, 3
      %p876 = por %p874, %p875
      %p878 = scmp.ne.s32.totalorder %s861, %s877
      %p879 = scmp.eq.s32.totalorder %s93, 0
      %p880 = por %p878, %p879
      %s881 = ssub.s32 %s94, %s106
      %p882 = scmp.eq.s32.totalorder %s881, 0
      %s884 = sadd.s32 %s883, 1
      %s885 = scalar_select %p882, %s883, %s884
      %p888 = pneg %p882
      %p889 = scmp.eq.s32.totalorder %s87, 3
      %p890 = por %p888, %p889
      %p891 = scmp.ne.s32.totalorder %s883, %s886
      %p892 = scmp.eq.s32.totalorder %s87, 0
      %p893 = por %p891, %p892
      %p894 = scmp.ne.s32.totalorder %s883, %s886
      %p895 = scmp.eq.s32.totalorder %s92, 3
      %p896 = por %p894, %p895
      %p897 = scmp.ne.s32.totalorder %s886, %s887
      %p898 = scmp.eq.s32.totalorder %s92, 0
      %p899 = por %p897, %p898
      %p900 = scmp.ne.s32.totalorder %s886, %s887
      %p901 = scmp.eq.s32.totalorder %s93, 3
      %p902 = por %p900, %p901
      %p904 = scmp.ne.s32.totalorder %s887, %s903
      %p905 = scmp.eq.s32.totalorder %s93, 0
      %p906 = por %p904, %p905
      %p907 = scmp.le.s32.totalorder 1, %s87
      %p908 = scmp.lt.s32.totalorder %s87, 5
      %p909 = pnand %p907, %p908
      %p910 = pneg %p909
      // Predicated region
      $region9: #{tpu_custom_call.1} parent=5 // pred_check
        _
      $region10: #{tpu_custom_call.1} parent=5 // pred_check_branch
        %912 = sbr.rel (%p909) target = $region12
      $region11: #{tpu_custom_call.1} parent=5 // pred_region
        %s913 = ssub.s32 %s87, 1
        // Predicated region
        $region13: #{tpu_custom_call.1} parent=11 // pred_check
          %p914 = pneg %p172
        $region14: #{tpu_custom_call.1} parent=11 // pred_check_branch
          %916 = sbr.rel (%p914) target = $region16
        $region15: #{tpu_custom_call.1} parent=11 // pred_region
          %918 = vsyncadd [#allocation7], 0
          %s919 = sshll.u32 %s5, 4
          %s920 = int_to_ptr.hbm [resolvable:$true] %s919
          %s921 = sshll.u32 [#allocation6], 4
          %s922 = int_to_ptr.vmem [resolvable:$true] %s921
          %927 = dma.hbm_to_vmem [thread:$0]  %s920, 128, %s922, [#allocation7], 64, 64, 4
        $region16: #{tpu_custom_call.1} parent=11 // pred_fallthru
          _
        // Predicated region
        $region17: #{tpu_custom_call.1} parent=11 // pred_check
          %p928 = pneg %p193
        $region18: #{tpu_custom_call.1} parent=11 // pred_check_branch
          %930 = sbr.rel (%p928) target = $region20
        $region19: #{tpu_custom_call.1} parent=11 // pred_region
          _
        $region20: #{tpu_custom_call.1} parent=11 // pred_fallthru
          _
        // Predicated region
        $region21: #{tpu_custom_call.1} parent=11 // pred_check
          %p931 = pneg %p214
        $region22: #{tpu_custom_call.1} parent=11 // pred_check_branch
          %933 = sbr.rel (%p931) target = $region24
        $region23: #{tpu_custom_call.1} parent=11 // pred_region
          %935 = vsyncadd [#allocation7], 0
          %s937 = sshll.u32 %s9, 4
          %s938 = int_to_ptr.hbm [resolvable:$true] %s937
          %s939 = sshll.u32 [#allocation8], 4
          %s940 = int_to_ptr.vmem [resolvable:$true] %s939
          %942 = dma.hbm_to_vmem [thread:$0]  %s938, 16, %s940, [#allocation7]
        $region24: #{tpu_custom_call.1} parent=11 // pred_fallthru
          _
        // Predicated region
        $region25: #{tpu_custom_call.1} parent=11 // pred_check
          %p943 = pneg %p651
        $region26: #{tpu_custom_call.1} parent=11 // pred_check_branch
          %945 = sbr.rel (%p943) target = $region28
        $region27: #{tpu_custom_call.1} parent=11 // pred_region
          _
        $region28: #{tpu_custom_call.1} parent=11 // pred_fallthru
          _
        // Predicated region
        $region29: #{tpu_custom_call.1} parent=11 // pred_check
          %p946 = pneg %p672
        $region30: #{tpu_custom_call.1} parent=11 // pred_check_branch
          %948 = sbr.rel (%p946) target = $region32
        $region31: #{tpu_custom_call.1} parent=11 // pred_region
          _
        $region32: #{tpu_custom_call.1} parent=11 // pred_fallthru
          _
        // Predicated region
        $region33: #{tpu_custom_call.1} parent=11 // pred_check
          %p949 = pneg %p693
        $region34: #{tpu_custom_call.1} parent=11 // pred_check_branch
          %951 = sbr.rel (%p949) target = $region36
        $region35: #{tpu_custom_call.1} parent=11 // pred_region
          _
        $region36: #{tpu_custom_call.1} parent=11 // pred_fallthru
          _
        // Predicated region
        $region37: #{tpu_custom_call.1} parent=11 // pred_check
          %p952 = pneg %p714
        $region38: #{tpu_custom_call.1} parent=11 // pred_check_branch
          %954 = sbr.rel (%p952) target = $region40
        $region39: #{tpu_custom_call.1} parent=11 // pred_region
          _
        $region40: #{tpu_custom_call.1} parent=11 // pred_fallthru
          _
        // Predicated region
        $region41: #{tpu_custom_call.1} parent=11 // pred_check
          %p955 = pneg %p735
        $region42: #{tpu_custom_call.1} parent=11 // pred_check_branch
          %957 = sbr.rel (%p955) target = $region44
        $region43: #{tpu_custom_call.1} parent=11 // pred_region
          _
        $region44: #{tpu_custom_call.1} parent=11 // pred_fallthru
          _
        // Predicated region
        $region45: #{tpu_custom_call.1} parent=11 // pred_check
          %p958 = pneg %p756
        $region46: #{tpu_custom_call.1} parent=11 // pred_check_branch
          %960 = sbr.rel (%p958) target = $region48
        $region47: #{tpu_custom_call.1} parent=11 // pred_region
          _
        $region48: #{tpu_custom_call.1} parent=11 // pred_fallthru
          _
        // Predicated region
        $region49: #{tpu_custom_call.1} parent=11 // pred_check
          %p961 = pneg %p777
        $region50: #{tpu_custom_call.1} parent=11 // pred_check_branch
          %963 = sbr.rel (%p961) target = $region52
        $region51: #{tpu_custom_call.1} parent=11 // pred_region
          _
        $region52: #{tpu_custom_call.1} parent=11 // pred_fallthru
          _
        // Predicated region
        $region53: #{tpu_custom_call.1} parent=11 // pred_check
          %p964 = pneg %p798
        $region54: #{tpu_custom_call.1} parent=11 // pred_check_branch
          %966 = sbr.rel (%p964) target = $region56
        $region55: #{tpu_custom_call.1} parent=11 // pred_region
          _
        $region56: #{tpu_custom_call.1} parent=11 // pred_fallthru
          _
        // Predicated region
        $region57: #{tpu_custom_call.1} parent=11 // pred_check
          %p967 = pneg %p819
        $region58: #{tpu_custom_call.1} parent=11 // pred_check_branch
          %969 = sbr.rel (%p967) target = $region60
        $region59: #{tpu_custom_call.1} parent=11 // pred_region
          _
        $region60: #{tpu_custom_call.1} parent=11 // pred_fallthru
          _
      $region12: #{tpu_custom_call.1} parent=5 // pred_fallthru
        _
      %p970 = scmp.lt.s32.totalorder %s87, 4
      // Predicated region
      $region61: #{tpu_custom_call.1} parent=5 // pred_check
        %p971 = pneg %p970
      $region62: #{tpu_custom_call.1} parent=5 // pred_check_branch
        %973 = sbr.rel (%p971) target = $region64
      $region63: #{tpu_custom_call.1} parent=5 // pred_region
        // Predicated region
        $region65: #{tpu_custom_call.1} parent=63 // pred_check
          %p974 = pneg %p119
        $region66: #{tpu_custom_call.1} parent=63 // pred_check_branch
          %976 = sbr.rel (%p974) target = $region68
        $region67: #{tpu_custom_call.1} parent=63 // pred_region
          %s977 = sand.u32 %s109, 1
          %s978 = scalar_lea.sflag [#allocation4], %s977
          %s979 = sand.u32 %s109, 1
          %s980 = smul.addr %s979, 4
          %s981 = scalar_lea.vmem [#allocation3], %s980
          %983 = vsyncadd %s978, 0
          %s984 = smul.addr %s94, 4
          %s985 = scalar_lea.hbm %s1, %s984
          %s987 = sshll.u32 %s985, 4
          %s988 = int_to_ptr.hbm [resolvable:$true] %s987
          %s989 = sshll.u32 %s981, 4
          %s990 = int_to_ptr.vmem [resolvable:$true] %s989
          %992 = dma.hbm_to_vmem [thread:$0]  %s988, 64, %s990, %s978
        $region68: #{tpu_custom_call.1} parent=63 // pred_fallthru
          _
        // Predicated region
        $region69: #{tpu_custom_call.1} parent=63 // pred_check
          %p993 = pneg %p145
        $region70: #{tpu_custom_call.1} parent=63 // pred_check_branch
          %995 = sbr.rel (%p993) target = $region72
        $region71: #{tpu_custom_call.1} parent=63 // pred_region
          %p996 = scmp.lt.s32.totalorder %s94, 1
          %s997 = scalar_select %p996, %s94, 1
          %s998 = smul.addr %s997, 8
          %s999 = scalar_lea.vmem %s3, %s998
        $region72: #{tpu_custom_call.1} parent=63 // pred_fallthru
          _
        // Predicated region
        $region73: #{tpu_custom_call.1} parent=63 // pred_check
          %p1000 = pneg %p234
        $region74: #{tpu_custom_call.1} parent=63 // pred_check_branch
          %1002 = sbr.rel (%p1000) target = $region76
        $region75: #{tpu_custom_call.1} parent=63 // pred_region
          %p1003 = scmp.lt.s32.totalorder %s95, 1
          %s1004 = scalar_select %p1003, %s95, 1
          %s1005 = scalar_lea.vmem %s11, %s1004
        $region76: #{tpu_custom_call.1} parent=63 // pred_fallthru
          _
        // Predicated region
        $region77: #{tpu_custom_call.1} parent=63 // pred_check
          %p1006 = pneg %p260
        $region78: #{tpu_custom_call.1} parent=63 // pred_check_branch
          %1008 = sbr.rel (%p1006) target = $region80
        $region79: #{tpu_custom_call.1} parent=63 // pred_region
          %p1009 = scmp.lt.s32.totalorder %s95, 1
          %s1010 = scalar_select %p1009, %s95, 1
          %s1011 = scalar_lea.vmem %s13, %s1010
        $region80: #{tpu_custom_call.1} parent=63 // pred_fallthru
          _
        // Predicated region
        $region81: #{tpu_custom_call.1} parent=63 // pred_check
          %p1012 = pneg %p286
        $region82: #{tpu_custom_call.1} parent=63 // pred_check_branch
          %1014 = sbr.rel (%p1012) target = $region84
        $region83: #{tpu_custom_call.1} parent=63 // pred_region
          %p1015 = scmp.lt.s32.totalorder %s95, 1
          %s1016 = scalar_select %p1015, %s95, 1
          %s1017 = smul.addr %s1016, 4
          %s1018 = smul.addr %s1017, 4
          %s1019 = scalar_lea.vmem %s15, %s1018
        $region84: #{tpu_custom_call.1} parent=63 // pred_fallthru
          _
        // Predicated region
        $region85: #{tpu_custom_call.1} parent=63 // pred_check
          %p1020 = pneg %p312
        $region86: #{tpu_custom_call.1} parent=63 // pred_check_branch
          %1022 = sbr.rel (%p1020) target = $region88
        $region87: #{tpu_custom_call.1} parent=63 // pred_region
          %p1023 = scmp.lt.s32.totalorder %s95, 1
          %s1024 = scalar_select %p1023, %s95, 1
          %s1025 = scalar_lea.vmem %s17, %s1024
        $region88: #{tpu_custom_call.1} parent=63 // pred_fallthru
          _
        // Predicated region
        $region89: #{tpu_custom_call.1} parent=63 // pred_check
          %p1026 = pneg %p338
        $region90: #{tpu_custom_call.1} parent=63 // pred_check_branch
          %1028 = sbr.rel (%p1026) target = $region92
        $region91: #{tpu_custom_call.1} parent=63 // pred_region
          %p1029 = scmp.lt.s32.totalorder %s95, 1
          %s1030 = scalar_select %p1029, %s95, 1
          %s1031 = smul.addr %s1030, 4
          %s1032 = smul.addr %s1031, 4
          %s1033 = scalar_lea.vmem %s19, %s1032
        $region92: #{tpu_custom_call.1} parent=63 // pred_fallthru
          _
        // Predicated region
        $region93: #{tpu_custom_call.1} parent=63 // pred_check
          %p1034 = pneg %p364
        $region94: #{tpu_custom_call.1} parent=63 // pred_check_branch
          %1036 = sbr.rel (%p1034) target = $region96
        $region95: #{tpu_custom_call.1} parent=63 // pred_region
          %p1037 = scmp.lt.s32.totalorder %s95, 1
          %s1038 = scalar_select %p1037, %s95, 1
          %s1039 = scalar_lea.vmem %s21, %s1038
        $region96: #{tpu_custom_call.1} parent=63 // pred_fallthru
          _
        // Predicated region
        $region97: #{tpu_custom_call.1} parent=63 // pred_check
          %p1040 = pneg %p390
        $region98: #{tpu_custom_call.1} parent=63 // pred_check_branch
          %1042 = sbr.rel (%p1040) target = $region100
        $region99: #{tpu_custom_call.1} parent=63 // pred_region
          %p1043 = scmp.lt.s32.totalorder %s95, 1
          %s1044 = scalar_select %p1043, %s95, 1
          %s1045 = smul.addr %s1044, 4
          %s1046 = smul.addr %s1045, 4
          %s1047 = scalar_lea.vmem %s23, %s1046
        $region100: #{tpu_custom_call.1} parent=63 // pred_fallthru
          _
        // Predicated region
        $region101: #{tpu_custom_call.1} parent=63 // pred_check
          %p1048 = pneg %p416
        $region102: #{tpu_custom_call.1} parent=63 // pred_check_branch
          %1050 = sbr.rel (%p1048) target = $region104
        $region103: #{tpu_custom_call.1} parent=63 // pred_region
          %p1051 = scmp.lt.s32.totalorder %s95, 1
          %s1052 = scalar_select %p1051, %s95, 1
          %s1053 = scalar_lea.vmem %s25, %s1052
        $region104: #{tpu_custom_call.1} parent=63 // pred_fallthru
          _
        // Predicated region
        $region105: #{tpu_custom_call.1} parent=63 // pred_check
          %p1054 = pneg %p442
        $region106: #{tpu_custom_call.1} parent=63 // pred_check_branch
          %1056 = sbr.rel (%p1054) target = $region108
        $region107: #{tpu_custom_call.1} parent=63 // pred_region
          %p1057 = scmp.lt.s32.totalorder %s95, 1
          %s1058 = scalar_select %p1057, %s95, 1
          %s1059 = smul.addr %s1058, 4
          %s1060 = smul.addr %s1059, 4
          %s1061 = scalar_lea.vmem %s27, %s1060
        $region108: #{tpu_custom_call.1} parent=63 // pred_fallthru
          _
        // Predicated region
        $region109: #{tpu_custom_call.1} parent=63 // pred_check
          %p1062 = pneg %p468
        $region110: #{tpu_custom_call.1} parent=63 // pred_check_branch
          %1064 = sbr.rel (%p1062) target = $region112
        $region111: #{tpu_custom_call.1} parent=63 // pred_region
          %p1065 = scmp.lt.s32.totalorder %s95, 1
          %s1066 = scalar_select %p1065, %s95, 1
          %s1067 = scalar_lea.vmem %s29, %s1066
        $region112: #{tpu_custom_call.1} parent=63 // pred_fallthru
          _
        // Predicated region
        $region113: #{tpu_custom_call.1} parent=63 // pred_check
          %p1068 = pneg %p494
        $region114: #{tpu_custom_call.1} parent=63 // pred_check_branch
          %1070 = sbr.rel (%p1068) target = $region116
        $region115: #{tpu_custom_call.1} parent=63 // pred_region
          %p1071 = scmp.lt.s32.totalorder %s95, 1
          %s1072 = scalar_select %p1071, %s95, 1
          %s1073 = scalar_lea.vmem %s31, %s1072
        $region116: #{tpu_custom_call.1} parent=63 // pred_fallthru
          _
        // Predicated region
        $region117: #{tpu_custom_call.1} parent=63 // pred_check
          %p1074 = pneg %p520
        $region118: #{tpu_custom_call.1} parent=63 // pred_check_branch
          %1076 = sbr.rel (%p1074) target = $region120
        $region119: #{tpu_custom_call.1} parent=63 // pred_region
          %p1077 = scmp.lt.s32.totalorder %s95, 1
          %s1078 = scalar_select %p1077, %s95, 1
          %s1079 = scalar_lea.vmem %s33, %s1078
        $region120: #{tpu_custom_call.1} parent=63 // pred_fallthru
          _
        // Predicated region
        $region121: #{tpu_custom_call.1} parent=63 // pred_check
          %p1080 = pneg %p546
        $region122: #{tpu_custom_call.1} parent=63 // pred_check_branch
          %1082 = sbr.rel (%p1080) target = $region124
        $region123: #{tpu_custom_call.1} parent=63 // pred_region
          %p1083 = scmp.lt.s32.totalorder %s95, 1
          %s1084 = scalar_select %p1083, %s95, 1
          %s1085 = smul.addr %s1084, 4
          %s1086 = smul.addr %s1085, 4
          %s1087 = scalar_lea.vmem %s35, %s1086
        $region124: #{tpu_custom_call.1} parent=63 // pred_fallthru
          _
        // Predicated region
        $region125: #{tpu_custom_call.1} parent=63 // pred_check
          %p1088 = pneg %p572
        $region126: #{tpu_custom_call.1} parent=63 // pred_check_branch
          %1090 = sbr.rel (%p1088) target = $region128
        $region127: #{tpu_custom_call.1} parent=63 // pred_region
          %s1091 = sand.u32 %s562, 1
          %s1092 = scalar_lea.sflag [#allocation10], %s1091
          %s1093 = sand.u32 %s562, 1
          %s1094 = scalar_lea.vmem [#allocation9], %s1093
          %1096 = vsyncadd %s1092, 0
          %s1097 = scalar_lea.hbm %s37, %s95
          %s1099 = sshll.u32 %s1097, 4
          %s1100 = int_to_ptr.hbm [resolvable:$true] %s1099
          %s1101 = sshll.u32 %s1094, 4
          %s1102 = int_to_ptr.vmem [resolvable:$true] %s1101
          %1104 = dma.hbm_to_vmem [thread:$0]  %s1100, 16, %s1102, %s1092
        $region128: #{tpu_custom_call.1} parent=63 // pred_fallthru
          _
        // Predicated region
        $region129: #{tpu_custom_call.1} parent=63 // pred_check
          %p1105 = pneg %p598
        $region130: #{tpu_custom_call.1} parent=63 // pred_check_branch
          %1107 = sbr.rel (%p1105) target = $region132
        $region131: #{tpu_custom_call.1} parent=63 // pred_region
          %p1108 = scmp.lt.s32.totalorder %s95, 1
          %s1109 = scalar_select %p1108, %s95, 1
          %s1110 = smul.addr %s1109, 8
          %s1111 = smul.addr %s1110, 4
          %s1112 = scalar_lea.vmem %s39, %s1111
        $region132: #{tpu_custom_call.1} parent=63 // pred_fallthru
          _
        // Predicated region
        $region133: #{tpu_custom_call.1} parent=63 // pred_check
          %p1113 = pneg %p624
        $region134: #{tpu_custom_call.1} parent=63 // pred_check_branch
          %1115 = sbr.rel (%p1113) target = $region136
        $region135: #{tpu_custom_call.1} parent=63 // pred_region
          %p1116 = scmp.lt.s32.totalorder %s95, 1
          %s1117 = scalar_select %p1116, %s95, 1
          %s1118 = scalar_lea.vmem %s41, %s1117
        $region136: #{tpu_custom_call.1} parent=63 // pred_fallthru
          _
      $region64: #{tpu_custom_call.1} parent=5 // pred_fallthru
        _
      %p1119 = scmp.le.s32.totalorder 1, %s87
      %p1120 = scmp.lt.s32.totalorder %s87, 5
      %p1121 = pnand %p1119, %p1120
      %p1122 = pneg %p1121
      // Predicated region
      $region137: #{tpu_custom_call.1} parent=5 // pred_check
        _
      $region138: #{tpu_custom_call.1} parent=5 // pred_check_branch
        %1124 = sbr.rel (%p1121) target = $region140
      $region139: #{tpu_custom_call.1} parent=5 // pred_region
        %s1125 = ssub.s32 %s87, 1
        %s1126 = sand.u32 %s112, 1
        %s1127 = scalar_lea.sflag [#allocation4], %s1126
        %s1128 = sand.u32 %s112, 1
        %s1129 = smul.addr %s1128, 4
        %s1130 = scalar_lea.vmem [#allocation3], %s1129
        // Predicated region
        $region141: #{tpu_custom_call.1} parent=139 // pred_check
          %p1131 = pneg %p125
        $region142: #{tpu_custom_call.1} parent=139 // pred_check_branch
          %1133 = sbr.rel (%p1131) target = $region144
        $region143: #{tpu_custom_call.1} parent=139 // pred_region
          %1135 = dma.done %s1127, 64
        $region144: #{tpu_custom_call.1} parent=139 // pred_fallthru
          _
        // Predicated region
        $region145: #{tpu_custom_call.1} parent=139 // pred_check
          %p1136 = pneg %p172
        $region146: #{tpu_custom_call.1} parent=139 // pred_check_branch
          %1138 = sbr.rel (%p1136) target = $region148
        $region147: #{tpu_custom_call.1} parent=139 // pred_region
          %1140 = dma.done [#allocation7], 128
        $region148: #{tpu_custom_call.1} parent=139 // pred_fallthru
          _
        // Predicated region
        $region149: #{tpu_custom_call.1} parent=139 // pred_check
          %p1141 = pneg %p214
        $region150: #{tpu_custom_call.1} parent=139 // pred_check_branch
          %1143 = sbr.rel (%p1141) target = $region152
        $region151: #{tpu_custom_call.1} parent=139 // pred_region
          %1145 = dma.done [#allocation7], 16
        $region152: #{tpu_custom_call.1} parent=139 // pred_fallthru
          _
        %s1146 = sand.u32 %s565, 1
        %s1147 = scalar_lea.sflag [#allocation10], %s1146
        %s1148 = sand.u32 %s565, 1
        %s1149 = scalar_lea.vmem [#allocation9], %s1148
        // Predicated region
        $region153: #{tpu_custom_call.1} parent=139 // pred_check
          %p1150 = pneg %p578
        $region154: #{tpu_custom_call.1} parent=139 // pred_check_branch
          %1152 = sbr.rel (%p1150) target = $region156
        $region155: #{tpu_custom_call.1} parent=139 // pred_region
          %1154 = dma.done %s1147, 16
        $region156: #{tpu_custom_call.1} parent=139 // pred_fallthru
          _
        %s1155 = sand.u32 %s112, 1
        %s1156 = scalar_lea.sflag [#allocation4], %s1155
        %s1157 = sand.u32 %s112, 1
        %s1158 = smul.addr %s1157, 4
        %s1159 = scalar_lea.vmem [#allocation3], %s1158
        %p1160 = pneg %p125
        %p1161 = pneg %p122
        %p1162 = scmp.lt.s32.totalorder %s96, 1
        %s1163 = scalar_select %p1162, %s96, 1
        %s1164 = smul.addr %s1163, 8
        %s1165 = scalar_lea.vmem %s3, %s1164
        %p1166 = pneg %p151
        %p1167 = pneg %p148
        %p1168 = pneg %p172
        %p1169 = pneg %p169
        %p1170 = pneg %p193
        %p1171 = pneg %p190
        %p1172 = pneg %p214
        %p1173 = pneg %p211
        %p1174 = scmp.lt.s32.totalorder %s97, 1
        %s1175 = scalar_select %p1174, %s97, 1
        %s1176 = scalar_lea.vmem %s11, %s1175
        %p1177 = pneg %p240
        %p1178 = pneg %p237
        %p1179 = scmp.lt.s32.totalorder %s97, 1
        %s1180 = scalar_select %p1179, %s97, 1
        %s1181 = scalar_lea.vmem %s13, %s1180
        %p1182 = pneg %p266
        %p1183 = pneg %p263
        %p1184 = scmp.lt.s32.totalorder %s97, 1
        %s1185 = scalar_select %p1184, %s97, 1
        %s1186 = smul.addr %s1185, 4
        %s1187 = smul.addr %s1186, 4
        %s1188 = scalar_lea.vmem %s15, %s1187
        %p1189 = pneg %p292
        %p1190 = pneg %p289
        %p1191 = scmp.lt.s32.totalorder %s97, 1
        %s1192 = scalar_select %p1191, %s97, 1
        %s1193 = scalar_lea.vmem %s17, %s1192
        %p1194 = pneg %p318
        %p1195 = pneg %p315
        %p1196 = scmp.lt.s32.totalorder %s97, 1
        %s1197 = scalar_select %p1196, %s97, 1
        %s1198 = smul.addr %s1197, 4
        %s1199 = smul.addr %s1198, 4
        %s1200 = scalar_lea.vmem %s19, %s1199
        %p1201 = pneg %p344
        %p1202 = pneg %p341
        %p1203 = scmp.lt.s32.totalorder %s97, 1
        %s1204 = scalar_select %p1203, %s97, 1
        %s1205 = scalar_lea.vmem %s21, %s1204
        %p1206 = pneg %p370
        %p1207 = pneg %p367
        %p1208 = scmp.lt.s32.totalorder %s97, 1
        %s1209 = scalar_select %p1208, %s97, 1
        %s1210 = smul.addr %s1209, 4
        %s1211 = smul.addr %s1210, 4
        %s1212 = scalar_lea.vmem %s23, %s1211
        %p1213 = pneg %p396
        %p1214 = pneg %p393
        %p1215 = scmp.lt.s32.totalorder %s97, 1
        %s1216 = scalar_select %p1215, %s97, 1
        %s1217 = scalar_lea.vmem %s25, %s1216
        %p1218 = pneg %p422
        %p1219 = pneg %p419
        %p1220 = scmp.lt.s32.totalorder %s97, 1
        %s1221 = scalar_select %p1220, %s97, 1
        %s1222 = smul.addr %s1221, 4
        %s1223 = smul.addr %s1222, 4
        %s1224 = scalar_lea.vmem %s27, %s1223
        %p1225 = pneg %p448
        %p1226 = pneg %p445
        %p1227 = scmp.lt.s32.totalorder %s97, 1
        %s1228 = scalar_select %p1227, %s97, 1
        %s1229 = scalar_lea.vmem %s29, %s1228
        %p1230 = pneg %p474
        %p1231 = pneg %p471
        %p1232 = scmp.lt.s32.totalorder %s97, 1
        %s1233 = scalar_select %p1232, %s97, 1
        %s1234 = scalar_lea.vmem %s31, %s1233
        %p1235 = pneg %p500
        %p1236 = pneg %p497
        %p1237 = scmp.lt.s32.totalorder %s97, 1
        %s1238 = scalar_select %p1237, %s97, 1
        %s1239 = scalar_lea.vmem %s33, %s1238
        %p1240 = pneg %p526
        %p1241 = pneg %p523
        %p1242 = scmp.lt.s32.totalorder %s97, 1
        %s1243 = scalar_select %p1242, %s97, 1
        %s1244 = smul.addr %s1243, 4
        %s1245 = smul.addr %s1244, 4
        %s1246 = scalar_lea.vmem %s35, %s1245
        %p1247 = pneg %p552
        %p1248 = pneg %p549
        %s1249 = sand.u32 %s565, 1
        %s1250 = scalar_lea.sflag [#allocation10], %s1249
        %s1251 = sand.u32 %s565, 1
        %s1252 = scalar_lea.vmem [#allocation9], %s1251
        %p1253 = pneg %p578
        %p1254 = pneg %p575
        %p1255 = scmp.lt.s32.totalorder %s97, 1
        %s1256 = scalar_select %p1255, %s97, 1
        %s1257 = smul.addr %s1256, 8
        %s1258 = smul.addr %s1257, 4
        %s1259 = scalar_lea.vmem %s39, %s1258
        %p1260 = pneg %p604
        %p1261 = pneg %p601
        %p1262 = scmp.lt.s32.totalorder %s97, 1
        %s1263 = scalar_select %p1262, %s97, 1
        %s1264 = scalar_lea.vmem %s41, %s1263
        %p1265 = pneg %p630
        %p1266 = pneg %p627
        %p1267 = pneg %p651
        %p1268 = pneg %p648
        %p1269 = pneg %p672
        %p1270 = pneg %p669
        %p1271 = pneg %p693
        %p1272 = pneg %p690
        %p1273 = pneg %p714
        %p1274 = pneg %p711
        %p1275 = pneg %p735
        %p1276 = pneg %p732
        %p1277 = pneg %p756
        %p1278 = pneg %p753
        %p1279 = pneg %p777
        %p1280 = pneg %p774
        %p1281 = pneg %p798
        %p1282 = pneg %p795
        %p1283 = pneg %p819
        %p1284 = pneg %p816
        %p1285 = pneg %p845
        %p1286 = pneg %p842
        %s1287 = sand.u32 %s832, 1
        %s1288 = scalar_lea.sflag [#allocation5], %s1287
        %s1289 = sand.u32 %s832, 1
        %s1290 = smul.addr %s1289, 8
        %s1291 = scalar_lea.vmem [#allocation11], %s1290
        %p1292 = pneg %p873
        %p1293 = pneg %p870
        %s1294 = sand.u32 %s92, 1
        %s1295 = scalar_lea.sflag [#allocation13], %s1294
        %s1296 = sand.u32 %s860, 1
        %s1297 = smul.addr %s1296, 16
        %s1298 = scalar_lea.vmem [#allocation12], %s1297
        %p1299 = pneg %p899
        %p1300 = pneg %p896
        %s1301 = sand.u32 %s92, 1
        %s1302 = scalar_lea.sflag [#allocation13], %s1301
        %s1303 = sand.u32 %s886, 1
        %s1304 = smul.addr %s1303, 4
        %s1305 = scalar_lea.vmem [#allocation14], %s1304
        %p1306 = scmp.lt.s32.totalorder %s96, 1
        %s1307 = scalar_select %p1306, %s96, 1
        %s1308 = smul.addr %s1307, 8
        %s1309 = scalar_lea.vmem %s3, %s1308
        %p1310 = scmp.lt.s32.totalorder %s97, 1
        %s1311 = scalar_select %p1310, %s97, 1
        %s1312 = scalar_lea.vmem %s11, %s1311
        %p1313 = scmp.lt.s32.totalorder %s97, 1
        %s1314 = scalar_select %p1313, %s97, 1
        %s1315 = scalar_lea.vmem %s13, %s1314
        %p1316 = scmp.lt.s32.totalorder %s97, 1
        %s1317 = scalar_select %p1316, %s97, 1
        %s1318 = smul.addr %s1317, 4
        %s1319 = smul.addr %s1318, 4
        %s1320 = scalar_lea.vmem %s15, %s1319
        %p1321 = scmp.lt.s32.totalorder %s97, 1
        %s1322 = scalar_select %p1321, %s97, 1
        %s1323 = scalar_lea.vmem %s17, %s1322
        %p1324 = scmp.lt.s32.totalorder %s97, 1
        %s1325 = scalar_select %p1324, %s97, 1
        %s1326 = smul.addr %s1325, 4
        %s1327 = smul.addr %s1326, 4
        %s1328 = scalar_lea.vmem %s19, %s1327
        %p1329 = scmp.lt.s32.totalorder %s97, 1
        %s1330 = scalar_select %p1329, %s97, 1
        %s1331 = scalar_lea.vmem %s21, %s1330
        %p1332 = scmp.lt.s32.totalorder %s97, 1
        %s1333 = scalar_select %p1332, %s97, 1
        %s1334 = smul.addr %s1333, 4
        %s1335 = smul.addr %s1334, 4
        %s1336 = scalar_lea.vmem %s23, %s1335
        %p1337 = scmp.lt.s32.totalorder %s97, 1
        %s1338 = scalar_select %p1337, %s97, 1
        %s1339 = scalar_lea.vmem %s25, %s1338
        %p1340 = scmp.lt.s32.totalorder %s97, 1
        %s1341 = scalar_select %p1340, %s97, 1
        %s1342 = smul.addr %s1341, 4
        %s1343 = smul.addr %s1342, 4
        %s1344 = scalar_lea.vmem %s27, %s1343
        %p1345 = scmp.lt.s32.totalorder %s97, 1
        %s1346 = scalar_select %p1345, %s97, 1
        %s1347 = scalar_lea.vmem %s29, %s1346
        %p1348 = scmp.lt.s32.totalorder %s97, 1
        %s1349 = scalar_select %p1348, %s97, 1
        %s1350 = scalar_lea.vmem %s31, %s1349
        %p1351 = scmp.lt.s32.totalorder %s97, 1
        %s1352 = scalar_select %p1351, %s97, 1
        %s1353 = scalar_lea.vmem %s33, %s1352
        %p1354 = scmp.lt.s32.totalorder %s97, 1
        %s1355 = scalar_select %p1354, %s97, 1
        %s1356 = smul.addr %s1355, 4
        %s1357 = smul.addr %s1356, 4
        %s1358 = scalar_lea.vmem %s35, %s1357
        %p1359 = scmp.lt.s32.totalorder %s97, 1
        %s1360 = scalar_select %p1359, %s97, 1
        %s1361 = smul.addr %s1360, 8
        %s1362 = smul.addr %s1361, 4
        %s1363 = scalar_lea.vmem %s39, %s1362
        %p1364 = scmp.lt.s32.totalorder %s97, 1
        %s1365 = scalar_select %p1364, %s97, 1
        %s1366 = scalar_lea.vmem %s41, %s1365
        %p1368 = scmp.eq.s32.totalorder %s97, 0
        // Predicated region
        $region157: #{tpu_custom_call.1} parent=139 // pred_check
          %p1369 = pneg %p1368
        $region158: #{tpu_custom_call.1} parent=139 // pred_check_branch
          %1371 = sbr.rel (%p1369) target = $region160
        $region159: #{tpu_custom_call.1} parent=139 // pred_region
          %v1372 = vld [vmem:[%s1130] sm:$0xf]
          %v1373 = vld [vmem:[#allocation6] sm:$0xf]
          %v1374 = vld [vmem:[#allocation6 + $0x4] sm:$0xf]
          %v1375 = vld [vmem:[%s1309] sm:$0xff]
          %v1376 = vld [vmem:[%s7] sm:$0x3]
          %vm1377 = vcmask 15360
          %v1379 = vsel %vm1377, %v1375, 0
          %vm1381 = vcmask 1041408
          %v1383 = vsel %vm1381, %v1376, 0
          %1385 = vmatpush.msra.mxu0 0.0
          %1386 = vmatpush.msra.mxu0 0.0
          %1387 = vmatpush.msra.mxu0 0.0
          %1388 = vmatpush.msra.mxu0 0.0
          %1389 = vmatpush.msra.mxu0 0.0
          %1390 = vmatpush.msra.mxu0 0.0
          %1391 = vmatpush.msra.mxu0 0.0
          %1392 = vmatpush.msra.mxu0 0.0
          %1393 = vmatpush.msra.mxu0 0.0
          %1394 = vmatpush.msra.mxu0 0.0
          %1395 = vmatpush.msra.mxu0 0.0
          %1396 = vmatpush.msra.mxu0 0.0
          %1397 = vmatpush.msra.mxu0 0.0
          %1398 = vmatpush.msra.mxu0 0.0
          %1399 = vmatpush.msra.mxu0 0.0
          %1400 = vmatpush.msra.mxu0 %v1383
          %1401 = vmatmul.f32.gmra.mxu0 %v1379
          %v1402 = vpop.f32.mrf.mxu0
          %v1403 = vadd.f32 0.0, %v1402
          %1404 = vdwg.mxu0
          %v1407 = vunpack.c.l.b16 %v1373
          %v1408 = vunpack.c.l.b16 %v1374
          %v1409 = vpack.c.b16 %v1408, %v1407
          %vm1411 = vcmask 130048
          %v1413 = vsel %vm1411, %v1372, 0
          %1415 = vmatpush.bf16.msra.mxu0 0
          %1416 = vmatpush.bf16.msra.mxu0 0
          %1417 = vmatpush.bf16.msra.mxu0 0
          %1418 = vmatpush.bf16.msra.mxu0 0
          %1419 = vmatpush.bf16.msra.mxu0 0
          %1420 = vmatpush.bf16.msra.mxu0 0
          %1421 = vmatpush.bf16.msra.mxu0 0
          %1422 = vmatpush.bf16.msra.mxu0 %v1409
          %1423 = vmatmul.bf16.gmra.mxu0 %v1413
          %v1424 = vpop.f32.mrf.mxu0
          %v1425 = vadd.f32 %v1403, %v1424
          %v1426 = vpop.f32.mrf.mxu0
          %1427 = vdwg.mxu0
          %v1428 = vld [vmem:[#allocation8] sm:$0x1]
          %v1430 = vperm.slane %v1428, 0
          %v1432 = vadd.f32 %v1425, %v1430
          %vm1433 = vcmask 261120
          %1434 = vst.msk [vmem:[%s1291] sm:$0xff] %vm1433, %v1432
        $region160: #{tpu_custom_call.1} parent=139 // pred_fallthru
          _
        %v1435 = vld [vmem:[%s1291] sm:$0xff]
        %v1436 = vld [vmem:[%s1312] sm:$0x1]
        %v1437 = vld [vmem:[%s1315] sm:$0x1]
        %vm1438 = vcmask 261120
        %v1439 = vsel %vm1438, %v1435, 0.0
        %1440 = vadd.xlane.f32.xlu0 %v1439
        %v1441 = vpop.xlane.xlu0 %1440
        %v1442 = vrcp.pop 32.0
        %v1443 = vmul.f32 32.0, %v1442
        %v1444 = vsub.f32 1.0, %v1443
        %v1445 = vmul.f32 %v1442, %v1444
        %v1446 = vadd.f32 %v1442, %v1445
        %vm1447 = vweird.f32 %v1442
        %v1448 = vsel %vm1447, %v1442, %v1446
        %v1449 = vmul.f32 %v1441, %v1448
        %v1450 = vsub.f32 %v1435, %v1449
        %v1451 = vmul.f32 %v1450, %v1450
        %v1452 = vsel %vm1438, %v1451, 0.0
        %1453 = vadd.xlane.f32.xlu0 %v1452
        %v1454 = vpop.xlane.xlu0 %1453
        %v1455 = vmul.f32 %v1454, %v1448
        %v1456 = vadd.f32 %v1455, 1e-05
        %v1457 = vrsqrt.pop %v1456
        %v1458 = vmul.f32 %v1457, %v1456
        %v1459 = vmul.f32 %v1458, %v1457
        %v1460 = vmul.f32 0.5, %v1459
        %v1461 = vsub.f32 1.5, %v1460
        %v1462 = vmul.f32 %v1457, %v1461
        %vm1463 = vweird.f32 %v1456
        %vm1464 = vweird.f32 %v1457
        %vm1465 = vmor %vm1463, %vm1464
        %v1466 = vsel %vm1465, %v1457, %v1462
        %v1467 = vmul.f32 %v1450, %v1466
        %v1469 = vperm.slane %v1436, 0
        %v1471 = vmul.f32 %v1467, %v1469
        %v1473 = vperm.slane %v1437, 0
        %v1475 = vadd.f32 %v1471, %v1473
        %v1476 = vpack.c.bf16 %v1475, %v1475
        %v1477 = vld [vmem:[%s1320] sm:$0xf]
        %v1478 = vld [vmem:[%s1320 + $0x4] sm:$0xf]
        %v1479 = vld [vmem:[%s1320 + $0x8] sm:$0xf]
        %v1480 = vld [vmem:[%s1320 + $0xc] sm:$0xf]
        %v1481 = vld [vmem:[%s1323] sm:$0x1]
        %v1483 = vperm.slane %v1481, 0
        %v1489 = vunpack.c.l.b16 %v1477
        %v1490 = vunpack.c.l.b16 %v1478
        %v1491 = vunpack.c.l.b16 %v1479
        %v1492 = vunpack.c.l.b16 %v1480
        %v1493 = vpack.c.b16 %v1490, %v1489
        %v1494 = vpack.c.b16 %v1492, %v1491
        %v1498 = vsel %vm1438, %v1476, 0
        %1500 = vmatpush.bf16.msra.mxu0 0
        %1501 = vmatpush.bf16.msra.mxu0 0
        %1502 = vmatpush.bf16.msra.mxu0 0
        %1503 = vmatpush.bf16.msra.mxu0 0
        %1504 = vmatpush.bf16.msra.mxu0 0
        %1505 = vmatpush.bf16.msra.mxu0 0
        %1506 = vmatpush.bf16.msra.mxu0 %v1494
        %1507 = vmatpush.bf16.msra.mxu0 %v1493
        %1508 = vmatmul.bf16.gmra.mxu0 %v1498
        %v1509 = vpop.f32.mrf.mxu0
        %v1510 = vadd.f32 %v1483, %v1509
        %v1511 = vpop.f32.mrf.mxu0
        %1512 = vdwg.mxu0
        %v1513 = vld [vmem:[%s1328] sm:$0xf]
        %v1514 = vld [vmem:[%s1328 + $0x4] sm:$0xf]
        %v1515 = vld [vmem:[%s1328 + $0x8] sm:$0xf]
        %v1516 = vld [vmem:[%s1328 + $0xc] sm:$0xf]
        %v1517 = vld [vmem:[%s1331] sm:$0x1]
        %v1519 = vperm.slane %v1517, 0
        %v1525 = vunpack.c.l.b16 %v1513
        %v1526 = vunpack.c.l.b16 %v1514
        %v1527 = vunpack.c.l.b16 %v1515
        %v1528 = vunpack.c.l.b16 %v1516
        %v1529 = vpack.c.b16 %v1526, %v1525
        %v1530 = vpack.c.b16 %v1528, %v1527
        %1533 = vmatpush.bf16.msra.mxu0 0
        %1534 = vmatpush.bf16.msra.mxu0 0
        %1535 = vmatpush.bf16.msra.mxu0 0
        %1536 = vmatpush.bf16.msra.mxu0 0
        %1537 = vmatpush.bf16.msra.mxu0 0
        %1538 = vmatpush.bf16.msra.mxu0 0
        %1539 = vmatpush.bf16.msra.mxu0 %v1530
        %1540 = vmatpush.bf16.msra.mxu0 %v1529
        %1541 = vmatmul.bf16.gmra.mxu0 %v1498
        %v1542 = vpop.f32.mrf.mxu0
        %v1543 = vadd.f32 %v1519, %v1542
        %v1544 = vpop.f32.mrf.mxu0
        %1545 = vdwg.mxu0
        %v1546 = vld [vmem:[%s1336] sm:$0xf]
        %v1547 = vld [vmem:[%s1336 + $0x4] sm:$0xf]
        %v1548 = vld [vmem:[%s1336 + $0x8] sm:$0xf]
        %v1549 = vld [vmem:[%s1336 + $0xc] sm:$0xf]
        %v1550 = vld [vmem:[%s1339] sm:$0x1]
        %v1552 = vperm.slane %v1550, 0
        %v1558 = vunpack.c.l.b16 %v1546
        %v1559 = vunpack.c.l.b16 %v1547
        %v1560 = vunpack.c.l.b16 %v1548
        %v1561 = vunpack.c.l.b16 %v1549
        %v1562 = vpack.c.b16 %v1559, %v1558
        %v1563 = vpack.c.b16 %v1561, %v1560
        %1566 = vmatpush.bf16.msra.mxu0 0
        %1567 = vmatpush.bf16.msra.mxu0 0
        %1568 = vmatpush.bf16.msra.mxu0 0
        %1569 = vmatpush.bf16.msra.mxu0 0
        %1570 = vmatpush.bf16.msra.mxu0 0
        %1571 = vmatpush.bf16.msra.mxu0 0
        %1572 = vmatpush.bf16.msra.mxu0 %v1563
        %1573 = vmatpush.bf16.msra.mxu0 %v1562
        %1574 = vmatmul.bf16.gmra.mxu0 %v1498
        %v1575 = vpop.f32.mrf.mxu0
        %v1576 = vadd.f32 %v1552, %v1575
        %v1577 = vpop.f32.mrf.mxu0
        %1578 = vdwg.mxu0
        %1580 = vrot.lane.b32.xlu0 %v1510, 120
        %v1581 = vpop.permute.xlu0 %1580
        %1583 = vrot.lane.b32.xlu0 %v1510, 112
        %v1584 = vpop.permute.xlu0 %1583
        %1586 = vrot.lane.b32.xlu0 %v1510, 104
        %v1587 = vpop.permute.xlu0 %1586
        %v1589 = vpack.c.bf16 %v1510, %v1510
        %v1590 = vpack.c.bf16 %v1581, %v1581
        %v1591 = vpack.c.bf16 %v1584, %v1584
        %v1592 = vpack.c.bf16 %v1587, %v1587
        %1594 = vrot.lane.b32.xlu0 %v1543, 120
        %v1595 = vpop.permute.xlu0 %1594
        %1597 = vrot.lane.b32.xlu0 %v1543, 112
        %v1598 = vpop.permute.xlu0 %1597
        %1600 = vrot.lane.b32.xlu0 %v1543, 104
        %v1601 = vpop.permute.xlu0 %1600
        %v1603 = vpack.c.bf16 %v1543, %v1543
        %v1604 = vpack.c.bf16 %v1595, %v1595
        %v1605 = vpack.c.bf16 %v1598, %v1598
        %v1606 = vpack.c.bf16 %v1601, %v1601
        %1608 = vrot.lane.b32.xlu0 %v1576, 120
        %v1609 = vpop.permute.xlu0 %1608
        %1611 = vrot.lane.b32.xlu0 %v1576, 112
        %v1612 = vpop.permute.xlu0 %1611
        %1614 = vrot.lane.b32.xlu0 %v1576, 104
        %v1615 = vpop.permute.xlu0 %1614
        %v1617 = vpack.c.bf16 %v1576, %v1576
        %v1618 = vpack.c.bf16 %v1609, %v1609
        %v1619 = vpack.c.bf16 %v1612, %v1612
        %v1620 = vpack.c.bf16 %v1615, %v1615
        %vm1621 = vcmask 64512
        %v1623 = vsel %vm1621, %v1589, 0
        %v1626 = vsel %vm1621, %v1603, 0
        %1628 = vmatpush.bf16.xpose.msra.mxu0 0
        %1629 = vmatpush.bf16.xpose.msra.mxu0 0
        %1630 = vmatpush.bf16.xpose.msra.mxu0 0
        %1631 = vmatpush.bf16.xpose.msra.mxu0 0
        %1632 = vmatpush.bf16.xpose.msra.mxu0 0
        %1633 = vmatpush.bf16.xpose.msra.mxu0 0
        %1634 = vmatpush.bf16.xpose.msra.mxu0 0
        %1635 = vmatpush.bf16.xpose.msra.mxu0 %v1626
        %1636 = vmatmul.bf16.gmra.mxu0 %v1623
        %v1637 = vpop.f32.mrf.mxu0
        %v1638 = vadd.f32 0.0, %v1637
        %v1639 = vpop.f32.mrf.mxu0
        %1640 = vdwg.mxu0
        %v1642 = vsel %vm1621, %v1590, 0
        %v1645 = vsel %vm1621, %v1604, 0
        %1647 = vmatpush.bf16.xpose.msra.mxu0 0
        %1648 = vmatpush.bf16.xpose.msra.mxu0 0
        %1649 = vmatpush.bf16.xpose.msra.mxu0 0
        %1650 = vmatpush.bf16.xpose.msra.mxu0 0
        %1651 = vmatpush.bf16.xpose.msra.mxu0 0
        %1652 = vmatpush.bf16.xpose.msra.mxu0 0
        %1653 = vmatpush.bf16.xpose.msra.mxu0 0
        %1654 = vmatpush.bf16.xpose.msra.mxu0 %v1645
        %1655 = vmatmul.bf16.gmra.mxu0 %v1642
        %v1656 = vpop.f32.mrf.mxu0
        %v1657 = vadd.f32 0.0, %v1656
        %v1658 = vpop.f32.mrf.mxu0
        %1659 = vdwg.mxu0
        %v1661 = vsel %vm1621, %v1591, 0
        %v1664 = vsel %vm1621, %v1605, 0
        %1666 = vmatpush.bf16.xpose.msra.mxu0 0
        %1667 = vmatpush.bf16.xpose.msra.mxu0 0
        %1668 = vmatpush.bf16.xpose.msra.mxu0 0
        %1669 = vmatpush.bf16.xpose.msra.mxu0 0
        %1670 = vmatpush.bf16.xpose.msra.mxu0 0
        %1671 = vmatpush.bf16.xpose.msra.mxu0 0
        %1672 = vmatpush.bf16.xpose.msra.mxu0 0
        %1673 = vmatpush.bf16.xpose.msra.mxu0 %v1664
        %1674 = vmatmul.bf16.gmra.mxu0 %v1661
        %v1675 = vpop.f32.mrf.mxu0
        %v1676 = vadd.f32 0.0, %v1675
        %v1677 = vpop.f32.mrf.mxu0
        %1678 = vdwg.mxu0
        %v1680 = vsel %vm1621, %v1592, 0
        %v1683 = vsel %vm1621, %v1606, 0
        %1685 = vmatpush.bf16.xpose.msra.mxu0 0
        %1686 = vmatpush.bf16.xpose.msra.mxu0 0
        %1687 = vmatpush.bf16.xpose.msra.mxu0 0
        %1688 = vmatpush.bf16.xpose.msra.mxu0 0
        %1689 = vmatpush.bf16.xpose.msra.mxu0 0
        %1690 = vmatpush.bf16.xpose.msra.mxu0 0
        %1691 = vmatpush.bf16.xpose.msra.mxu0 0
        %1692 = vmatpush.bf16.xpose.msra.mxu0 %v1683
        %1693 = vmatmul.bf16.gmra.mxu0 %v1680
        %v1694 = vpop.f32.mrf.mxu0
        %v1695 = vadd.f32 0.0, %v1694
        %v1696 = vpop.f32.mrf.mxu0
        %1697 = vdwg.mxu0
        %v1698 = vmul.f32 %v1638, 0.35355338
        %v1699 = vmul.f32 %v1657, 0.35355338
        %v1700 = vmul.f32 %v1676, 0.35355338
        %v1701 = vmul.f32 %v1695, 0.35355338
        %v1702 = vsel %vm1621, %v1698, -inf
        %1703 = vmax.xlane.f32.xlu0 %v1702
        %v1704 = vpop.xlane.xlu0 %1703
        %v1705 = vsel %vm1621, %v1699, -inf
        %1706 = vmax.xlane.f32.xlu0 %v1705
        %v1707 = vpop.xlane.xlu0 %1706
        %v1708 = vsel %vm1621, %v1700, -inf
        %1709 = vmax.xlane.f32.xlu0 %v1708
        %v1710 = vpop.xlane.xlu0 %1709
        %v1711 = vsel %vm1621, %v1701, -inf
        %1712 = vmax.xlane.f32.xlu0 %v1711
        %v1713 = vpop.xlane.xlu0 %1712
        %v1714 = vsub.f32 %v1698, %v1704
        %v1715 = vsub.f32 %v1699, %v1707
        %v1716 = vsub.f32 %v1700, %v1710
        %v1717 = vsub.f32 %v1701, %v1713
        %v1718 = vmul.f32 %v1714, 1.442695
        %v1719 = vpow.pop %v1718
        %v1720 = vmul.f32 %v1715, 1.442695
        %v1721 = vpow.pop %v1720
        %v1722 = vmul.f32 %v1716, 1.442695
        %v1723 = vpow.pop %v1722
        %v1724 = vmul.f32 %v1717, 1.442695
        %v1725 = vpow.pop %v1724
        %v1726 = vsel %vm1621, %v1719, 0.0
        %1727 = vadd.xlane.f32.xlu0 %v1726
        %v1728 = vpop.xlane.xlu0 %1727
        %v1729 = vsel %vm1621, %v1721, 0.0
        %1730 = vadd.xlane.f32.xlu0 %v1729
        %v1731 = vpop.xlane.xlu0 %1730
        %v1732 = vsel %vm1621, %v1723, 0.0
        %1733 = vadd.xlane.f32.xlu0 %v1732
        %v1734 = vpop.xlane.xlu0 %1733
        %v1735 = vsel %vm1621, %v1725, 0.0
        %1736 = vadd.xlane.f32.xlu0 %v1735
        %v1737 = vpop.xlane.xlu0 %1736
        %v1738 = vrcp.pop %v1728
        %v1739 = vrcp.pop %v1731
        %v1740 = vrcp.pop %v1734
        %v1741 = vrcp.pop %v1737
        %v1742 = vmul.f32 %v1719, %v1738
        %v1743 = vmul.f32 %v1721, %v1739
        %v1744 = vmul.f32 %v1723, %v1740
        %v1745 = vmul.f32 %v1725, %v1741
        %v1746 = vpack.c.bf16 %v1742, %v1742
        %v1747 = vpack.c.bf16 %v1743, %v1743
        %v1748 = vpack.c.bf16 %v1744, %v1744
        %v1749 = vpack.c.bf16 %v1745, %v1745
        %vm1750 = vcmask 60416
        %1751 = vst.msk [vmem:[%s1298] sm:$0xf] %vm1750, %v1746
        %1752 = vst.msk [vmem:[%s1298 + $0x4] sm:$0xf] %vm1750, %v1747
        %1753 = vst.msk [vmem:[%s1298 + $0x8] sm:$0xf] %vm1750, %v1748
        %1754 = vst.msk [vmem:[%s1298 + $0xc] sm:$0xf] %vm1750, %v1749
        %v1756 = vsel %vm1621, %v1746, 0
        %vm1758 = vcmask 1043456
        %v1760 = vsel %vm1758, %v1617, 0
        %1762 = vmatpush.bf16.msra.mxu0 0
        %1763 = vmatpush.bf16.msra.mxu0 0
        %1764 = vmatpush.bf16.msra.mxu0 0
        %1765 = vmatpush.bf16.msra.mxu0 0
        %1766 = vmatpush.bf16.msra.mxu0 0
        %1767 = vmatpush.bf16.msra.mxu0 0
        %1768 = vmatpush.bf16.msra.mxu0 0
        %1769 = vmatpush.bf16.msra.mxu0 %v1760
        %1770 = vmatmul.bf16.gmra.mxu0 %v1756
        %v1771 = vpop.f32.mrf.mxu0
        %v1772 = vadd.f32 0.0, %v1771
        %v1773 = vpop.f32.mrf.mxu0
        %1774 = vdwg.mxu0
        %v1776 = vsel %vm1621, %v1747, 0
        %v1779 = vsel %vm1758, %v1618, 0
        %1781 = vmatpush.bf16.msra.mxu0 0
        %1782 = vmatpush.bf16.msra.mxu0 0
        %1783 = vmatpush.bf16.msra.mxu0 0
        %1784 = vmatpush.bf16.msra.mxu0 0
        %1785 = vmatpush.bf16.msra.mxu0 0
        %1786 = vmatpush.bf16.msra.mxu0 0
        %1787 = vmatpush.bf16.msra.mxu0 0
        %1788 = vmatpush.bf16.msra.mxu0 %v1779
        %1789 = vmatmul.bf16.gmra.mxu0 %v1776
        %v1790 = vpop.f32.mrf.mxu0
        %v1791 = vadd.f32 0.0, %v1790
        %v1792 = vpop.f32.mrf.mxu0
        %1793 = vdwg.mxu0
        %v1795 = vsel %vm1621, %v1748, 0
        %v1798 = vsel %vm1758, %v1619, 0
        %1800 = vmatpush.bf16.msra.mxu0 0
        %1801 = vmatpush.bf16.msra.mxu0 0
        %1802 = vmatpush.bf16.msra.mxu0 0
        %1803 = vmatpush.bf16.msra.mxu0 0
        %1804 = vmatpush.bf16.msra.mxu0 0
        %1805 = vmatpush.bf16.msra.mxu0 0
        %1806 = vmatpush.bf16.msra.mxu0 0
        %1807 = vmatpush.bf16.msra.mxu0 %v1798
        %1808 = vmatmul.bf16.gmra.mxu0 %v1795
        %v1809 = vpop.f32.mrf.mxu0
        %v1810 = vadd.f32 0.0, %v1809
        %v1811 = vpop.f32.mrf.mxu0
        %1812 = vdwg.mxu0
        %v1814 = vsel %vm1621, %v1749, 0
        %v1817 = vsel %vm1758, %v1620, 0
        %1819 = vmatpush.bf16.msra.mxu0 0
        %1820 = vmatpush.bf16.msra.mxu0 0
        %1821 = vmatpush.bf16.msra.mxu0 0
        %1822 = vmatpush.bf16.msra.mxu0 0
        %1823 = vmatpush.bf16.msra.mxu0 0
        %1824 = vmatpush.bf16.msra.mxu0 0
        %1825 = vmatpush.bf16.msra.mxu0 0
        %1826 = vmatpush.bf16.msra.mxu0 %v1817
        %1827 = vmatmul.bf16.gmra.mxu0 %v1814
        %v1828 = vpop.f32.mrf.mxu0
        %v1829 = vadd.f32 0.0, %v1828
        %v1830 = vpop.f32.mrf.mxu0
        %1831 = vdwg.mxu0
        %1833 = vrot.lane.b32.xlu0 %v1791, 8
        %v1834 = vpop.permute.xlu0 %1833
        %1837 = vrot.lane.b32.xlu0 %v1810, 16
        %v1838 = vpop.permute.xlu0 %1837
        %1841 = vrot.lane.b32.xlu0 %v1829, 24
        %v1842 = vpop.permute.xlu0 %1841
        %v1844 = vsel %vm1621, %v1772, %v1834
        %vm1845 = vcmask 130048
        %v1846 = vsel %vm1845, %v1844, %v1838
        %vm1847 = vcmask 195584
        %v1848 = vsel %vm1847, %v1846, %v1842
        %v1849 = vpack.c.bf16 %v1848, %v1848
        %v1850 = vld [vmem:[%s1344] sm:$0xf]
        %v1851 = vld [vmem:[%s1344 + $0x4] sm:$0xf]
        %v1852 = vld [vmem:[%s1344 + $0x8] sm:$0xf]
        %v1853 = vld [vmem:[%s1344 + $0xc] sm:$0xf]
        %v1854 = vld [vmem:[%s1347] sm:$0x1]
        %v1856 = vperm.slane %v1854, 0
        %v1862 = vunpack.c.l.b16 %v1850
        %v1863 = vunpack.c.l.b16 %v1851
        %v1864 = vunpack.c.l.b16 %v1852
        %v1865 = vunpack.c.l.b16 %v1853
        %v1866 = vpack.c.b16 %v1863, %v1862
        %v1867 = vpack.c.b16 %v1865, %v1864
        %v1871 = vsel %vm1438, %v1849, 0
        %1873 = vmatpush.bf16.msra.mxu0 0
        %1874 = vmatpush.bf16.msra.mxu0 0
        %1875 = vmatpush.bf16.msra.mxu0 0
        %1876 = vmatpush.bf16.msra.mxu0 0
        %1877 = vmatpush.bf16.msra.mxu0 0
        %1878 = vmatpush.bf16.msra.mxu0 0
        %1879 = vmatpush.bf16.msra.mxu0 %v1867
        %1880 = vmatpush.bf16.msra.mxu0 %v1866
        %1881 = vmatmul.bf16.gmra.mxu0 %v1871
        %v1882 = vpop.f32.mrf.mxu0
        %v1883 = vadd.f32 %v1856, %v1882
        %v1884 = vpop.f32.mrf.mxu0
        %1885 = vdwg.mxu0
        %v1886 = vadd.f32 %v1435, %v1883
        %v1887 = vld [vmem:[%s1350] sm:$0x1]
        %v1888 = vld [vmem:[%s1353] sm:$0x1]
        %v1889 = vsel %vm1438, %v1886, 0.0
        %1890 = vadd.xlane.f32.xlu0 %v1889
        %v1891 = vpop.xlane.xlu0 %1890
        %v1892 = vmul.f32 %v1891, %v1448
        %v1893 = vsub.f32 %v1886, %v1892
        %v1894 = vmul.f32 %v1893, %v1893
        %v1895 = vsel %vm1438, %v1894, 0.0
        %1896 = vadd.xlane.f32.xlu0 %v1895
        %v1897 = vpop.xlane.xlu0 %1896
        %v1898 = vmul.f32 %v1897, %v1448
        %v1899 = vadd.f32 %v1898, 1e-05
        %v1900 = vrsqrt.pop %v1899
        %v1901 = vmul.f32 %v1900, %v1899
        %v1902 = vmul.f32 %v1901, %v1900
        %v1903 = vmul.f32 0.5, %v1902
        %v1904 = vsub.f32 1.5, %v1903
        %v1905 = vmul.f32 %v1900, %v1904
        %vm1906 = vweird.f32 %v1899
        %vm1907 = vweird.f32 %v1900
        %vm1908 = vmor %vm1906, %vm1907
        %v1909 = vsel %vm1908, %v1900, %v1905
        %v1910 = vmul.f32 %v1893, %v1909
        %v1912 = vperm.slane %v1887, 0
        %v1914 = vmul.f32 %v1910, %v1912
        %v1916 = vperm.slane %v1888, 0
        %v1918 = vadd.f32 %v1914, %v1916
        %v1919 = vpack.c.bf16 %v1918, %v1918
        %v1920 = vld [vmem:[%s1358] sm:$0xf]
        %v1921 = vld [vmem:[%s1358 + $0x4] sm:$0xf]
        %v1922 = vld [vmem:[%s1358 + $0x8] sm:$0xf]
        %v1923 = vld [vmem:[%s1358 + $0xc] sm:$0xf]
        %v1924 = vld [vmem:[%s1149] sm:$0x1]
        %v1926 = vperm.slane %v1924, 0
        %v1932 = vunpack.c.l.b16 %v1920
        %v1933 = vunpack.c.l.b16 %v1921
        %v1934 = vunpack.c.l.b16 %v1922
        %v1935 = vunpack.c.l.b16 %v1923
        %v1936 = vpack.c.b16 %v1933, %v1932
        %v1937 = vpack.c.b16 %v1935, %v1934
        %v1941 = vsel %vm1438, %v1919, 0
        %1943 = vmatpush.bf16.msra.mxu0 0
        %1944 = vmatpush.bf16.msra.mxu0 0
        %1945 = vmatpush.bf16.msra.mxu0 0
        %1946 = vmatpush.bf16.msra.mxu0 0
        %1947 = vmatpush.bf16.msra.mxu0 0
        %1948 = vmatpush.bf16.msra.mxu0 0
        %1949 = vmatpush.bf16.msra.mxu0 %v1937
        %1950 = vmatpush.bf16.msra.mxu0 %v1936
        %1951 = vmatmul.bf16.gmra.mxu0 %v1941
        %v1952 = vpop.f32.mrf.mxu0
        %v1953 = vadd.f32 %v1926, %v1952
        %v1954 = vpop.f32.mrf.mxu0
        %1955 = vdwg.mxu0
        %v1956 = vmul.f32 %v1953, 0.5
        %v1957 = vmul.f32 %v1953, 0.044715
        %v1958 = vmul.f32 %v1957, %v1953
        %v1959 = vmul.f32 %v1958, %v1953
        %v1960 = vadd.f32 %v1953, %v1959
        %v1961 = vmul.f32 %v1960, 0.7978846
        %v1962 = vtanh.pop %v1961
        %v1963 = vadd.f32 %v1962, 1.0
        %v1964 = vmul.f32 %v1956, %v1963
        %v1965 = vpack.c.bf16 %v1964, %v1964
        %v1966 = vld [vmem:[%s1363] sm:$0xf]
        %v1967 = vld [vmem:[%s1363 + $0x4] sm:$0xf]
        %v1968 = vld [vmem:[%s1363 + $0x8] sm:$0xf]
        %v1969 = vld [vmem:[%s1363 + $0xc] sm:$0xf]
        %v1970 = vld [vmem:[%s1363 + $0x10] sm:$0xf]
        %v1971 = vld [vmem:[%s1363 + $0x14] sm:$0xf]
        %v1972 = vld [vmem:[%s1363 + $0x18] sm:$0xf]
        %v1973 = vld [vmem:[%s1363 + $0x1c] sm:$0xf]
        %v1974 = vld [vmem:[%s1366] sm:$0x1]
        %v1976 = vperm.slane %v1974, 0
        %v1986 = vunpack.c.l.b16 %v1966
        %v1987 = vunpack.c.l.b16 %v1967
        %v1988 = vunpack.c.l.b16 %v1968
        %v1989 = vunpack.c.l.b16 %v1969
        %v1990 = vunpack.c.l.b16 %v1970
        %v1991 = vunpack.c.l.b16 %v1971
        %v1992 = vunpack.c.l.b16 %v1972
        %v1993 = vunpack.c.l.b16 %v1973
        %v1994 = vpack.c.b16 %v1987, %v1986
        %v1995 = vpack.c.b16 %v1989, %v1988
        %v1996 = vpack.c.b16 %v1991, %v1990
        %v1997 = vpack.c.b16 %v1993, %v1992
        %vm2002 = vcmask 523264
        %v2004 = vsel %vm2002, %v1965, 0
        %2006 = vmatpush.bf16.msra.mxu0 0
        %2007 = vmatpush.bf16.msra.mxu0 0
        %2008 = vmatpush.bf16.msra.mxu0 0
        %2009 = vmatpush.bf16.msra.mxu0 0
        %2010 = vmatpush.bf16.msra.mxu0 %v1997
        %2011 = vmatpush.bf16.msra.mxu0 %v1996
        %2012 = vmatpush.bf16.msra.mxu0 %v1995
        %2013 = vmatpush.bf16.msra.mxu0 %v1994
        %2014 = vmatmul.bf16.gmra.mxu0 %v2004
        %v2015 = vpop.f32.mrf.mxu0
        %v2016 = vadd.f32 %v1976, %v2015
        %v2017 = vpop.f32.mrf.mxu0
        %2018 = vdwg.mxu0
        %v2019 = vadd.f32 %v1886, %v2016
        %2020 = vst.msk [vmem:[%s1291] sm:$0xff] %vm1438, %v2019
        %p2021 = scmp.eq.s32.totalorder %s97, 1
        // Predicated region
        $region161: #{tpu_custom_call.1} parent=139 // pred_check
          %p2022 = pneg %p2021
        $region162: #{tpu_custom_call.1} parent=139 // pred_check_branch
          %2024 = sbr.rel (%p2022) target = $region164
        $region163: #{tpu_custom_call.1} parent=139 // pred_region
          %v2025 = vld [vmem:[%s43] sm:$0xff]
          %v2026 = vld [vmem:[%s43 + $0x8] sm:$0xff]
          %v2027 = vld [vmem:[%s43 + $0x10] sm:$0xff]
          %v2028 = vld [vmem:[%s43 + $0x18] sm:$0xff]
          %v2029 = vld [vmem:[%s45] sm:$0x1]
          %v2031 = vperm.slane %v2029, 0
          %v2034 = vsel %vm1438, %v2019, 0
          %2036 = vmatpush.msra.mxu0 0.0
          %2037 = vmatpush.msra.mxu0 0.0
          %2038 = vmatpush.msra.mxu0 0.0
          %2039 = vmatpush.msra.mxu0 0.0
          %2040 = vmatpush.msra.mxu0 0.0
          %2041 = vmatpush.msra.mxu0 0.0
          %2042 = vmatpush.msra.mxu0 0.0
          %2043 = vmatpush.msra.mxu0 0.0
          %2044 = vmatpush.msra.mxu0 0.0
          %2045 = vmatpush.msra.mxu0 0.0
          %2046 = vmatpush.msra.mxu0 0.0
          %2047 = vmatpush.msra.mxu0 0.0
          %2048 = vmatpush.msra.mxu0 %v2028
          %2049 = vmatpush.msra.mxu0 %v2027
          %2050 = vmatpush.msra.mxu0 %v2026
          %2051 = vmatpush.msra.mxu0 %v2025
          %2052 = vmatmul.f32.gmra.mxu0 %v2034
          %v2053 = vpop.f32.mrf.mxu0
          %v2054 = vadd.f32 %v2031, %v2053
          %2055 = vdwg.mxu0
          %v2056 = vtanh.pop %v2054
          %v2057 = vld [vmem:[%s47] sm:$0x1]
          %v2059 = vsel %vm1845, %v2057, 0
          %v2062 = vsel %vm1845, %v2056, 0
          %2064 = vmatpush.xpose.msra.mxu0 0.0
          %2065 = vmatpush.xpose.msra.mxu0 0.0
          %2066 = vmatpush.xpose.msra.mxu0 0.0
          %2067 = vmatpush.xpose.msra.mxu0 0.0
          %2068 = vmatpush.xpose.msra.mxu0 0.0
          %2069 = vmatpush.xpose.msra.mxu0 0.0
          %2070 = vmatpush.xpose.msra.mxu0 0.0
          %2071 = vmatpush.xpose.msra.mxu0 0.0
          %2072 = vmatpush.xpose.msra.mxu0 0.0
          %2073 = vmatpush.xpose.msra.mxu0 0.0
          %2074 = vmatpush.xpose.msra.mxu0 0.0
          %2075 = vmatpush.xpose.msra.mxu0 0.0
          %2076 = vmatpush.xpose.msra.mxu0 0.0
          %2077 = vmatpush.xpose.msra.mxu0 0.0
          %2078 = vmatpush.xpose.msra.mxu0 0.0
          %2079 = vmatpush.xpose.msra.mxu0 %v2062
          %2080 = vmatmul.f32.gmra.mxu0 %v2059
          %v2081 = vpop.f32.mrf.mxu0
          %v2082 = vadd.f32 0.0, %v2081
          %2083 = vdwg.mxu0
          %vm2084 = vcmask 57344
          %v2085 = vsel %vm2084, %v2082, -inf
          %2086 = vmax.xlane.f32.xlu0 %v2085
          %v2087 = vpop.xlane.xlu0 %2086
          %v2088 = vsub.f32 %v2082, %v2087
          %v2089 = vmul.f32 %v2088, 1.442695
          %v2090 = vpow.pop %v2089
          %v2091 = vsel %vm2084, %v2090, 0.0
          %2092 = vadd.xlane.f32.xlu0 %v2091
          %v2093 = vpop.xlane.xlu0 %2092
          %v2094 = vrcp.pop %v2093
          %v2095 = vmul.f32 %v2093, %v2094
          %v2096 = vsub.f32 1.0, %v2095
          %v2097 = vmul.f32 %v2094, %v2096
          %v2098 = vadd.f32 %v2094, %v2097
          %vm2099 = vweird.f32 %v2093
          %vm2100 = vweird.f32 %v2094
          %vm2101 = vmor %vm2099, %vm2100
          %v2102 = vsel %vm2101, %v2094, %v2098
          %v2103 = vand.u32 2147483647, %v2093
          %vm2104 = vcmp.eq.f32.partialorder %v2103, 8.507059e+37
          %v2105 = vand.u32 %v2093, 2147483648
          %v2106 = vor.u32 1.1754944e-38, %v2105
          %v2107 = vsel %vm2104, %v2106, %v2102
          %v2108 = vmul.f32 %v2090, %v2107
          %v2110 = vsel %vm1621, %v2108, 0
          %2112 = vmatpush.msra.mxu0 0.0
          %2113 = vmatpush.msra.mxu0 0.0
          %2114 = vmatpush.msra.mxu0 0.0
          %2115 = vmatpush.msra.mxu0 0.0
          %2116 = vmatpush.msra.mxu0 0.0
          %2117 = vmatpush.msra.mxu0 0.0
          %2118 = vmatpush.msra.mxu0 0.0
          %2119 = vmatpush.msra.mxu0 0.0
          %2120 = vmatpush.msra.mxu0 0.0
          %2121 = vmatpush.msra.mxu0 0.0
          %2122 = vmatpush.msra.mxu0 0.0
          %2123 = vmatpush.msra.mxu0 0.0
          %2124 = vmatpush.msra.mxu0 0.0
          %2125 = vmatpush.msra.mxu0 0.0
          %2126 = vmatpush.msra.mxu0 0.0
          %2127 = vmatpush.msra.mxu0 %v2019
          %2128 = vmatmul.f32.gmra.mxu0 %v2110
          %v2129 = vpop.f32.mrf.mxu0
          %v2130 = vadd.f32 0.0, %v2129
          %2131 = vdwg.mxu0
          %v2132 = vld [vmem:[%s49] sm:$0x3]
          %v2133 = vld [vmem:[%s51] sm:$0x3]
          %2135 = vset.pattern.permute.xlu0 0
          %2136 = vperm.xlu0 %2135, %v2133
          %v2137 = vpop.permute.xlu0 %2136
          %v2140 = vsel %vm1438, %v2132, 0
          %2142 = vmatpush.xpose.msra.mxu0 0.0
          %2143 = vmatpush.xpose.msra.mxu0 0.0
          %2144 = vmatpush.xpose.msra.mxu0 0.0
          %2145 = vmatpush.xpose.msra.mxu0 0.0
          %2146 = vmatpush.xpose.msra.mxu0 0.0
          %2147 = vmatpush.xpose.msra.mxu0 0.0
          %2148 = vmatpush.xpose.msra.mxu0 0.0
          %2149 = vmatpush.xpose.msra.mxu0 0.0
          %2150 = vmatpush.xpose.msra.mxu0 0.0
          %2151 = vmatpush.xpose.msra.mxu0 0.0
          %2152 = vmatpush.xpose.msra.mxu0 0.0
          %2153 = vmatpush.xpose.msra.mxu0 0.0
          %2154 = vmatpush.xpose.msra.mxu0 0.0
          %2155 = vmatpush.xpose.msra.mxu0 0.0
          %2156 = vmatpush.xpose.msra.mxu0 0.0
          %2157 = vmatpush.xpose.msra.mxu0 %v2034
          %2158 = vmatmul.f32.gmra.mxu0 %v2140
          %v2159 = vpop.f32.mrf.mxu0
          %v2160 = vadd.f32 %v2137, %v2159
          %2161 = vdwg.mxu0
          %v2162 = vld [vmem:[%s53] sm:$0xff]
          %v2163 = vld [vmem:[%s53 + $0x8] sm:$0xff]
          %v2164 = vld [vmem:[%s53 + $0x10] sm:$0xff]
          %v2165 = vld [vmem:[%s53 + $0x18] sm:$0xff]
          %v2166 = vld [vmem:[%s55] sm:$0x1]
          %v2168 = vsel %vm1438, %v2130, 0
          %2170 = vmatpush.msra.mxu0 0.0
          %2171 = vmatpush.msra.mxu0 0.0
          %2172 = vmatpush.msra.mxu0 0.0
          %2173 = vmatpush.msra.mxu0 0.0
          %2174 = vmatpush.msra.mxu0 0.0
          %2175 = vmatpush.msra.mxu0 0.0
          %2176 = vmatpush.msra.mxu0 0.0
          %2177 = vmatpush.msra.mxu0 0.0
          %2178 = vmatpush.msra.mxu0 0.0
          %2179 = vmatpush.msra.mxu0 0.0
          %2180 = vmatpush.msra.mxu0 0.0
          %2181 = vmatpush.msra.mxu0 0.0
          %2182 = vmatpush.msra.mxu0 %v2165
          %2183 = vmatpush.msra.mxu0 %v2164
          %2184 = vmatpush.msra.mxu0 %v2163
          %2185 = vmatpush.msra.mxu0 %v2162
          %2186 = vmatmul.f32.gmra.mxu0 %v2168
          %v2187 = vpop.f32.mrf.mxu0
          %v2188 = vadd.f32 %v2166, %v2187
          %2189 = vdwg.mxu0
          %v2190 = vmul.f32 %v2188, 0.5
          %v2191 = vmul.f32 %v2188, 0.044715
          %v2192 = vmul.f32 %v2191, %v2188
          %v2193 = vmul.f32 %v2192, %v2188
          %v2194 = vadd.f32 %v2188, %v2193
          %v2195 = vmul.f32 %v2194, 0.7978846
          %v2196 = vtanh.pop %v2195
          %v2197 = vadd.f32 %v2196, 1.0
          %v2198 = vmul.f32 %v2190, %v2197
          %v2199 = vld [vmem:[%s57] sm:$0xff]
          %v2200 = vld [vmem:[%s57 + $0x8] sm:$0xff]
          %v2201 = vld [vmem:[#allocation2] sm:$0x1]
          %v2203 = vsel %vm1845, %v2198, 0
          %2205 = vmatpush.msra.mxu0 0.0
          %2206 = vmatpush.msra.mxu0 0.0
          %2207 = vmatpush.msra.mxu0 0.0
          %2208 = vmatpush.msra.mxu0 0.0
          %2209 = vmatpush.msra.mxu0 0.0
          %2210 = vmatpush.msra.mxu0 0.0
          %2211 = vmatpush.msra.mxu0 0.0
          %2212 = vmatpush.msra.mxu0 0.0
          %2213 = vmatpush.msra.mxu0 0.0
          %2214 = vmatpush.msra.mxu0 0.0
          %2215 = vmatpush.msra.mxu0 0.0
          %2216 = vmatpush.msra.mxu0 0.0
          %2217 = vmatpush.msra.mxu0 0.0
          %2218 = vmatpush.msra.mxu0 0.0
          %2219 = vmatpush.msra.mxu0 %v2200
          %2220 = vmatpush.msra.mxu0 %v2199
          %2221 = vmatmul.f32.gmra.mxu0 %v2203
          %v2222 = vpop.f32.mrf.mxu0
          %v2223 = vadd.f32 %v2201, %v2222
          %2224 = vdwg.mxu0
          %v2225 = vmax.f32 %v2223, 0.0
          %v2226 = vmin.f32 %v2225, 3.0
          %2227 = vst.msk [vmem:[%s1305] sm:$0x1] %vm2084, %v2108
          %vm2228 = vcmask 58368
          %2229 = vst.msk [vmem:[%s1305 + $0x1] sm:$0x3] %vm2228, %v2160
          %2231 = vset.pattern.permute.xlu0 0
          %2232 = vperm.xlu0 %2231, %v2226
          %v2233 = vpop.permute.xlu0 %2232
          %2235 = vst.msk [vmem:[%s1305 + $0x3] sm:$0x1] %vm2084, %v2233
        $region164: #{tpu_custom_call.1} parent=139 // pred_fallthru
          _
        %s2236 = sand.u32 %s832, 1
        %s2237 = scalar_lea.sflag [#allocation5], %s2236
        %s2238 = sand.u32 %s832, 1
        %s2239 = smul.addr %s2238, 8
        %s2240 = scalar_lea.vmem [#allocation11], %s2239
        %s2241 = sand.u32 %s92, 1
        %s2242 = scalar_lea.sflag [#allocation13], %s2241
        %s2243 = sand.u32 %s860, 1
        %s2244 = smul.addr %s2243, 16
        %s2245 = scalar_lea.vmem [#allocation12], %s2244
        %s2246 = sand.u32 %s92, 1
        %s2247 = scalar_lea.sflag [#allocation13], %s2246
        %s2248 = sand.u32 %s886, 1
        %s2249 = smul.addr %s2248, 4
        %s2250 = scalar_lea.vmem [#allocation14], %s2249
        // Predicated region
        $region165: #{tpu_custom_call.1} parent=139 // pred_check
          %p2251 = pneg %p842
        $region166: #{tpu_custom_call.1} parent=139 // pred_check_branch
          %2253 = sbr.rel (%p2251) target = $region168
        $region167: #{tpu_custom_call.1} parent=139 // pred_region
          %2255 = vsyncadd %s2237, 0
          %s2256 = smul.addr %s96, 8
          %s2257 = scalar_lea.hbm %s61, %s2256
          %s2259 = sshll.u32 %s2240, 4
          %s2260 = int_to_ptr.vmem [resolvable:$true] %s2259
          %s2261 = sshll.u32 %s2257, 4
          %s2262 = int_to_ptr.hbm [resolvable:$true] %s2261
          %2264 = dma.vmem_to_hbm [thread:$0]  %s2260, 128, %s2262, %s2237
        $region168: #{tpu_custom_call.1} parent=139 // pred_fallthru
          _
        // Predicated region
        $region169: #{tpu_custom_call.1} parent=139 // pred_check
          %p2265 = pneg %p870
        $region170: #{tpu_custom_call.1} parent=139 // pred_check_branch
          %2267 = sbr.rel (%p2265) target = $region172
        $region171: #{tpu_custom_call.1} parent=139 // pred_region
          %2269 = vsyncadd %s2242, 0
          %s2270 = smul.addr %s97, 4
          %s2271 = smul.addr %s96, 8
          %s2272 = sadd.s32 %s2270, %s2271
          %s2273 = smul.addr %s2272, 4
          %s2274 = scalar_lea.hbm %s63, %s2273
          %s2275 = sshll.u32 %s2245, 4
          %s2276 = int_to_ptr.vmem [resolvable:$true] %s2275
          %s2277 = sshll.u32 %s2274, 4
          %s2278 = int_to_ptr.hbm [resolvable:$true] %s2277
          %2283 = dma.vmem_to_hbm [thread:$0]  %s2276, 256, %s2278, %s2242, 64, 64, 4
        $region172: #{tpu_custom_call.1} parent=139 // pred_fallthru
          _
        // Predicated region
        $region173: #{tpu_custom_call.1} parent=139 // pred_check
          %p2284 = pneg %p896
        $region174: #{tpu_custom_call.1} parent=139 // pred_check_branch
          %2286 = sbr.rel (%p2284) target = $region176
        $region175: #{tpu_custom_call.1} parent=139 // pred_region
          %2288 = vsyncadd %s2247, 0
          %s2289 = smul.addr %s96, 4
          %s2290 = scalar_lea.hbm %s65, %s2289
          %s2292 = sshll.u32 %s2250, 4
          %s2293 = int_to_ptr.vmem [resolvable:$true] %s2292
          %s2294 = sshll.u32 %s2290, 4
          %s2295 = int_to_ptr.hbm [resolvable:$true] %s2294
          %2297 = dma.vmem_to_hbm [thread:$0]  %s2293, 64, %s2295, %s2247
        $region176: #{tpu_custom_call.1} parent=139 // pred_fallthru
          _
      $region140: #{tpu_custom_call.1} parent=5 // pred_fallthru
        _
      %p2298 = scmp.le.s32.totalorder 2, %s87
      // Predicated region
      $region177: #{tpu_custom_call.1} parent=5 // pred_check
        %p2299 = pneg %p2298
      $region178: #{tpu_custom_call.1} parent=5 // pred_check_branch
        %2301 = sbr.rel (%p2299) target = $region180
      $region179: #{tpu_custom_call.1} parent=5 // pred_region
        %s2302 = ssub.s32 %s87, 2
        // Predicated region
        $region181: #{tpu_custom_call.1} parent=179 // pred_check
          %p2303 = pneg %p848
        $region182: #{tpu_custom_call.1} parent=179 // pred_check_branch
          %2305 = sbr.rel (%p2303) target = $region184
        $region183: #{tpu_custom_call.1} parent=179 // pred_region
          %s2306 = sand.u32 %s833, 1
          %s2307 = scalar_lea.sflag [#allocation5], %s2306
          %s2308 = sand.u32 %s833, 1
          %s2309 = smul.addr %s2308, 8
          %s2310 = scalar_lea.vmem [#allocation11], %s2309
          %2312 = dma.done %s2307, 128
        $region184: #{tpu_custom_call.1} parent=179 // pred_fallthru
          _
        // Predicated region
        $region185: #{tpu_custom_call.1} parent=179 // pred_check
          %p2313 = pneg %p876
        $region186: #{tpu_custom_call.1} parent=179 // pred_check_branch
          %2315 = sbr.rel (%p2313) target = $region188
        $region187: #{tpu_custom_call.1} parent=179 // pred_region
          %s2316 = sand.u32 %s93, 1
          %s2317 = scalar_lea.sflag [#allocation13], %s2316
          %s2318 = sand.u32 %s861, 1
          %s2319 = smul.addr %s2318, 16
          %s2320 = scalar_lea.vmem [#allocation12], %s2319
          %2322 = dma.done %s2317, 256
        $region188: #{tpu_custom_call.1} parent=179 // pred_fallthru
          _
        // Predicated region
        $region189: #{tpu_custom_call.1} parent=179 // pred_check
          %p2323 = pneg %p902
        $region190: #{tpu_custom_call.1} parent=179 // pred_check_branch
          %2325 = sbr.rel (%p2323) target = $region192
        $region191: #{tpu_custom_call.1} parent=179 // pred_region
          %s2326 = sand.u32 %s93, 1
          %s2327 = scalar_lea.sflag [#allocation13], %s2326
          %s2328 = sand.u32 %s887, 1
          %s2329 = smul.addr %s2328, 4
          %s2330 = scalar_lea.vmem [#allocation14], %s2329
          %2332 = dma.done %s2327, 64
        $region192: #{tpu_custom_call.1} parent=179 // pred_fallthru
          _
      $region180: #{tpu_custom_call.1} parent=5 // pred_fallthru
        _
    $region6: #{tpu_custom_call.1} parent=1 // loop_footer
      %s91 = sadd.s32 1, %s87
    $region7: #{tpu_custom_call.1} parent=1 // loop_footer_branch
      %86 = sbr.rel target = $region3
    $region8: #{tpu_custom_call.1} parent=1 // loop_exit
      _
    %2333 = vsyncpa [#allocation4], 1
    %s2334 = scalar_lea.sflag [#allocation4], 1
    %2335 = vsyncpa %s2334, 1
    %2336 = vsyncpa [#allocation7], 1
    %2337 = vsyncpa [#allocation10], 1
    %s2338 = scalar_lea.sflag [#allocation10], 1
    %2339 = vsyncpa %s2338, 1
    %2340 = vsyncpa [#allocation5], 1
    %s2341 = scalar_lea.sflag [#allocation5], 1
    %2342 = vsyncpa %s2341, 1
    %2343 = vsyncpa [#allocation13], 1
    %s2344 = scalar_lea.sflag [#allocation13], 1
    %2345 = vsyncpa %s2344, 1

</llo_original>
